<compile_context>
chip_gen: v7x
topology: tpu7x:2x2x1
jax: 0.10.0
libtpu: 0.0.40
codegen_flags: <defaults>
</compile_context>

<pallas_src>
import functools

import jax
import jax.numpy as jnp
from jax import lax
from jax.experimental import pallas as pl
from jax.experimental.pallas import tpu as pltpu


GATE = 128                 # per-gate lane width (vreg-aligned gate layout)
NGATES = 3
G3 = NGATES * GATE         # fused gate width (r|z|n), 384 lanes
_SUBLANE = 8
_MAX_ROW_BLOCK = 256       # utterance rows per grid block (>=256 per review)
_MAX_T_BLOCK = 8           # token time-steps streamed per grid block


def _round_up(x, m):
    return (x + m - 1) // m * m


def _pad_gates(w, hidden):
    """(..., 3*hidden) -> (..., 3*GATE): each gate zero-padded to GATE lanes."""
    parts = []
    for g in range(NGATES):
        blk = w[..., g * hidden:(g + 1) * hidden]
        pad = [(0, 0)] * (blk.ndim - 1) + [(0, GATE - hidden)]
        parts.append(jnp.pad(blk, pad))
    return jnp.concatenate(parts, axis=-1)


# ----------------------------------------------------------------------------
# Fused kernel: utterance GRU -> regroup -> context GRU -> classifier
# ----------------------------------------------------------------------------
def _craft_fused_kernel(pos_ref,                                   # SMEM (scalar prefetch)
                        x_ref, ulen_ref, enc_whh_ref, enc_bhhn_ref,
                        dlen_ref, ctx_wih_ref, ctx_bih_ref, ctx_whh_ref,
                        ctx_bhhn_ref, w1_ref, b1_ref, w2_ref, b2_ref,
                        w3_ref, b3_ref,
                        out_ref,
                        uh_ref, ctx_ref, xpc_ref, ch_ref):
    i = pl.program_id(0)            # utterance-row block
    tb = pl.program_id(1)           # token time block
    n_i = pl.num_programs(0)
    n_tb = pl.num_programs(1)

    t_block, row_block, g3 = x_ref.shape
    gate = g3 // NGATES
    bp = ch_ref.shape[0]
    td = xpc_ref.shape[0] // bp
    hidden = w1_ref.shape[0]

    # ---- init (context-input scratch once; utterance hidden per row block) ----
    @pl.when(jnp.logical_and(i == 0, tb == 0))
    def _():
        ctx_ref[...] = jnp.zeros_like(ctx_ref)

    @pl.when(tb == 0)
    def _():
        uh_ref[...] = jnp.zeros_like(uh_ref)

    # ---- utterance-encoder GRU over this (row_block x t_block) tile ----
    ulen = ulen_ref[...]                                        # (rows, 1) int32
    bhhn = jnp.broadcast_to(enc_bhhn_ref[...], (row_block, gate))   # hoisted
    t0 = tb * t_block

    def utt_step(t, carry):
        h = uh_ref[...]
        gi = x_ref[t]                                           # (rows, 3*GATE)
        gh = jnp.dot(h, enc_whh_ref[...], preferred_element_type=jnp.float32)
        rz = jax.nn.sigmoid(gi[:, :2 * gate] + gh[:, :2 * gate])
        r = rz[:, :gate]
        z = rz[:, gate:]
        n = jnp.tanh(gi[:, 2 * gate:] + r * (gh[:, 2 * gate:] + bhhn))
        h_new = (1.0 - z) * n + z * h
        uh_ref[...] = jnp.where(t0 + t < ulen, h_new, h)        # packed-seq freeze
        return carry

    lax.fori_loop(0, t_block, utt_step, 0, unroll=True)

    # ---- makeContextEncoderInput: scatter final hidden rows into ctx scratch ----
    @pl.when(tb == n_tb - 1)
    def _():
        def scatter_row(r, carry):
            dst = pos_ref[i * row_block + r]                    # SMEM scalar read
            ctx_ref[pl.ds(dst, 1), :] = uh_ref[pl.ds(r, 1), :]
            return carry
        lax.fori_loop(0, row_block, scatter_row, 0, unroll=8)

    # ---- context GRU + classifier epilogue (last grid step only) ----
    @pl.when(jnp.logical_and(i == n_i - 1, tb == n_tb - 1))
    def _():
        # Hoisted input projection: only the first `hidden` lanes of the slab
        # carry data (padding lanes are exactly zero), so K = hidden.
        ctx_in = ctx_ref[0:td * bp, 0:hidden]
        xpc_ref[...] = (jnp.dot(ctx_in, ctx_wih_ref[...],
                                preferred_element_type=jnp.float32)
                        + ctx_bih_ref[...])

        ch_ref[...] = jnp.zeros_like(ch_ref)
        dlen = dlen_ref[...]
        cbhhn = jnp.broadcast_to(ctx_bhhn_ref[...], (bp, gate))

        def ctx_step(t, carry):
            h = ch_ref[...]
            off = pl.multiple_of(t * bp, bp)
            gi = xpc_ref[pl.ds(off, bp), :]
            gh = jnp.dot(h, ctx_whh_ref[...],
                         preferred_element_type=jnp.float32)
            rz = jax.nn.sigmoid(gi[:, :2 * gate] + gh[:, :2 * gate])
            r = rz[:, :gate]
            z = rz[:, gate:]
            n = jnp.tanh(gi[:, 2 * gate:] + r * (gh[:, 2 * gate:] + cbhhn))
            h_new = (1.0 - z) * n + z * h
            ch_ref[...] = jnp.where(t < dlen, h_new, h)
            return carry

        lax.fori_loop(0, td, ctx_step, 0, unroll=True)

        # Classifier on the length-frozen context state (== output at
        # dialog_lengths-1 for a single-layer unidirectional GRU).
        h_last = ch_ref[...][:, :hidden]
        a1 = jnp.maximum(
            jnp.dot(h_last, w1_ref[...], preferred_element_type=jnp.float32)
            + b1_ref[...], 0.0)
        a2 = jnp.maximum(
            jnp.dot(a1, w2_ref[...], preferred_element_type=jnp.float32)
            + b2_ref[...], 0.0)
        out_ref[...] = (
            jnp.dot(a2, w3_ref[...], preferred_element_type=jnp.float32)
            + b3_ref[...])


# ----------------------------------------------------------------------------
# Predictor forward (jitted; max_dialog_len / batch_size are STATIC ints)
# ----------------------------------------------------------------------------
@functools.partial(jax.jit, static_argnums=(6, 7, 8))
def predictor_forward(kp, input_batch, dialog_lengths, utt_lengths,
                      batch_indices, dialog_indices,
                      batch_size, max_length, max_dialog_len):
    del max_length                       # token-time extent = input_batch.shape[0]
    T, N = input_batch.shape
    B = batch_size
    TD = max_dialog_len
    H = kp["clf_w1"].shape[0]
    H2 = kp["clf_w2"].shape[1]

    # ---- grid / padding geometry ----
    Np0 = _round_up(max(N, 1), _SUBLANE)
    row_block = min(_MAX_ROW_BLOCK, Np0)
    Np = _round_up(Np0, row_block)
    n_row_blocks = Np // row_block

    t_block = min(_MAX_T_BLOCK, T)
    Tp = _round_up(T, t_block)
    n_t_blocks = Tp // t_block

    Bp = _round_up(max(B, 1), _SUBLANE)

    # ---- utterance encoder input: projected-embedding gather (fold of Wih) ----
    xproj = jnp.take(kp["proj_table"], input_batch, axis=0)        # (T, N, 3*GATE)
    xproj = jnp.pad(xproj, ((0, Tp - T), (0, Np - N), (0, 0)))

    ulen_p = jnp.zeros((Np, 1), jnp.int32).at[:N, 0].set(
        utt_lengths.astype(jnp.int32))
    dlen_p = jnp.zeros((Bp, 1), jnp.int32).at[:B, 0].set(
        dialog_lengths.astype(jnp.int32))

    # ---- in-kernel regroup destinations (row d*Bp + b of the ctx scratch) ----
    dump = TD * Bp                        # padding / out-of-range rows go here
    di = dialog_indices.astype(jnp.int32)
    bi = batch_indices.astype(jnp.int32)
    valid = (di >= 0) & (di < TD) & (bi >= 0) & (bi < B)
    pos = jnp.where(valid, di * Bp + bi, dump)
    pos_p = jnp.full((Np,), dump, jnp.int32).at[:N].set(pos)

    cmap = lambda i, t, pos: (0, 0)       # resident weights / output

    logits_p = pl.pallas_call(
        _craft_fused_kernel,
        out_shape=jax.ShapeDtypeStruct((Bp, 1), jnp.float32),
        grid_spec=pltpu.PrefetchScalarGridSpec(
            num_scalar_prefetch=1,
            grid=(n_row_blocks, n_t_blocks),
            in_specs=[
                pl.BlockSpec((t_block, row_block, G3),
                             lambda i, t, pos: (t, i, 0)),          # xproj
                pl.BlockSpec((row_block, 1), lambda i, t, pos: (i, 0)),  # utt lens
                pl.BlockSpec((GATE, G3), cmap),                     # enc_whh
                pl.BlockSpec((1, GATE), cmap),                      # enc_bhh_n
                pl.BlockSpec((Bp, 1), cmap),                        # dialog lens
                pl.BlockSpec((H, G3), cmap),                        # ctx_wih
                pl.BlockSpec((1, G3), cmap),                        # ctx_bih
                pl.BlockSpec((GATE, G3), cmap),                     # ctx_whh
                pl.BlockSpec((1, GATE), cmap),                      # ctx_bhh_n
                pl.BlockSpec((H, H), cmap), pl.BlockSpec((1, H), cmap),
                pl.BlockSpec((H, H2), cmap), pl.BlockSpec((1, H2), cmap),
                pl.BlockSpec((H2, 1), cmap), pl.BlockSpec((1, 1), cmap),
            ],
            out_specs=pl.BlockSpec((Bp, 1), cmap),
            scratch_shapes=[
                pltpu.VMEM((row_block, GATE), jnp.float32),          # utt hidden
                pltpu.VMEM((TD * Bp + _SUBLANE, GATE), jnp.float32), # ctx input
                pltpu.VMEM((TD * Bp, G3), jnp.float32),              # ctx projection
                pltpu.VMEM((Bp, GATE), jnp.float32),                 # ctx hidden
            ],
        ),
        compiler_params=pltpu.CompilerParams(
            dimension_semantics=("arbitrary", "arbitrary")),
    )(pos_p, xproj, ulen_p,
      kp["enc_whh"], kp["enc_bhh_n"], dlen_p,
      kp["ctx_wih"], kp["ctx_bih"], kp["ctx_whh"], kp["ctx_bhh_n"],
      kp["clf_w1"], kp["clf_b1"], kp["clf_w2"], kp["clf_b2"],
      kp["clf_w3"], kp["clf_b3"])
    return logits_p[:B]


class Predictor:
    """CRAFT pipeline: utterance encoder -> context encoder -> classifier."""

    def __init__(self, params):
        self.kp = prepare_kernel_params(params)

    def forward(self, input_batch, dialog_lengths, utt_lengths,
                batch_indices, dialog_indices, batch_size, max_length,
                max_dialog_len):
        return predictor_forward(self.kp, input_batch, dialog_lengths,
                                 utt_lengths, batch_indices, dialog_indices,
                                 int(batch_size), int(max_length),
                                 int(max_dialog_len))


# ----------------------------------------------------------------------------
# Deterministic parameter construction + offline fold into kernel layout
# ----------------------------------------------------------------------------
def build_params(key, vocab=50, embed=16, hidden=32):
    """Natural-layout synthetic sub-module weights (GRU gate order r|z|n)."""
    keys = jax.random.split(key, 16)
    s = 0.1
    h2 = hidden // 2
    g3 = 3 * hidden
    f = jnp.float32
    return {
        "embedding": s * jax.random.normal(keys[0], (vocab, embed), f),
        "enc_wih": s * jax.random.normal(keys[1], (embed, g3), f),
        "enc_whh": s * jax.random.normal(keys[2], (hidden, g3), f),
        "enc_bih": s * jax.random.normal(keys[3], (1, g3), f),
        "enc_bhh": s * jax.random.normal(keys[4], (1, g3), f),
        "ctx_wih": s * jax.random.normal(keys[5], (hidden, g3), f),
        "ctx_whh": s * jax.random.normal(keys[6], (hidden, g3), f),
        "ctx_bih": s * jax.random.normal(keys[7], (1, g3), f),
        "ctx_bhh": s * jax.random.normal(keys[8], (1, g3), f),
        "clf_w1": s * jax.random.normal(keys[9], (hidden, hidden), f),
        "clf_b1": s * jax.random.normal(keys[10], (1, hidden), f),
        "clf_w2": s * jax.random.normal(keys[11], (hidden, h2), f),
        "clf_b2": s * jax.random.normal(keys[12], (1, h2), f),
        "clf_w3": s * jax.random.normal(keys[13], (h2, 1), f),
        "clf_b3": s * jax.random.normal(keys[14], (1, 1), f),
    }


def prepare_kernel_params(nat):
    """Fold/pad natural weights into the kernel layout (done once, offline).

    * enc_wih / enc_bih / enc_bhh[r,z] are folded into the embedding table so
      the kernel never runs the K=embed input projection.
    * Each GRU gate is zero-padded to GATE=128 lanes (vreg-aligned slices).
    * whh rows beyond `hidden` (and all per-gate padding columns) are zero so
      the 128-lane hidden slab's padding lanes stay exactly zero.
    """
    H = nat["enc_whh"].shape[0]
    f = jnp.float32
    zero_n = jnp.zeros((1, H), f)

    enc_rz_bias = jnp.concatenate([nat["enc_bhh"][:, :2 * H], zero_n], axis=-1)
    table = nat["embedding"] @ nat["enc_wih"] + nat["enc_bih"] + enc_rz_bias
    proj_table = _pad_gates(table, H)                               # (V, 3*GATE)

    enc_whh = jnp.zeros((GATE, G3), f).at[:H].set(_pad_gates(nat["enc_whh"], H))
    enc_bhh_n = jnp.zeros((1, GATE), f).at[:, :H].set(nat["enc_bhh"][:, 2 * H:])

    ctx_rz_bias = jnp.concatenate([nat["ctx_bhh"][:, :2 * H], zero_n], axis=-1)
    ctx_bih = _pad_gates(nat["ctx_bih"] + ctx_rz_bias, H)           # (1, 3*GATE)
    ctx_wih = _pad_gates(nat["ctx_wih"], H)                         # (H, 3*GATE)
    ctx_whh = jnp.zeros((GATE, G3), f).at[:H].set(_pad_gates(nat["ctx_whh"], H))
    ctx_bhh_n = jnp.zeros((1, GATE), f).at[:, :H].set(nat["ctx_bhh"][:, 2 * H:])

    return {
        "proj_table": proj_table,
        "enc_whh": enc_whh, "enc_bhh_n": enc_bhh_n,
        "ctx_wih": ctx_wih, "ctx_bih": ctx_bih,
        "ctx_whh": ctx_whh, "ctx_bhh_n": ctx_bhh_n,
        "clf_w1": nat["clf_w1"], "clf_b1": nat["clf_b1"],
        "clf_w2": nat["clf_w2"], "clf_b2": nat["clf_b2"],
        "clf_w3": nat["clf_w3"], "clf_b3": nat["clf_b3"],
    }


if __name__ == "__main__":
    key = jax.random.PRNGKey(0)
    pkey, dkey = jax.random.split(key)
    params = build_params(pkey)
    predictor = Predictor(params)

    # Small example: 2 dialogs, 5 total utterances (3 + 2), max_length 8 tokens.
    batch_size = 2
    max_length = 8
    num_utts = 5
    vocab = 50

    input_batch = jax.random.randint(dkey, (max_length, num_utts), 0, vocab,
                                     dtype=jnp.int32)            # (T, N) tokens
    utt_lengths = jnp.array([8, 5, 3, 7, 4], dtype=jnp.int32)     # per utterance
    dialog_lengths_list = [3, 2]                                  # per dialog
    dialog_lengths = jnp.array(dialog_lengths_list, dtype=jnp.int32)
    max_dialog_len = max(dialog_lengths_list)   # static Python int, no device sync
    # utterances arrive interleaved; these indices restore dialog order
    batch_indices = jnp.array([0, 1, 0, 1, 0], dtype=jnp.int32)
    dialog_indices = jnp.array([0, 0, 1, 1, 2], dtype=jnp.int32)

    logits = predictor.forward(input_batch, dialog_lengths, utt_lengths,
                               batch_indices, dialog_indices,
                               batch_size, max_length, max_dialog_len)
    jax.block_until_ready(logits)
    assert logits.shape == (batch_size, 1)
    assert bool(jnp.all(jnp.isfinite(logits)))
    print("KERNEL_OK")
</pallas_src>

<mosaic_0001>
module attributes {stable_mosaic.version = 11 : i64} {
  func.func @_craft_fused_kernel(%arg0: i32, %arg1: i32, %arg2: memref<8xi32, #tpu.memory_space<smem>>, %arg3: memref<8x8x384xf32, #tpu.memory_space<vmem>>, %arg4: memref<8x1xi32, #tpu.memory_space<vmem>>, %arg5: memref<128x384xf32, #tpu.memory_space<vmem>>, %arg6: memref<1x128xf32, #tpu.memory_space<vmem>>, %arg7: memref<8x1xi32, #tpu.memory_space<vmem>>, %arg8: memref<32x384xf32, #tpu.memory_space<vmem>>, %arg9: memref<1x384xf32, #tpu.memory_space<vmem>>, %arg10: memref<128x384xf32, #tpu.memory_space<vmem>>, %arg11: memref<1x128xf32, #tpu.memory_space<vmem>>, %arg12: memref<32x32xf32, #tpu.memory_space<vmem>>, %arg13: memref<1x32xf32, #tpu.memory_space<vmem>>, %arg14: memref<32x16xf32, #tpu.memory_space<vmem>>, %arg15: memref<1x16xf32, #tpu.memory_space<vmem>>, %arg16: memref<16x1xf32, #tpu.memory_space<vmem>>, %arg17: memref<1x1xf32, #tpu.memory_space<vmem>>, %arg18: memref<8x1xf32, #tpu.memory_space<vmem>>, %arg19: memref<8x128xf32, #tpu.memory_space<vmem>>, %arg20: memref<32x128xf32, #tpu.memory_space<vmem>>, %arg21: memref<24x384xf32, #tpu.memory_space<vmem>>, %arg22: memref<8x128xf32, #tpu.memory_space<vmem>>) attributes {dimension_semantics = [#tpu.dimension_semantics<arbitrary>, #tpu.dimension_semantics<arbitrary>], iteration_bounds = array<i64: 1, 1>, scalar_prefetch = 1 : i64, scratch_operands = 4 : i64, tpu.core_type = #tpu.core_type<tc>, window_params = [{transform_indices = @transform_0, window_bounds = array<i64: 8, 8, 384>}, {transform_indices = @transform_1, window_bounds = array<i64: 8, 1>}, {pipeline_mode = #tpu.pipeline_mode<synchronous>, transform_indices = @transform_2, window_bounds = array<i64: 128, 384>}, {pipeline_mode = #tpu.pipeline_mode<synchronous>, transform_indices = @transform_3, window_bounds = array<i64: 1, 128>}, {pipeline_mode = #tpu.pipeline_mode<synchronous>, transform_indices = @transform_4, window_bounds = array<i64: 8, 1>}, {pipeline_mode = #tpu.pipeline_mode<synchronous>, transform_indices = @transform_5, window_bounds = array<i64: 32, 384>}, {pipeline_mode = #tpu.pipeline_mode<synchronous>, transform_indices = @transform_6, window_bounds = array<i64: 1, 384>}, {pipeline_mode = #tpu.pipeline_mode<synchronous>, transform_indices = @transform_7, window_bounds = array<i64: 128, 384>}, {pipeline_mode = #tpu.pipeline_mode<synchronous>, transform_indices = @transform_8, window_bounds = array<i64: 1, 128>}, {pipeline_mode = #tpu.pipeline_mode<synchronous>, transform_indices = @transform_9, window_bounds = array<i64: 32, 32>}, {pipeline_mode = #tpu.pipeline_mode<synchronous>, transform_indices = @transform_10, window_bounds = array<i64: 1, 32>}, {pipeline_mode = #tpu.pipeline_mode<synchronous>, transform_indices = @transform_11, window_bounds = array<i64: 32, 16>}, {pipeline_mode = #tpu.pipeline_mode<synchronous>, transform_indices = @transform_12, window_bounds = array<i64: 1, 16>}, {pipeline_mode = #tpu.pipeline_mode<synchronous>, transform_indices = @transform_13, window_bounds = array<i64: 16, 1>}, {pipeline_mode = #tpu.pipeline_mode<synchronous>, transform_indices = @transform_14, window_bounds = array<i64: 1, 1>}, {pipeline_mode = #tpu.pipeline_mode<synchronous>, transform_indices = @transform_15, window_bounds = array<i64: 8, 1>}]} {
    %c0_i32 = arith.constant 0 : i32
    %0 = arith.cmpi eq, %arg0, %c0_i32 : i32
    %c0_i32_0 = arith.constant 0 : i32
    %1 = arith.cmpi eq, %arg1, %c0_i32_0 : i32
    %2 = arith.andi %0, %1 : i1
    %3 = arith.extui %2 : i1 to i32
    %c0_i32_1 = arith.constant 0 : i32
    %4 = arith.cmpi ne, %3, %c0_i32_1 : i32
    scf.if %4 {
      %cst_101 = arith.constant 0.000000e+00 : f32
      %293 = vector.broadcast %cst_101 : f32 to vector<32x128xf32>
      %c0_102 = arith.constant 0 : index
      %c0_103 = arith.constant 0 : index
      %294 = vector.load %arg20[%c0_102, %c0_103] : memref<32x128xf32, #tpu.memory_space<vmem>>, vector<32x128xf32>
      tpu.vector_store %arg20[%c0_102, %c0_103], %293 {strides = array<i32>} : memref<32x128xf32, #tpu.memory_space<vmem>>, vector<32x128xf32>,
    } else {
    }
    %c0_i32_2 = arith.constant 0 : i32
    %5 = arith.cmpi eq, %arg1, %c0_i32_2 : i32
    %6 = arith.extui %5 : i1 to i32
    %c0_i32_3 = arith.constant 0 : i32
    %7 = arith.cmpi ne, %6, %c0_i32_3 : i32
    scf.if %7 {
      %cst_101 = arith.constant 0.000000e+00 : f32
      %293 = vector.broadcast %cst_101 : f32 to vector<8x128xf32>
      %c0_102 = arith.constant 0 : index
      %c0_103 = arith.constant 0 : index
      %294 = vector.load %arg19[%c0_102, %c0_103] : memref<8x128xf32, #tpu.memory_space<vmem>>, vector<8x128xf32>
      tpu.vector_store %arg19[%c0_102, %c0_103], %293 {strides = array<i32>} : memref<8x128xf32, #tpu.memory_space<vmem>>, vector<8x128xf32>,
    } else {
    }
    %c0 = arith.constant 0 : index
    %c0_4 = arith.constant 0 : index
    %8 = vector.load %arg4[%c0, %c0_4] : memref<8x1xi32, #tpu.memory_space<vmem>>, vector<8x1xi32>
    %c0_5 = arith.constant 0 : index
    %c0_6 = arith.constant 0 : index
    %9 = vector.load %arg6[%c0_5, %c0_6] : memref<1x128xf32, #tpu.memory_space<vmem>>, vector<1x128xf32>
    %10 = vector.shape_cast %9 : vector<1x128xf32> to vector<1x128xf32>
    %11 = vector.broadcast %10 : vector<1x128xf32> to vector<8x128xf32>
    %c8_i32 = arith.constant 8 : i32
    %12 = arith.muli %arg1, %c8_i32 : i32
    %c0_i32_7 = arith.constant 0 : i32
    %c0_8 = arith.constant 0 : index
    %c0_9 = arith.constant 0 : index
    %13 = vector.load %arg19[%c0_8, %c0_9] : memref<8x128xf32, #tpu.memory_space<vmem>>, vector<8x128xf32>
    %14 = arith.index_cast %c0_i32_7 : i32 to index
    %c0_10 = arith.constant 0 : index
    %c0_11 = arith.constant 0 : index
    %15 = vector.load %arg3[%14, %c0_10, %c0_11] : memref<8x8x384xf32, #tpu.memory_space<vmem>>, vector<1x8x384xf32>
    %16 = vector.shape_cast %15 : vector<1x8x384xf32> to vector<8x384xf32>
    %c0_12 = arith.constant 0 : index
    %c0_13 = arith.constant 0 : index
    %17 = vector.load %arg5[%c0_12, %c0_13] : memref<128x384xf32, #tpu.memory_space<vmem>>, vector<128x384xf32>
    %cst = arith.constant dense<0.000000e+00> : vector<8x384xf32>
    %18 = tpu.matmul %13, %17, %cst {dimension_numbers = #tpu.dot_dimension_numbers<[1], [0], [0], [1], [0, 0, 1, 1], [], []>} : vector<8x128xf32>, vector<128x384xf32>, vector<8x384xf32> -> vector<8x384xf32>
    %19 = vector.extract_strided_slice %16 {offsets = [0, 0], sizes = [8, 256], strides = [1, 1]} : vector<8x384xf32> to vector<8x256xf32>
    %20 = vector.extract_strided_slice %18 {offsets = [0, 0], sizes = [8, 256], strides = [1, 1]} : vector<8x384xf32> to vector<8x256xf32>
    %21 = arith.addf %19, %20 : vector<8x256xf32>
    %22 = arith.negf %21 : vector<8x256xf32>
    %23 = math.exp %22 : vector<8x256xf32>
    %cst_14 = arith.constant 1.000000e+00 : f32
    %24 = vector.broadcast %cst_14 : f32 to vector<8x256xf32>
    %25 = arith.addf %24, %23 : vector<8x256xf32>
    %26 = arith.divf %24, %25 : vector<8x256xf32>
    %27 = vector.extract_strided_slice %26 {offsets = [0, 0], sizes = [8, 128], strides = [1, 1]} : vector<8x256xf32> to vector<8x128xf32>
    %28 = vector.extract_strided_slice %26 {offsets = [0, 128], sizes = [8, 128], strides = [1, 1]} : vector<8x256xf32> to vector<8x128xf32>
    %29 = vector.extract_strided_slice %16 {offsets = [0, 256], sizes = [8, 128], strides = [1, 1]} : vector<8x384xf32> to vector<8x128xf32>
    %30 = vector.extract_strided_slice %18 {offsets = [0, 256], sizes = [8, 128], strides = [1, 1]} : vector<8x384xf32> to vector<8x128xf32>
    %31 = arith.addf %30, %11 : vector<8x128xf32>
    %32 = arith.mulf %27, %31 : vector<8x128xf32>
    %33 = arith.addf %29, %32 : vector<8x128xf32>
    %34 = math.tanh %33 : vector<8x128xf32>
    %cst_15 = arith.constant 1.000000e+00 : f32
    %35 = vector.broadcast %cst_15 : f32 to vector<8x128xf32>
    %36 = arith.subf %35, %28 : vector<8x128xf32>
    %37 = arith.mulf %36, %34 : vector<8x128xf32>
    %38 = arith.mulf %28, %13 : vector<8x128xf32>
    %39 = arith.addf %37, %38 : vector<8x128xf32>
    %40 = arith.addi %12, %c0_i32_7 : i32
    %41 = vector.broadcast %40 : i32 to vector<8x1xi32>
    %42 = arith.cmpi slt, %41, %8 : vector<8x1xi32>
    %43 = vector.shape_cast %42 : vector<8x1xi1> to vector<8x1xi1>
    %44 = vector.broadcast %43 : vector<8x1xi1> to vector<8x128xi1>
    %45 = arith.select %44, %39, %13 : vector<8x128xi1>, vector<8x128xf32>
    %c0_16 = arith.constant 0 : index
    %c0_17 = arith.constant 0 : index
    %46 = vector.load %arg19[%c0_16, %c0_17] : memref<8x128xf32, #tpu.memory_space<vmem>>, vector<8x128xf32>
    tpu.vector_store %arg19[%c0_16, %c0_17], %45 {strides = array<i32>} : memref<8x128xf32, #tpu.memory_space<vmem>>, vector<8x128xf32>,
    %c1_i32 = arith.constant 1 : i32
    %c0_18 = arith.constant 0 : index
    %c0_19 = arith.constant 0 : index
    %47 = vector.load %arg19[%c0_18, %c0_19] : memref<8x128xf32, #tpu.memory_space<vmem>>, vector<8x128xf32>
    %48 = arith.index_cast %c1_i32 : i32 to index
    %c0_20 = arith.constant 0 : index
    %c0_21 = arith.constant 0 : index
    %49 = vector.load %arg3[%48, %c0_20, %c0_21] : memref<8x8x384xf32, #tpu.memory_space<vmem>>, vector<1x8x384xf32>
    %50 = vector.shape_cast %49 : vector<1x8x384xf32> to vector<8x384xf32>
    %c0_22 = arith.constant 0 : index
    %c0_23 = arith.constant 0 : index
    %51 = vector.load %arg5[%c0_22, %c0_23] : memref<128x384xf32, #tpu.memory_space<vmem>>, vector<128x384xf32>
    %cst_24 = arith.constant dense<0.000000e+00> : vector<8x384xf32>
    %52 = tpu.matmul %47, %51, %cst_24 {dimension_numbers = #tpu.dot_dimension_numbers<[1], [0], [0], [1], [0, 0, 1, 1], [], []>} : vector<8x128xf32>, vector<128x384xf32>, vector<8x384xf32> -> vector<8x384xf32>
    %53 = vector.extract_strided_slice %50 {offsets = [0, 0], sizes = [8, 256], strides = [1, 1]} : vector<8x384xf32> to vector<8x256xf32>
    %54 = vector.extract_strided_slice %52 {offsets = [0, 0], sizes = [8, 256], strides = [1, 1]} : vector<8x384xf32> to vector<8x256xf32>
    %55 = arith.addf %53, %54 : vector<8x256xf32>
    %56 = arith.negf %55 : vector<8x256xf32>
    %57 = math.exp %56 : vector<8x256xf32>
    %cst_25 = arith.constant 1.000000e+00 : f32
    %58 = vector.broadcast %cst_25 : f32 to vector<8x256xf32>
    %59 = arith.addf %58, %57 : vector<8x256xf32>
    %60 = arith.divf %58, %59 : vector<8x256xf32>
    %61 = vector.extract_strided_slice %60 {offsets = [0, 0], sizes = [8, 128], strides = [1, 1]} : vector<8x256xf32> to vector<8x128xf32>
    %62 = vector.extract_strided_slice %60 {offsets = [0, 128], sizes = [8, 128], strides = [1, 1]} : vector<8x256xf32> to vector<8x128xf32>
    %63 = vector.extract_strided_slice %50 {offsets = [0, 256], sizes = [8, 128], strides = [1, 1]} : vector<8x384xf32> to vector<8x128xf32>
    %64 = vector.extract_strided_slice %52 {offsets = [0, 256], sizes = [8, 128], strides = [1, 1]} : vector<8x384xf32> to vector<8x128xf32>
    %65 = arith.addf %64, %11 : vector<8x128xf32>
    %66 = arith.mulf %61, %65 : vector<8x128xf32>
    %67 = arith.addf %63, %66 : vector<8x128xf32>
    %68 = math.tanh %67 : vector<8x128xf32>
    %cst_26 = arith.constant 1.000000e+00 : f32
    %69 = vector.broadcast %cst_26 : f32 to vector<8x128xf32>
    %70 = arith.subf %69, %62 : vector<8x128xf32>
    %71 = arith.mulf %70, %68 : vector<8x128xf32>
    %72 = arith.mulf %62, %47 : vector<8x128xf32>
    %73 = arith.addf %71, %72 : vector<8x128xf32>
    %74 = arith.addi %12, %c1_i32 : i32
    %75 = vector.broadcast %74 : i32 to vector<8x1xi32>
    %76 = arith.cmpi slt, %75, %8 : vector<8x1xi32>
    %77 = vector.shape_cast %76 : vector<8x1xi1> to vector<8x1xi1>
    %78 = vector.broadcast %77 : vector<8x1xi1> to vector<8x128xi1>
    %79 = arith.select %78, %73, %47 : vector<8x128xi1>, vector<8x128xf32>
    %c0_27 = arith.constant 0 : index
    %c0_28 = arith.constant 0 : index
    %80 = vector.load %arg19[%c0_27, %c0_28] : memref<8x128xf32, #tpu.memory_space<vmem>>, vector<8x128xf32>
    tpu.vector_store %arg19[%c0_27, %c0_28], %79 {strides = array<i32>} : memref<8x128xf32, #tpu.memory_space<vmem>>, vector<8x128xf32>,
    %c2_i32 = arith.constant 2 : i32
    %c0_29 = arith.constant 0 : index
    %c0_30 = arith.constant 0 : index
    %81 = vector.load %arg19[%c0_29, %c0_30] : memref<8x128xf32, #tpu.memory_space<vmem>>, vector<8x128xf32>
    %82 = arith.index_cast %c2_i32 : i32 to index
    %c0_31 = arith.constant 0 : index
    %c0_32 = arith.constant 0 : index
    %83 = vector.load %arg3[%82, %c0_31, %c0_32] : memref<8x8x384xf32, #tpu.memory_space<vmem>>, vector<1x8x384xf32>
    %84 = vector.shape_cast %83 : vector<1x8x384xf32> to vector<8x384xf32>
    %c0_33 = arith.constant 0 : index
    %c0_34 = arith.constant 0 : index
    %85 = vector.load %arg5[%c0_33, %c0_34] : memref<128x384xf32, #tpu.memory_space<vmem>>, vector<128x384xf32>
    %cst_35 = arith.constant dense<0.000000e+00> : vector<8x384xf32>
    %86 = tpu.matmul %81, %85, %cst_35 {dimension_numbers = #tpu.dot_dimension_numbers<[1], [0], [0], [1], [0, 0, 1, 1], [], []>} : vector<8x128xf32>, vector<128x384xf32>, vector<8x384xf32> -> vector<8x384xf32>
    %87 = vector.extract_strided_slice %84 {offsets = [0, 0], sizes = [8, 256], strides = [1, 1]} : vector<8x384xf32> to vector<8x256xf32>
    %88 = vector.extract_strided_slice %86 {offsets = [0, 0], sizes = [8, 256], strides = [1, 1]} : vector<8x384xf32> to vector<8x256xf32>
    %89 = arith.addf %87, %88 : vector<8x256xf32>
    %90 = arith.negf %89 : vector<8x256xf32>
    %91 = math.exp %90 : vector<8x256xf32>
    %cst_36 = arith.constant 1.000000e+00 : f32
    %92 = vector.broadcast %cst_36 : f32 to vector<8x256xf32>
    %93 = arith.addf %92, %91 : vector<8x256xf32>
    %94 = arith.divf %92, %93 : vector<8x256xf32>
    %95 = vector.extract_strided_slice %94 {offsets = [0, 0], sizes = [8, 128], strides = [1, 1]} : vector<8x256xf32> to vector<8x128xf32>
    %96 = vector.extract_strided_slice %94 {offsets = [0, 128], sizes = [8, 128], strides = [1, 1]} : vector<8x256xf32> to vector<8x128xf32>
    %97 = vector.extract_strided_slice %84 {offsets = [0, 256], sizes = [8, 128], strides = [1, 1]} : vector<8x384xf32> to vector<8x128xf32>
    %98 = vector.extract_strided_slice %86 {offsets = [0, 256], sizes = [8, 128], strides = [1, 1]} : vector<8x384xf32> to vector<8x128xf32>
    %99 = arith.addf %98, %11 : vector<8x128xf32>
    %100 = arith.mulf %95, %99 : vector<8x128xf32>
    %101 = arith.addf %97, %100 : vector<8x128xf32>
    %102 = math.tanh %101 : vector<8x128xf32>
    %cst_37 = arith.constant 1.000000e+00 : f32
    %103 = vector.broadcast %cst_37 : f32 to vector<8x128xf32>
    %104 = arith.subf %103, %96 : vector<8x128xf32>
    %105 = arith.mulf %104, %102 : vector<8x128xf32>
    %106 = arith.mulf %96, %81 : vector<8x128xf32>
    %107 = arith.addf %105, %106 : vector<8x128xf32>
    %108 = arith.addi %12, %c2_i32 : i32
    %109 = vector.broadcast %108 : i32 to vector<8x1xi32>
    %110 = arith.cmpi slt, %109, %8 : vector<8x1xi32>
    %111 = vector.shape_cast %110 : vector<8x1xi1> to vector<8x1xi1>
    %112 = vector.broadcast %111 : vector<8x1xi1> to vector<8x128xi1>
    %113 = arith.select %112, %107, %81 : vector<8x128xi1>, vector<8x128xf32>
    %c0_38 = arith.constant 0 : index
    %c0_39 = arith.constant 0 : index
    %114 = vector.load %arg19[%c0_38, %c0_39] : memref<8x128xf32, #tpu.memory_space<vmem>>, vector<8x128xf32>
    tpu.vector_store %arg19[%c0_38, %c0_39], %113 {strides = array<i32>} : memref<8x128xf32, #tpu.memory_space<vmem>>, vector<8x128xf32>,
    %c3_i32 = arith.constant 3 : i32
    %c0_40 = arith.constant 0 : index
    %c0_41 = arith.constant 0 : index
    %115 = vector.load %arg19[%c0_40, %c0_41] : memref<8x128xf32, #tpu.memory_space<vmem>>, vector<8x128xf32>
    %116 = arith.index_cast %c3_i32 : i32 to index
    %c0_42 = arith.constant 0 : index
    %c0_43 = arith.constant 0 : index
    %117 = vector.load %arg3[%116, %c0_42, %c0_43] : memref<8x8x384xf32, #tpu.memory_space<vmem>>, vector<1x8x384xf32>
    %118 = vector.shape_cast %117 : vector<1x8x384xf32> to vector<8x384xf32>
    %c0_44 = arith.constant 0 : index
    %c0_45 = arith.constant 0 : index
    %119 = vector.load %arg5[%c0_44, %c0_45] : memref<128x384xf32, #tpu.memory_space<vmem>>, vector<128x384xf32>
    %cst_46 = arith.constant dense<0.000000e+00> : vector<8x384xf32>
    %120 = tpu.matmul %115, %119, %cst_46 {dimension_numbers = #tpu.dot_dimension_numbers<[1], [0], [0], [1], [0, 0, 1, 1], [], []>} : vector<8x128xf32>, vector<128x384xf32>, vector<8x384xf32> -> vector<8x384xf32>
    %121 = vector.extract_strided_slice %118 {offsets = [0, 0], sizes = [8, 256], strides = [1, 1]} : vector<8x384xf32> to vector<8x256xf32>
    %122 = vector.extract_strided_slice %120 {offsets = [0, 0], sizes = [8, 256], strides = [1, 1]} : vector<8x384xf32> to vector<8x256xf32>
    %123 = arith.addf %121, %122 : vector<8x256xf32>
    %124 = arith.negf %123 : vector<8x256xf32>
    %125 = math.exp %124 : vector<8x256xf32>
    %cst_47 = arith.constant 1.000000e+00 : f32
    %126 = vector.broadcast %cst_47 : f32 to vector<8x256xf32>
    %127 = arith.addf %126, %125 : vector<8x256xf32>
    %128 = arith.divf %126, %127 : vector<8x256xf32>
    %129 = vector.extract_strided_slice %128 {offsets = [0, 0], sizes = [8, 128], strides = [1, 1]} : vector<8x256xf32> to vector<8x128xf32>
    %130 = vector.extract_strided_slice %128 {offsets = [0, 128], sizes = [8, 128], strides = [1, 1]} : vector<8x256xf32> to vector<8x128xf32>
    %131 = vector.extract_strided_slice %118 {offsets = [0, 256], sizes = [8, 128], strides = [1, 1]} : vector<8x384xf32> to vector<8x128xf32>
    %132 = vector.extract_strided_slice %120 {offsets = [0, 256], sizes = [8, 128], strides = [1, 1]} : vector<8x384xf32> to vector<8x128xf32>
    %133 = arith.addf %132, %11 : vector<8x128xf32>
    %134 = arith.mulf %129, %133 : vector<8x128xf32>
    %135 = arith.addf %131, %134 : vector<8x128xf32>
    %136 = math.tanh %135 : vector<8x128xf32>
    %cst_48 = arith.constant 1.000000e+00 : f32
    %137 = vector.broadcast %cst_48 : f32 to vector<8x128xf32>
    %138 = arith.subf %137, %130 : vector<8x128xf32>
    %139 = arith.mulf %138, %136 : vector<8x128xf32>
    %140 = arith.mulf %130, %115 : vector<8x128xf32>
    %141 = arith.addf %139, %140 : vector<8x128xf32>
    %142 = arith.addi %12, %c3_i32 : i32
    %143 = vector.broadcast %142 : i32 to vector<8x1xi32>
    %144 = arith.cmpi slt, %143, %8 : vector<8x1xi32>
    %145 = vector.shape_cast %144 : vector<8x1xi1> to vector<8x1xi1>
    %146 = vector.broadcast %145 : vector<8x1xi1> to vector<8x128xi1>
    %147 = arith.select %146, %141, %115 : vector<8x128xi1>, vector<8x128xf32>
    %c0_49 = arith.constant 0 : index
    %c0_50 = arith.constant 0 : index
    %148 = vector.load %arg19[%c0_49, %c0_50] : memref<8x128xf32, #tpu.memory_space<vmem>>, vector<8x128xf32>
    tpu.vector_store %arg19[%c0_49, %c0_50], %147 {strides = array<i32>} : memref<8x128xf32, #tpu.memory_space<vmem>>, vector<8x128xf32>,
    %c4_i32 = arith.constant 4 : i32
    %c0_51 = arith.constant 0 : index
    %c0_52 = arith.constant 0 : index
    %149 = vector.load %arg19[%c0_51, %c0_52] : memref<8x128xf32, #tpu.memory_space<vmem>>, vector<8x128xf32>
    %150 = arith.index_cast %c4_i32 : i32 to index
    %c0_53 = arith.constant 0 : index
    %c0_54 = arith.constant 0 : index
    %151 = vector.load %arg3[%150, %c0_53, %c0_54] : memref<8x8x384xf32, #tpu.memory_space<vmem>>, vector<1x8x384xf32>
    %152 = vector.shape_cast %151 : vector<1x8x384xf32> to vector<8x384xf32>
    %c0_55 = arith.constant 0 : index
    %c0_56 = arith.constant 0 : index
    %153 = vector.load %arg5[%c0_55, %c0_56] : memref<128x384xf32, #tpu.memory_space<vmem>>, vector<128x384xf32>
    %cst_57 = arith.constant dense<0.000000e+00> : vector<8x384xf32>
    %154 = tpu.matmul %149, %153, %cst_57 {dimension_numbers = #tpu.dot_dimension_numbers<[1], [0], [0], [1], [0, 0, 1, 1], [], []>} : vector<8x128xf32>, vector<128x384xf32>, vector<8x384xf32> -> vector<8x384xf32>
    %155 = vector.extract_strided_slice %152 {offsets = [0, 0], sizes = [8, 256], strides = [1, 1]} : vector<8x384xf32> to vector<8x256xf32>
    %156 = vector.extract_strided_slice %154 {offsets = [0, 0], sizes = [8, 256], strides = [1, 1]} : vector<8x384xf32> to vector<8x256xf32>
    %157 = arith.addf %155, %156 : vector<8x256xf32>
    %158 = arith.negf %157 : vector<8x256xf32>
    %159 = math.exp %158 : vector<8x256xf32>
    %cst_58 = arith.constant 1.000000e+00 : f32
    %160 = vector.broadcast %cst_58 : f32 to vector<8x256xf32>
    %161 = arith.addf %160, %159 : vector<8x256xf32>
    %162 = arith.divf %160, %161 : vector<8x256xf32>
    %163 = vector.extract_strided_slice %162 {offsets = [0, 0], sizes = [8, 128], strides = [1, 1]} : vector<8x256xf32> to vector<8x128xf32>
    %164 = vector.extract_strided_slice %162 {offsets = [0, 128], sizes = [8, 128], strides = [1, 1]} : vector<8x256xf32> to vector<8x128xf32>
    %165 = vector.extract_strided_slice %152 {offsets = [0, 256], sizes = [8, 128], strides = [1, 1]} : vector<8x384xf32> to vector<8x128xf32>
    %166 = vector.extract_strided_slice %154 {offsets = [0, 256], sizes = [8, 128], strides = [1, 1]} : vector<8x384xf32> to vector<8x128xf32>
    %167 = arith.addf %166, %11 : vector<8x128xf32>
    %168 = arith.mulf %163, %167 : vector<8x128xf32>
    %169 = arith.addf %165, %168 : vector<8x128xf32>
    %170 = math.tanh %169 : vector<8x128xf32>
    %cst_59 = arith.constant 1.000000e+00 : f32
    %171 = vector.broadcast %cst_59 : f32 to vector<8x128xf32>
    %172 = arith.subf %171, %164 : vector<8x128xf32>
    %173 = arith.mulf %172, %170 : vector<8x128xf32>
    %174 = arith.mulf %164, %149 : vector<8x128xf32>
    %175 = arith.addf %173, %174 : vector<8x128xf32>
    %176 = arith.addi %12, %c4_i32 : i32
    %177 = vector.broadcast %176 : i32 to vector<8x1xi32>
    %178 = arith.cmpi slt, %177, %8 : vector<8x1xi32>
    %179 = vector.shape_cast %178 : vector<8x1xi1> to vector<8x1xi1>
    %180 = vector.broadcast %179 : vector<8x1xi1> to vector<8x128xi1>
    %181 = arith.select %180, %175, %149 : vector<8x128xi1>, vector<8x128xf32>
    %c0_60 = arith.constant 0 : index
    %c0_61 = arith.constant 0 : index
    %182 = vector.load %arg19[%c0_60, %c0_61] : memref<8x128xf32, #tpu.memory_space<vmem>>, vector<8x128xf32>
    tpu.vector_store %arg19[%c0_60, %c0_61], %181 {strides = array<i32>} : memref<8x128xf32, #tpu.memory_space<vmem>>, vector<8x128xf32>,
    %c5_i32 = arith.constant 5 : i32
    %c0_62 = arith.constant 0 : index
    %c0_63 = arith.constant 0 : index
    %183 = vector.load %arg19[%c0_62, %c0_63] : memref<8x128xf32, #tpu.memory_space<vmem>>, vector<8x128xf32>
    %184 = arith.index_cast %c5_i32 : i32 to index
    %c0_64 = arith.constant 0 : index
    %c0_65 = arith.constant 0 : index
    %185 = vector.load %arg3[%184, %c0_64, %c0_65] : memref<8x8x384xf32, #tpu.memory_space<vmem>>, vector<1x8x384xf32>
    %186 = vector.shape_cast %185 : vector<1x8x384xf32> to vector<8x384xf32>
    %c0_66 = arith.constant 0 : index
    %c0_67 = arith.constant 0 : index
    %187 = vector.load %arg5[%c0_66, %c0_67] : memref<128x384xf32, #tpu.memory_space<vmem>>, vector<128x384xf32>
    %cst_68 = arith.constant dense<0.000000e+00> : vector<8x384xf32>
    %188 = tpu.matmul %183, %187, %cst_68 {dimension_numbers = #tpu.dot_dimension_numbers<[1], [0], [0], [1], [0, 0, 1, 1], [], []>} : vector<8x128xf32>, vector<128x384xf32>, vector<8x384xf32> -> vector<8x384xf32>
    %189 = vector.extract_strided_slice %186 {offsets = [0, 0], sizes = [8, 256], strides = [1, 1]} : vector<8x384xf32> to vector<8x256xf32>
    %190 = vector.extract_strided_slice %188 {offsets = [0, 0], sizes = [8, 256], strides = [1, 1]} : vector<8x384xf32> to vector<8x256xf32>
    %191 = arith.addf %189, %190 : vector<8x256xf32>
    %192 = arith.negf %191 : vector<8x256xf32>
    %193 = math.exp %192 : vector<8x256xf32>
    %cst_69 = arith.constant 1.000000e+00 : f32
    %194 = vector.broadcast %cst_69 : f32 to vector<8x256xf32>
    %195 = arith.addf %194, %193 : vector<8x256xf32>
    %196 = arith.divf %194, %195 : vector<8x256xf32>
    %197 = vector.extract_strided_slice %196 {offsets = [0, 0], sizes = [8, 128], strides = [1, 1]} : vector<8x256xf32> to vector<8x128xf32>
    %198 = vector.extract_strided_slice %196 {offsets = [0, 128], sizes = [8, 128], strides = [1, 1]} : vector<8x256xf32> to vector<8x128xf32>
    %199 = vector.extract_strided_slice %186 {offsets = [0, 256], sizes = [8, 128], strides = [1, 1]} : vector<8x384xf32> to vector<8x128xf32>
    %200 = vector.extract_strided_slice %188 {offsets = [0, 256], sizes = [8, 128], strides = [1, 1]} : vector<8x384xf32> to vector<8x128xf32>
    %201 = arith.addf %200, %11 : vector<8x128xf32>
    %202 = arith.mulf %197, %201 : vector<8x128xf32>
    %203 = arith.addf %199, %202 : vector<8x128xf32>
    %204 = math.tanh %203 : vector<8x128xf32>
    %cst_70 = arith.constant 1.000000e+00 : f32
    %205 = vector.broadcast %cst_70 : f32 to vector<8x128xf32>
    %206 = arith.subf %205, %198 : vector<8x128xf32>
    %207 = arith.mulf %206, %204 : vector<8x128xf32>
    %208 = arith.mulf %198, %183 : vector<8x128xf32>
    %209 = arith.addf %207, %208 : vector<8x128xf32>
    %210 = arith.addi %12, %c5_i32 : i32
    %211 = vector.broadcast %210 : i32 to vector<8x1xi32>
    %212 = arith.cmpi slt, %211, %8 : vector<8x1xi32>
    %213 = vector.shape_cast %212 : vector<8x1xi1> to vector<8x1xi1>
    %214 = vector.broadcast %213 : vector<8x1xi1> to vector<8x128xi1>
    %215 = arith.select %214, %209, %183 : vector<8x128xi1>, vector<8x128xf32>
    %c0_71 = arith.constant 0 : index
    %c0_72 = arith.constant 0 : index
    %216 = vector.load %arg19[%c0_71, %c0_72] : memref<8x128xf32, #tpu.memory_space<vmem>>, vector<8x128xf32>
    tpu.vector_store %arg19[%c0_71, %c0_72], %215 {strides = array<i32>} : memref<8x128xf32, #tpu.memory_space<vmem>>, vector<8x128xf32>,
    %c6_i32 = arith.constant 6 : i32
    %c0_73 = arith.constant 0 : index
    %c0_74 = arith.constant 0 : index
    %217 = vector.load %arg19[%c0_73, %c0_74] : memref<8x128xf32, #tpu.memory_space<vmem>>, vector<8x128xf32>
    %218 = arith.index_cast %c6_i32 : i32 to index
    %c0_75 = arith.constant 0 : index
    %c0_76 = arith.constant 0 : index
    %219 = vector.load %arg3[%218, %c0_75, %c0_76] : memref<8x8x384xf32, #tpu.memory_space<vmem>>, vector<1x8x384xf32>
    %220 = vector.shape_cast %219 : vector<1x8x384xf32> to vector<8x384xf32>
    %c0_77 = arith.constant 0 : index
    %c0_78 = arith.constant 0 : index
    %221 = vector.load %arg5[%c0_77, %c0_78] : memref<128x384xf32, #tpu.memory_space<vmem>>, vector<128x384xf32>
    %cst_79 = arith.constant dense<0.000000e+00> : vector<8x384xf32>
    %222 = tpu.matmul %217, %221, %cst_79 {dimension_numbers = #tpu.dot_dimension_numbers<[1], [0], [0], [1], [0, 0, 1, 1], [], []>} : vector<8x128xf32>, vector<128x384xf32>, vector<8x384xf32> -> vector<8x384xf32>
    %223 = vector.extract_strided_slice %220 {offsets = [0, 0], sizes = [8, 256], strides = [1, 1]} : vector<8x384xf32> to vector<8x256xf32>
    %224 = vector.extract_strided_slice %222 {offsets = [0, 0], sizes = [8, 256], strides = [1, 1]} : vector<8x384xf32> to vector<8x256xf32>
    %225 = arith.addf %223, %224 : vector<8x256xf32>
    %226 = arith.negf %225 : vector<8x256xf32>
    %227 = math.exp %226 : vector<8x256xf32>
    %cst_80 = arith.constant 1.000000e+00 : f32
    %228 = vector.broadcast %cst_80 : f32 to vector<8x256xf32>
    %229 = arith.addf %228, %227 : vector<8x256xf32>
    %230 = arith.divf %228, %229 : vector<8x256xf32>
    %231 = vector.extract_strided_slice %230 {offsets = [0, 0], sizes = [8, 128], strides = [1, 1]} : vector<8x256xf32> to vector<8x128xf32>
    %232 = vector.extract_strided_slice %230 {offsets = [0, 128], sizes = [8, 128], strides = [1, 1]} : vector<8x256xf32> to vector<8x128xf32>
    %233 = vector.extract_strided_slice %220 {offsets = [0, 256], sizes = [8, 128], strides = [1, 1]} : vector<8x384xf32> to vector<8x128xf32>
    %234 = vector.extract_strided_slice %222 {offsets = [0, 256], sizes = [8, 128], strides = [1, 1]} : vector<8x384xf32> to vector<8x128xf32>
    %235 = arith.addf %234, %11 : vector<8x128xf32>
    %236 = arith.mulf %231, %235 : vector<8x128xf32>
    %237 = arith.addf %233, %236 : vector<8x128xf32>
    %238 = math.tanh %237 : vector<8x128xf32>
    %cst_81 = arith.constant 1.000000e+00 : f32
    %239 = vector.broadcast %cst_81 : f32 to vector<8x128xf32>
    %240 = arith.subf %239, %232 : vector<8x128xf32>
    %241 = arith.mulf %240, %238 : vector<8x128xf32>
    %242 = arith.mulf %232, %217 : vector<8x128xf32>
    %243 = arith.addf %241, %242 : vector<8x128xf32>
    %244 = arith.addi %12, %c6_i32 : i32
    %245 = vector.broadcast %244 : i32 to vector<8x1xi32>
    %246 = arith.cmpi slt, %245, %8 : vector<8x1xi32>
    %247 = vector.shape_cast %246 : vector<8x1xi1> to vector<8x1xi1>
    %248 = vector.broadcast %247 : vector<8x1xi1> to vector<8x128xi1>
    %249 = arith.select %248, %243, %217 : vector<8x128xi1>, vector<8x128xf32>
    %c0_82 = arith.constant 0 : index
    %c0_83 = arith.constant 0 : index
    %250 = vector.load %arg19[%c0_82, %c0_83] : memref<8x128xf32, #tpu.memory_space<vmem>>, vector<8x128xf32>
    tpu.vector_store %arg19[%c0_82, %c0_83], %249 {strides = array<i32>} : memref<8x128xf32, #tpu.memory_space<vmem>>, vector<8x128xf32>,
    %c7_i32 = arith.constant 7 : i32
    %c0_84 = arith.constant 0 : index
    %c0_85 = arith.constant 0 : index
    %251 = vector.load %arg19[%c0_84, %c0_85] : memref<8x128xf32, #tpu.memory_space<vmem>>, vector<8x128xf32>
    %252 = arith.index_cast %c7_i32 : i32 to index
    %c0_86 = arith.constant 0 : index
    %c0_87 = arith.constant 0 : index
    %253 = vector.load %arg3[%252, %c0_86, %c0_87] : memref<8x8x384xf32, #tpu.memory_space<vmem>>, vector<1x8x384xf32>
    %254 = vector.shape_cast %253 : vector<1x8x384xf32> to vector<8x384xf32>
    %c0_88 = arith.constant 0 : index
    %c0_89 = arith.constant 0 : index
    %255 = vector.load %arg5[%c0_88, %c0_89] : memref<128x384xf32, #tpu.memory_space<vmem>>, vector<128x384xf32>
    %cst_90 = arith.constant dense<0.000000e+00> : vector<8x384xf32>
    %256 = tpu.matmul %251, %255, %cst_90 {dimension_numbers = #tpu.dot_dimension_numbers<[1], [0], [0], [1], [0, 0, 1, 1], [], []>} : vector<8x128xf32>, vector<128x384xf32>, vector<8x384xf32> -> vector<8x384xf32>
    %257 = vector.extract_strided_slice %254 {offsets = [0, 0], sizes = [8, 256], strides = [1, 1]} : vector<8x384xf32> to vector<8x256xf32>
    %258 = vector.extract_strided_slice %256 {offsets = [0, 0], sizes = [8, 256], strides = [1, 1]} : vector<8x384xf32> to vector<8x256xf32>
    %259 = arith.addf %257, %258 : vector<8x256xf32>
    %260 = arith.negf %259 : vector<8x256xf32>
    %261 = math.exp %260 : vector<8x256xf32>
    %cst_91 = arith.constant 1.000000e+00 : f32
    %262 = vector.broadcast %cst_91 : f32 to vector<8x256xf32>
    %263 = arith.addf %262, %261 : vector<8x256xf32>
    %264 = arith.divf %262, %263 : vector<8x256xf32>
    %265 = vector.extract_strided_slice %264 {offsets = [0, 0], sizes = [8, 128], strides = [1, 1]} : vector<8x256xf32> to vector<8x128xf32>
    %266 = vector.extract_strided_slice %264 {offsets = [0, 128], sizes = [8, 128], strides = [1, 1]} : vector<8x256xf32> to vector<8x128xf32>
    %267 = vector.extract_strided_slice %254 {offsets = [0, 256], sizes = [8, 128], strides = [1, 1]} : vector<8x384xf32> to vector<8x128xf32>
    %268 = vector.extract_strided_slice %256 {offsets = [0, 256], sizes = [8, 128], strides = [1, 1]} : vector<8x384xf32> to vector<8x128xf32>
    %269 = arith.addf %268, %11 : vector<8x128xf32>
    %270 = arith.mulf %265, %269 : vector<8x128xf32>
    %271 = arith.addf %267, %270 : vector<8x128xf32>
    %272 = math.tanh %271 : vector<8x128xf32>
    %cst_92 = arith.constant 1.000000e+00 : f32
    %273 = vector.broadcast %cst_92 : f32 to vector<8x128xf32>
    %274 = arith.subf %273, %266 : vector<8x128xf32>
    %275 = arith.mulf %274, %272 : vector<8x128xf32>
    %276 = arith.mulf %266, %251 : vector<8x128xf32>
    %277 = arith.addf %275, %276 : vector<8x128xf32>
    %278 = arith.addi %12, %c7_i32 : i32
    %279 = vector.broadcast %278 : i32 to vector<8x1xi32>
    %280 = arith.cmpi slt, %279, %8 : vector<8x1xi32>
    %281 = vector.shape_cast %280 : vector<8x1xi1> to vector<8x1xi1>
    %282 = vector.broadcast %281 : vector<8x1xi1> to vector<8x128xi1>
    %283 = arith.select %282, %277, %251 : vector<8x128xi1>, vector<8x128xf32>
    %c0_93 = arith.constant 0 : index
    %c0_94 = arith.constant 0 : index
    %284 = vector.load %arg19[%c0_93, %c0_94] : memref<8x128xf32, #tpu.memory_space<vmem>>, vector<8x128xf32>
    tpu.vector_store %arg19[%c0_93, %c0_94], %283 {strides = array<i32>} : memref<8x128xf32, #tpu.memory_space<vmem>>, vector<8x128xf32>,
    %c8_i32_95 = arith.constant 8 : i32
    %c0_i32_96 = arith.constant 0 : i32
    %285 = arith.cmpi eq, %arg1, %c0_i32_96 : i32
    %286 = arith.extui %285 : i1 to i32
    %c0_i32_97 = arith.constant 0 : i32
    %287 = arith.cmpi ne, %286, %c0_i32_97 : i32
    scf.if %287 {
      %c0_i32_101 = arith.constant 0 : i32
      %c8_i32_102 = arith.constant 8 : i32
      %293 = arith.muli %arg0, %c8_i32_102 : i32
      %294 = arith.addi %293, %c0_i32_101 : i32
      %295 = arith.index_cast %294 : i32 to index
      %296 = memref.load %arg2[%295] : memref<8xi32, #tpu.memory_space<smem>>
      %297 = arith.index_cast %c0_i32_101 : i32 to index
      %c0_103 = arith.constant 0 : index
      %298 = vector.load %arg19[%297, %c0_103] : memref<8x128xf32, #tpu.memory_space<vmem>>, vector<1x128xf32>
      %299 = arith.index_cast %296 : i32 to index
      %c0_104 = arith.constant 0 : index
      %300 = vector.load %arg20[%299, %c0_104] : memref<32x128xf32, #tpu.memory_space<vmem>>, vector<1x128xf32>
      tpu.vector_store %arg20[%299, %c0_104], %298 {strides = array<i32>} : memref<32x128xf32, #tpu.memory_space<vmem>>, vector<1x128xf32>,
      %c1_i32_105 = arith.constant 1 : i32
      %c8_i32_106 = arith.constant 8 : i32
      %301 = arith.muli %arg0, %c8_i32_106 : i32
      %302 = arith.addi %301, %c1_i32_105 : i32
      %303 = arith.index_cast %302 : i32 to index
      %304 = memref.load %arg2[%303] : memref<8xi32, #tpu.memory_space<smem>>
      %305 = arith.index_cast %c1_i32_105 : i32 to index
      %c0_107 = arith.constant 0 : index
      %306 = vector.load %arg19[%305, %c0_107] : memref<8x128xf32, #tpu.memory_space<vmem>>, vector<1x128xf32>
      %307 = arith.index_cast %304 : i32 to index
      %c0_108 = arith.constant 0 : index
      %308 = vector.load %arg20[%307, %c0_108] : memref<32x128xf32, #tpu.memory_space<vmem>>, vector<1x128xf32>
      tpu.vector_store %arg20[%307, %c0_108], %306 {strides = array<i32>} : memref<32x128xf32, #tpu.memory_space<vmem>>, vector<1x128xf32>,
      %c2_i32_109 = arith.constant 2 : i32
      %c8_i32_110 = arith.constant 8 : i32
      %309 = arith.muli %arg0, %c8_i32_110 : i32
      %310 = arith.addi %309, %c2_i32_109 : i32
      %311 = arith.index_cast %310 : i32 to index
      %312 = memref.load %arg2[%311] : memref<8xi32, #tpu.memory_space<smem>>
      %313 = arith.index_cast %c2_i32_109 : i32 to index
      %c0_111 = arith.constant 0 : index
      %314 = vector.load %arg19[%313, %c0_111] : memref<8x128xf32, #tpu.memory_space<vmem>>, vector<1x128xf32>
      %315 = arith.index_cast %312 : i32 to index
      %c0_112 = arith.constant 0 : index
      %316 = vector.load %arg20[%315, %c0_112] : memref<32x128xf32, #tpu.memory_space<vmem>>, vector<1x128xf32>
      tpu.vector_store %arg20[%315, %c0_112], %314 {strides = array<i32>} : memref<32x128xf32, #tpu.memory_space<vmem>>, vector<1x128xf32>,
      %c3_i32_113 = arith.constant 3 : i32
      %c8_i32_114 = arith.constant 8 : i32
      %317 = arith.muli %arg0, %c8_i32_114 : i32
      %318 = arith.addi %317, %c3_i32_113 : i32
      %319 = arith.index_cast %318 : i32 to index
      %320 = memref.load %arg2[%319] : memref<8xi32, #tpu.memory_space<smem>>
      %321 = arith.index_cast %c3_i32_113 : i32 to index
      %c0_115 = arith.constant 0 : index
      %322 = vector.load %arg19[%321, %c0_115] : memref<8x128xf32, #tpu.memory_space<vmem>>, vector<1x128xf32>
      %323 = arith.index_cast %320 : i32 to index
      %c0_116 = arith.constant 0 : index
      %324 = vector.load %arg20[%323, %c0_116] : memref<32x128xf32, #tpu.memory_space<vmem>>, vector<1x128xf32>
      tpu.vector_store %arg20[%323, %c0_116], %322 {strides = array<i32>} : memref<32x128xf32, #tpu.memory_space<vmem>>, vector<1x128xf32>,
      %c4_i32_117 = arith.constant 4 : i32
      %c8_i32_118 = arith.constant 8 : i32
      %325 = arith.muli %arg0, %c8_i32_118 : i32
      %326 = arith.addi %325, %c4_i32_117 : i32
      %327 = arith.index_cast %326 : i32 to index
      %328 = memref.load %arg2[%327] : memref<8xi32, #tpu.memory_space<smem>>
      %329 = arith.index_cast %c4_i32_117 : i32 to index
      %c0_119 = arith.constant 0 : index
      %330 = vector.load %arg19[%329, %c0_119] : memref<8x128xf32, #tpu.memory_space<vmem>>, vector<1x128xf32>
      %331 = arith.index_cast %328 : i32 to index
      %c0_120 = arith.constant 0 : index
      %332 = vector.load %arg20[%331, %c0_120] : memref<32x128xf32, #tpu.memory_space<vmem>>, vector<1x128xf32>
      tpu.vector_store %arg20[%331, %c0_120], %330 {strides = array<i32>} : memref<32x128xf32, #tpu.memory_space<vmem>>, vector<1x128xf32>,
      %c5_i32_121 = arith.constant 5 : i32
      %c8_i32_122 = arith.constant 8 : i32
      %333 = arith.muli %arg0, %c8_i32_122 : i32
      %334 = arith.addi %333, %c5_i32_121 : i32
      %335 = arith.index_cast %334 : i32 to index
      %336 = memref.load %arg2[%335] : memref<8xi32, #tpu.memory_space<smem>>
      %337 = arith.index_cast %c5_i32_121 : i32 to index
      %c0_123 = arith.constant 0 : index
      %338 = vector.load %arg19[%337, %c0_123] : memref<8x128xf32, #tpu.memory_space<vmem>>, vector<1x128xf32>
      %339 = arith.index_cast %336 : i32 to index
      %c0_124 = arith.constant 0 : index
      %340 = vector.load %arg20[%339, %c0_124] : memref<32x128xf32, #tpu.memory_space<vmem>>, vector<1x128xf32>
      tpu.vector_store %arg20[%339, %c0_124], %338 {strides = array<i32>} : memref<32x128xf32, #tpu.memory_space<vmem>>, vector<1x128xf32>,
      %c6_i32_125 = arith.constant 6 : i32
      %c8_i32_126 = arith.constant 8 : i32
      %341 = arith.muli %arg0, %c8_i32_126 : i32
      %342 = arith.addi %341, %c6_i32_125 : i32
      %343 = arith.index_cast %342 : i32 to index
      %344 = memref.load %arg2[%343] : memref<8xi32, #tpu.memory_space<smem>>
      %345 = arith.index_cast %c6_i32_125 : i32 to index
      %c0_127 = arith.constant 0 : index
      %346 = vector.load %arg19[%345, %c0_127] : memref<8x128xf32, #tpu.memory_space<vmem>>, vector<1x128xf32>
      %347 = arith.index_cast %344 : i32 to index
      %c0_128 = arith.constant 0 : index
      %348 = vector.load %arg20[%347, %c0_128] : memref<32x128xf32, #tpu.memory_space<vmem>>, vector<1x128xf32>
      tpu.vector_store %arg20[%347, %c0_128], %346 {strides = array<i32>} : memref<32x128xf32, #tpu.memory_space<vmem>>, vector<1x128xf32>,
      %c7_i32_129 = arith.constant 7 : i32
      %c8_i32_130 = arith.constant 8 : i32
      %349 = arith.muli %arg0, %c8_i32_130 : i32
      %350 = arith.addi %349, %c7_i32_129 : i32
      %351 = arith.index_cast %350 : i32 to index
      %352 = memref.load %arg2[%351] : memref<8xi32, #tpu.memory_space<smem>>
      %353 = arith.index_cast %c7_i32_129 : i32 to index
      %c0_131 = arith.constant 0 : index
      %354 = vector.load %arg19[%353, %c0_131] : memref<8x128xf32, #tpu.memory_space<vmem>>, vector<1x128xf32>
      %355 = arith.index_cast %352 : i32 to index
      %c0_132 = arith.constant 0 : index
      %356 = vector.load %arg20[%355, %c0_132] : memref<32x128xf32, #tpu.memory_space<vmem>>, vector<1x128xf32>
      tpu.vector_store %arg20[%355, %c0_132], %354 {strides = array<i32>} : memref<32x128xf32, #tpu.memory_space<vmem>>, vector<1x128xf32>,
      %c8_i32_133 = arith.constant 8 : i32
    } else {
    }
    %c0_i32_98 = arith.constant 0 : i32
    %288 = arith.cmpi eq, %arg0, %c0_i32_98 : i32
    %c0_i32_99 = arith.constant 0 : i32
    %289 = arith.cmpi eq, %arg1, %c0_i32_99 : i32
    %290 = arith.andi %288, %289 : i1
    %291 = arith.extui %290 : i1 to i32
    %c0_i32_100 = arith.constant 0 : i32
    %292 = arith.cmpi ne, %291, %c0_i32_100 : i32
    scf.if %292 {
      %c0_101 = arith.constant 0 : index
      %c0_102 = arith.constant 0 : index
      %293 = vector.load %arg20[%c0_101, %c0_102] : memref<32x128xf32, #tpu.memory_space<vmem>>, vector<24x32xf32>
      %c0_103 = arith.constant 0 : index
      %c0_104 = arith.constant 0 : index
      %294 = vector.load %arg8[%c0_103, %c0_104] : memref<32x384xf32, #tpu.memory_space<vmem>>, vector<32x384xf32>
      %cst_105 = arith.constant dense<0.000000e+00> : vector<24x384xf32>
      %295 = tpu.matmul %293, %294, %cst_105 {dimension_numbers = #tpu.dot_dimension_numbers<[1], [0], [0], [1], [0, 0, 1, 1], [], []>} : vector<24x32xf32>, vector<32x384xf32>, vector<24x384xf32> -> vector<24x384xf32>
      %c0_106 = arith.constant 0 : index
      %c0_107 = arith.constant 0 : index
      %296 = vector.load %arg9[%c0_106, %c0_107] : memref<1x384xf32, #tpu.memory_space<vmem>>, vector<1x384xf32>
      %297 = vector.broadcast %296 : vector<1x384xf32> to vector<24x384xf32>
      %298 = arith.addf %295, %297 : vector<24x384xf32>
      %c0_108 = arith.constant 0 : index
      %c0_109 = arith.constant 0 : index
      %299 = vector.load %arg21[%c0_108, %c0_109] : memref<24x384xf32, #tpu.memory_space<vmem>>, vector<24x384xf32>
      tpu.vector_store %arg21[%c0_108, %c0_109], %298 {strides = array<i32>} : memref<24x384xf32, #tpu.memory_space<vmem>>, vector<24x384xf32>,
      %cst_110 = arith.constant 0.000000e+00 : f32
      %300 = vector.broadcast %cst_110 : f32 to vector<8x128xf32>
      %c0_111 = arith.constant 0 : index
      %c0_112 = arith.constant 0 : index
      %301 = vector.load %arg22[%c0_111, %c0_112] : memref<8x128xf32, #tpu.memory_space<vmem>>, vector<8x128xf32>
      tpu.vector_store %arg22[%c0_111, %c0_112], %300 {strides = array<i32>} : memref<8x128xf32, #tpu.memory_space<vmem>>, vector<8x128xf32>,
      %c0_113 = arith.constant 0 : index
      %c0_114 = arith.constant 0 : index
      %302 = vector.load %arg7[%c0_113, %c0_114] : memref<8x1xi32, #tpu.memory_space<vmem>>, vector<8x1xi32>
      %c0_115 = arith.constant 0 : index
      %c0_116 = arith.constant 0 : index
      %303 = vector.load %arg11[%c0_115, %c0_116] : memref<1x128xf32, #tpu.memory_space<vmem>>, vector<1x128xf32>
      %304 = vector.shape_cast %303 : vector<1x128xf32> to vector<1x128xf32>
      %305 = vector.broadcast %304 : vector<1x128xf32> to vector<8x128xf32>
      %c0_i32_117 = arith.constant 0 : i32
      %c0_118 = arith.constant 0 : index
      %c0_119 = arith.constant 0 : index
      %306 = vector.load %arg22[%c0_118, %c0_119] : memref<8x128xf32, #tpu.memory_space<vmem>>, vector<8x128xf32>
      %c8_i32_120 = arith.constant 8 : i32
      %307 = arith.muli %c0_i32_117, %c8_i32_120 : i32
      %308 = tpu.assume_multiple %307, 8 : i32
      %309 = arith.index_cast %308 : i32 to index
      %c0_121 = arith.constant 0 : index
      %310 = vector.load %arg21[%309, %c0_121] : memref<24x384xf32, #tpu.memory_space<vmem>>, vector<8x384xf32>
      %c0_122 = arith.constant 0 : index
      %c0_123 = arith.constant 0 : index
      %311 = vector.load %arg10[%c0_122, %c0_123] : memref<128x384xf32, #tpu.memory_space<vmem>>, vector<128x384xf32>
      %cst_124 = arith.constant dense<0.000000e+00> : vector<8x384xf32>
      %312 = tpu.matmul %306, %311, %cst_124 {dimension_numbers = #tpu.dot_dimension_numbers<[1], [0], [0], [1], [0, 0, 1, 1], [], []>} : vector<8x128xf32>, vector<128x384xf32>, vector<8x384xf32> -> vector<8x384xf32>
      %313 = vector.extract_strided_slice %310 {offsets = [0, 0], sizes = [8, 256], strides = [1, 1]} : vector<8x384xf32> to vector<8x256xf32>
      %314 = vector.extract_strided_slice %312 {offsets = [0, 0], sizes = [8, 256], strides = [1, 1]} : vector<8x384xf32> to vector<8x256xf32>
      %315 = arith.addf %313, %314 : vector<8x256xf32>
      %316 = arith.negf %315 : vector<8x256xf32>
      %317 = math.exp %316 : vector<8x256xf32>
      %cst_125 = arith.constant 1.000000e+00 : f32
      %318 = vector.broadcast %cst_125 : f32 to vector<8x256xf32>
      %319 = arith.addf %318, %317 : vector<8x256xf32>
      %320 = arith.divf %318, %319 : vector<8x256xf32>
      %321 = vector.extract_strided_slice %320 {offsets = [0, 0], sizes = [8, 128], strides = [1, 1]} : vector<8x256xf32> to vector<8x128xf32>
      %322 = vector.extract_strided_slice %320 {offsets = [0, 128], sizes = [8, 128], strides = [1, 1]} : vector<8x256xf32> to vector<8x128xf32>
      %323 = vector.extract_strided_slice %310 {offsets = [0, 256], sizes = [8, 128], strides = [1, 1]} : vector<8x384xf32> to vector<8x128xf32>
      %324 = vector.extract_strided_slice %312 {offsets = [0, 256], sizes = [8, 128], strides = [1, 1]} : vector<8x384xf32> to vector<8x128xf32>
      %325 = arith.addf %324, %305 : vector<8x128xf32>
      %326 = arith.mulf %321, %325 : vector<8x128xf32>
      %327 = arith.addf %323, %326 : vector<8x128xf32>
      %328 = math.tanh %327 : vector<8x128xf32>
      %cst_126 = arith.constant 1.000000e+00 : f32
      %329 = vector.broadcast %cst_126 : f32 to vector<8x128xf32>
      %330 = arith.subf %329, %322 : vector<8x128xf32>
      %331 = arith.mulf %330, %328 : vector<8x128xf32>
      %332 = arith.mulf %322, %306 : vector<8x128xf32>
      %333 = arith.addf %331, %332 : vector<8x128xf32>
      %334 = vector.broadcast %c0_i32_117 : i32 to vector<8x1xi32>
      %335 = arith.cmpi slt, %334, %302 : vector<8x1xi32>
      %336 = vector.shape_cast %335 : vector<8x1xi1> to vector<8x1xi1>
      %337 = vector.broadcast %336 : vector<8x1xi1> to vector<8x128xi1>
      %338 = arith.select %337, %333, %306 : vector<8x128xi1>, vector<8x128xf32>
      %c0_127 = arith.constant 0 : index
      %c0_128 = arith.constant 0 : index
      %339 = vector.load %arg22[%c0_127, %c0_128] : memref<8x128xf32, #tpu.memory_space<vmem>>, vector<8x128xf32>
      tpu.vector_store %arg22[%c0_127, %c0_128], %338 {strides = array<i32>} : memref<8x128xf32, #tpu.memory_space<vmem>>, vector<8x128xf32>,
      %c1_i32_129 = arith.constant 1 : i32
      %c0_130 = arith.constant 0 : index
      %c0_131 = arith.constant 0 : index
      %340 = vector.load %arg22[%c0_130, %c0_131] : memref<8x128xf32, #tpu.memory_space<vmem>>, vector<8x128xf32>
      %c8_i32_132 = arith.constant 8 : i32
      %341 = arith.muli %c1_i32_129, %c8_i32_132 : i32
      %342 = tpu.assume_multiple %341, 8 : i32
      %343 = arith.index_cast %342 : i32 to index
      %c0_133 = arith.constant 0 : index
      %344 = vector.load %arg21[%343, %c0_133] : memref<24x384xf32, #tpu.memory_space<vmem>>, vector<8x384xf32>
      %c0_134 = arith.constant 0 : index
      %c0_135 = arith.constant 0 : index
      %345 = vector.load %arg10[%c0_134, %c0_135] : memref<128x384xf32, #tpu.memory_space<vmem>>, vector<128x384xf32>
      %cst_136 = arith.constant dense<0.000000e+00> : vector<8x384xf32>
      %346 = tpu.matmul %340, %345, %cst_136 {dimension_numbers = #tpu.dot_dimension_numbers<[1], [0], [0], [1], [0, 0, 1, 1], [], []>} : vector<8x128xf32>, vector<128x384xf32>, vector<8x384xf32> -> vector<8x384xf32>
      %347 = vector.extract_strided_slice %344 {offsets = [0, 0], sizes = [8, 256], strides = [1, 1]} : vector<8x384xf32> to vector<8x256xf32>
      %348 = vector.extract_strided_slice %346 {offsets = [0, 0], sizes = [8, 256], strides = [1, 1]} : vector<8x384xf32> to vector<8x256xf32>
      %349 = arith.addf %347, %348 : vector<8x256xf32>
      %350 = arith.negf %349 : vector<8x256xf32>
      %351 = math.exp %350 : vector<8x256xf32>
      %cst_137 = arith.constant 1.000000e+00 : f32
      %352 = vector.broadcast %cst_137 : f32 to vector<8x256xf32>
      %353 = arith.addf %352, %351 : vector<8x256xf32>
      %354 = arith.divf %352, %353 : vector<8x256xf32>
      %355 = vector.extract_strided_slice %354 {offsets = [0, 0], sizes = [8, 128], strides = [1, 1]} : vector<8x256xf32> to vector<8x128xf32>
      %356 = vector.extract_strided_slice %354 {offsets = [0, 128], sizes = [8, 128], strides = [1, 1]} : vector<8x256xf32> to vector<8x128xf32>
      %357 = vector.extract_strided_slice %344 {offsets = [0, 256], sizes = [8, 128], strides = [1, 1]} : vector<8x384xf32> to vector<8x128xf32>
      %358 = vector.extract_strided_slice %346 {offsets = [0, 256], sizes = [8, 128], strides = [1, 1]} : vector<8x384xf32> to vector<8x128xf32>
      %359 = arith.addf %358, %305 : vector<8x128xf32>
      %360 = arith.mulf %355, %359 : vector<8x128xf32>
      %361 = arith.addf %357, %360 : vector<8x128xf32>
      %362 = math.tanh %361 : vector<8x128xf32>
      %cst_138 = arith.constant 1.000000e+00 : f32
      %363 = vector.broadcast %cst_138 : f32 to vector<8x128xf32>
      %364 = arith.subf %363, %356 : vector<8x128xf32>
      %365 = arith.mulf %364, %362 : vector<8x128xf32>
      %366 = arith.mulf %356, %340 : vector<8x128xf32>
      %367 = arith.addf %365, %366 : vector<8x128xf32>
      %368 = vector.broadcast %c1_i32_129 : i32 to vector<8x1xi32>
      %369 = arith.cmpi slt, %368, %302 : vector<8x1xi32>
      %370 = vector.shape_cast %369 : vector<8x1xi1> to vector<8x1xi1>
      %371 = vector.broadcast %370 : vector<8x1xi1> to vector<8x128xi1>
      %372 = arith.select %371, %367, %340 : vector<8x128xi1>, vector<8x128xf32>
      %c0_139 = arith.constant 0 : index
      %c0_140 = arith.constant 0 : index
      %373 = vector.load %arg22[%c0_139, %c0_140] : memref<8x128xf32, #tpu.memory_space<vmem>>, vector<8x128xf32>
      tpu.vector_store %arg22[%c0_139, %c0_140], %372 {strides = array<i32>} : memref<8x128xf32, #tpu.memory_space<vmem>>, vector<8x128xf32>,
      %c2_i32_141 = arith.constant 2 : i32
      %c0_142 = arith.constant 0 : index
      %c0_143 = arith.constant 0 : index
      %374 = vector.load %arg22[%c0_142, %c0_143] : memref<8x128xf32, #tpu.memory_space<vmem>>, vector<8x128xf32>
      %c8_i32_144 = arith.constant 8 : i32
      %375 = arith.muli %c2_i32_141, %c8_i32_144 : i32
      %376 = tpu.assume_multiple %375, 8 : i32
      %377 = arith.index_cast %376 : i32 to index
      %c0_145 = arith.constant 0 : index
      %378 = vector.load %arg21[%377, %c0_145] : memref<24x384xf32, #tpu.memory_space<vmem>>, vector<8x384xf32>
      %c0_146 = arith.constant 0 : index
      %c0_147 = arith.constant 0 : index
      %379 = vector.load %arg10[%c0_146, %c0_147] : memref<128x384xf32, #tpu.memory_space<vmem>>, vector<128x384xf32>
      %cst_148 = arith.constant dense<0.000000e+00> : vector<8x384xf32>
      %380 = tpu.matmul %374, %379, %cst_148 {dimension_numbers = #tpu.dot_dimension_numbers<[1], [0], [0], [1], [0, 0, 1, 1], [], []>} : vector<8x128xf32>, vector<128x384xf32>, vector<8x384xf32> -> vector<8x384xf32>
      %381 = vector.extract_strided_slice %378 {offsets = [0, 0], sizes = [8, 256], strides = [1, 1]} : vector<8x384xf32> to vector<8x256xf32>
      %382 = vector.extract_strided_slice %380 {offsets = [0, 0], sizes = [8, 256], strides = [1, 1]} : vector<8x384xf32> to vector<8x256xf32>
      %383 = arith.addf %381, %382 : vector<8x256xf32>
      %384 = arith.negf %383 : vector<8x256xf32>
      %385 = math.exp %384 : vector<8x256xf32>
      %cst_149 = arith.constant 1.000000e+00 : f32
      %386 = vector.broadcast %cst_149 : f32 to vector<8x256xf32>
      %387 = arith.addf %386, %385 : vector<8x256xf32>
      %388 = arith.divf %386, %387 : vector<8x256xf32>
      %389 = vector.extract_strided_slice %388 {offsets = [0, 0], sizes = [8, 128], strides = [1, 1]} : vector<8x256xf32> to vector<8x128xf32>
      %390 = vector.extract_strided_slice %388 {offsets = [0, 128], sizes = [8, 128], strides = [1, 1]} : vector<8x256xf32> to vector<8x128xf32>
      %391 = vector.extract_strided_slice %378 {offsets = [0, 256], sizes = [8, 128], strides = [1, 1]} : vector<8x384xf32> to vector<8x128xf32>
      %392 = vector.extract_strided_slice %380 {offsets = [0, 256], sizes = [8, 128], strides = [1, 1]} : vector<8x384xf32> to vector<8x128xf32>
      %393 = arith.addf %392, %305 : vector<8x128xf32>
      %394 = arith.mulf %389, %393 : vector<8x128xf32>
      %395 = arith.addf %391, %394 : vector<8x128xf32>
      %396 = math.tanh %395 : vector<8x128xf32>
      %cst_150 = arith.constant 1.000000e+00 : f32
      %397 = vector.broadcast %cst_150 : f32 to vector<8x128xf32>
      %398 = arith.subf %397, %390 : vector<8x128xf32>
      %399 = arith.mulf %398, %396 : vector<8x128xf32>
      %400 = arith.mulf %390, %374 : vector<8x128xf32>
      %401 = arith.addf %399, %400 : vector<8x128xf32>
      %402 = vector.broadcast %c2_i32_141 : i32 to vector<8x1xi32>
      %403 = arith.cmpi slt, %402, %302 : vector<8x1xi32>
      %404 = vector.shape_cast %403 : vector<8x1xi1> to vector<8x1xi1>
      %405 = vector.broadcast %404 : vector<8x1xi1> to vector<8x128xi1>
      %406 = arith.select %405, %401, %374 : vector<8x128xi1>, vector<8x128xf32>
      %c0_151 = arith.constant 0 : index
      %c0_152 = arith.constant 0 : index
      %407 = vector.load %arg22[%c0_151, %c0_152] : memref<8x128xf32, #tpu.memory_space<vmem>>, vector<8x128xf32>
      tpu.vector_store %arg22[%c0_151, %c0_152], %406 {strides = array<i32>} : memref<8x128xf32, #tpu.memory_space<vmem>>, vector<8x128xf32>,
      %c3_i32_153 = arith.constant 3 : i32
      %c0_154 = arith.constant 0 : index
      %c0_155 = arith.constant 0 : index
      %408 = vector.load %arg22[%c0_154, %c0_155] : memref<8x128xf32, #tpu.memory_space<vmem>>, vector<8x128xf32>
      %409 = vector.extract_strided_slice %408 {offsets = [0, 0], sizes = [8, 32], strides = [1, 1]} : vector<8x128xf32> to vector<8x32xf32>
      %c0_156 = arith.constant 0 : index
      %c0_157 = arith.constant 0 : index
      %410 = vector.load %arg12[%c0_156, %c0_157] : memref<32x32xf32, #tpu.memory_space<vmem>>, vector<32x32xf32>
      %cst_158 = arith.constant dense<0.000000e+00> : vector<8x32xf32>
      %411 = tpu.matmul %409, %410, %cst_158 {dimension_numbers = #tpu.dot_dimension_numbers<[1], [0], [0], [1], [0, 0, 1, 1], [], []>} : vector<8x32xf32>, vector<32x32xf32>, vector<8x32xf32> -> vector<8x32xf32>
      %c0_159 = arith.constant 0 : index
      %c0_160 = arith.constant 0 : index
      %412 = vector.load %arg13[%c0_159, %c0_160] : memref<1x32xf32, #tpu.memory_space<vmem>>, vector<1x32xf32>
      %413 = vector.broadcast %412 : vector<1x32xf32> to vector<8x32xf32>
      %414 = arith.addf %411, %413 : vector<8x32xf32>
      %cst_161 = arith.constant 0.000000e+00 : f32
      %415 = vector.broadcast %cst_161 : f32 to vector<8x32xf32>
      %416 = arith.maximumf %414, %415 : vector<8x32xf32>
      %c0_162 = arith.constant 0 : index
      %c0_163 = arith.constant 0 : index
      %417 = vector.load %arg14[%c0_162, %c0_163] : memref<32x16xf32, #tpu.memory_space<vmem>>, vector<32x16xf32>
      %cst_164 = arith.constant dense<0.000000e+00> : vector<8x16xf32>
      %418 = tpu.matmul %416, %417, %cst_164 {dimension_numbers = #tpu.dot_dimension_numbers<[1], [0], [0], [1], [0, 0, 1, 1], [], []>} : vector<8x32xf32>, vector<32x16xf32>, vector<8x16xf32> -> vector<8x16xf32>
      %c0_165 = arith.constant 0 : index
      %c0_166 = arith.constant 0 : index
      %419 = vector.load %arg15[%c0_165, %c0_166] : memref<1x16xf32, #tpu.memory_space<vmem>>, vector<1x16xf32>
      %420 = vector.broadcast %419 : vector<1x16xf32> to vector<8x16xf32>
      %421 = arith.addf %418, %420 : vector<8x16xf32>
      %cst_167 = arith.constant 0.000000e+00 : f32
      %422 = vector.broadcast %cst_167 : f32 to vector<8x16xf32>
      %423 = arith.maximumf %421, %422 : vector<8x16xf32>
      %c0_168 = arith.constant 0 : index
      %c0_169 = arith.constant 0 : index
      %424 = vector.load %arg16[%c0_168, %c0_169] : memref<16x1xf32, #tpu.memory_space<vmem>>, vector<16x1xf32>
      %cst_170 = arith.constant dense<0.000000e+00> : vector<8x1xf32>
      %425 = tpu.matmul %423, %424, %cst_170 {dimension_numbers = #tpu.dot_dimension_numbers<[1], [0], [0], [1], [0, 0, 1, 1], [], []>} : vector<8x16xf32>, vector<16x1xf32>, vector<8x1xf32> -> vector<8x1xf32>
      %c0_171 = arith.constant 0 : index
      %c0_172 = arith.constant 0 : index
      %426 = vector.load %arg17[%c0_171, %c0_172] : memref<1x1xf32, #tpu.memory_space<vmem>>, vector<1x1xf32>
      %427 = vector.broadcast %426 : vector<1x1xf32> to vector<8x1xf32>
      %428 = arith.addf %425, %427 : vector<8x1xf32>
      %c0_173 = arith.constant 0 : index
      %c0_174 = arith.constant 0 : index
      %429 = vector.load %arg18[%c0_173, %c0_174] : memref<8x1xf32, #tpu.memory_space<vmem>>, vector<8x1xf32>
      tpu.vector_store %arg18[%c0_173, %c0_174], %428 {strides = array<i32>} : memref<8x1xf32, #tpu.memory_space<vmem>>, vector<8x1xf32>,
    } else {
    }
    return
  }
  func.func @transform_0(%arg0: i32, %arg1: i32, %arg2: memref<8xi32, #tpu.memory_space<smem>>) -> (i32, i32, i32) {
    %c0_i32 = arith.constant 0 : i32
    %c0_i32_0 = arith.constant 0 : i32
    return %arg1, %arg0, %c0_i32 : i32, i32, i32
  }
  func.func @transform_1(%arg0: i32, %arg1: i32, %arg2: memref<8xi32, #tpu.memory_space<smem>>) -> (i32, i32) {
    %c0_i32 = arith.constant 0 : i32
    %c0_i32_0 = arith.constant 0 : i32
    return %arg0, %c0_i32 : i32, i32
  }
  func.func @transform_2(%arg0: i32, %arg1: i32, %arg2: memref<8xi32, #tpu.memory_space<smem>>) -> (i32, i32) {
    %c0_i32 = arith.constant 0 : i32
    %c0_i32_0 = arith.constant 0 : i32
    %c0_i32_1 = arith.constant 0 : i32
    return %c0_i32, %c0_i32_0 : i32, i32
  }
  func.func @transform_3(%arg0: i32, %arg1: i32, %arg2: memref<8xi32, #tpu.memory_space<smem>>) -> (i32, i32) {
    %c0_i32 = arith.constant 0 : i32
    %c0_i32_0 = arith.constant 0 : i32
    %c0_i32_1 = arith.constant 0 : i32
    return %c0_i32, %c0_i32_0 : i32, i32
  }
  func.func @transform_4(%arg0: i32, %arg1: i32, %arg2: memref<8xi32, #tpu.memory_space<smem>>) -> (i32, i32) {
    %c0_i32 = arith.constant 0 : i32
    %c0_i32_0 = arith.constant 0 : i32
    %c0_i32_1 = arith.constant 0 : i32
    return %c0_i32, %c0_i32_0 : i32, i32
  }
  func.func @transform_5(%arg0: i32, %arg1: i32, %arg2: memref<8xi32, #tpu.memory_space<smem>>) -> (i32, i32) {
    %c0_i32 = arith.constant 0 : i32
    %c0_i32_0 = arith.constant 0 : i32
    %c0_i32_1 = arith.constant 0 : i32
    return %c0_i32, %c0_i32_0 : i32, i32
  }
  func.func @transform_6(%arg0: i32, %arg1: i32, %arg2: memref<8xi32, #tpu.memory_space<smem>>) -> (i32, i32) {
    %c0_i32 = arith.constant 0 : i32
    %c0_i32_0 = arith.constant 0 : i32
    %c0_i32_1 = arith.constant 0 : i32
    return %c0_i32, %c0_i32_0 : i32, i32
  }
  func.func @transform_7(%arg0: i32, %arg1: i32, %arg2: memref<8xi32, #tpu.memory_space<smem>>) -> (i32, i32) {
    %c0_i32 = arith.constant 0 : i32
    %c0_i32_0 = arith.constant 0 : i32
    %c0_i32_1 = arith.constant 0 : i32
    return %c0_i32, %c0_i32_0 : i32, i32
  }
  func.func @transform_8(%arg0: i32, %arg1: i32, %arg2: memref<8xi32, #tpu.memory_space<smem>>) -> (i32, i32) {
    %c0_i32 = arith.constant 0 : i32
    %c0_i32_0 = arith.constant 0 : i32
    %c0_i32_1 = arith.constant 0 : i32
    return %c0_i32, %c0_i32_0 : i32, i32
  }
  func.func @transform_9(%arg0: i32, %arg1: i32, %arg2: memref<8xi32, #tpu.memory_space<smem>>) -> (i32, i32) {
    %c0_i32 = arith.constant 0 : i32
    %c0_i32_0 = arith.constant 0 : i32
    %c0_i32_1 = arith.constant 0 : i32
    return %c0_i32, %c0_i32_0 : i32, i32
  }
  func.func @transform_10(%arg0: i32, %arg1: i32, %arg2: memref<8xi32, #tpu.memory_space<smem>>) -> (i32, i32) {
    %c0_i32 = arith.constant 0 : i32
    %c0_i32_0 = arith.constant 0 : i32
    %c0_i32_1 = arith.constant 0 : i32
    return %c0_i32, %c0_i32_0 : i32, i32
  }
  func.func @transform_11(%arg0: i32, %arg1: i32, %arg2: memref<8xi32, #tpu.memory_space<smem>>) -> (i32, i32) {
    %c0_i32 = arith.constant 0 : i32
    %c0_i32_0 = arith.constant 0 : i32
    %c0_i32_1 = arith.constant 0 : i32
    return %c0_i32, %c0_i32_0 : i32, i32
  }
  func.func @transform_12(%arg0: i32, %arg1: i32, %arg2: memref<8xi32, #tpu.memory_space<smem>>) -> (i32, i32) {
    %c0_i32 = arith.constant 0 : i32
    %c0_i32_0 = arith.constant 0 : i32
    %c0_i32_1 = arith.constant 0 : i32
    return %c0_i32, %c0_i32_0 : i32, i32
  }
  func.func @transform_13(%arg0: i32, %arg1: i32, %arg2: memref<8xi32, #tpu.memory_space<smem>>) -> (i32, i32) {
    %c0_i32 = arith.constant 0 : i32
    %c0_i32_0 = arith.constant 0 : i32
    %c0_i32_1 = arith.constant 0 : i32
    return %c0_i32, %c0_i32_0 : i32, i32
  }
  func.func @transform_14(%arg0: i32, %arg1: i32, %arg2: memref<8xi32, #tpu.memory_space<smem>>) -> (i32, i32) {
    %c0_i32 = arith.constant 0 : i32
    %c0_i32_0 = arith.constant 0 : i32
    %c0_i32_1 = arith.constant 0 : i32
    return %c0_i32, %c0_i32_0 : i32, i32
  }
  func.func @transform_15(%arg0: i32, %arg1: i32, %arg2: memref<8xi32, #tpu.memory_space<smem>>) -> (i32, i32) {
    %c0_i32 = arith.constant 0 : i32
    %c0_i32_0 = arith.constant 0 : i32
    %c0_i32_1 = arith.constant 0 : i32
    return %c0_i32, %c0_i32_0 : i32, i32
  }
}

</mosaic_0001>

<llo_original>
// kernel: predictor_forward.1
$region0: #{predictor_forward.1}
  #allocation0 [shape = 'u32[]', space=smem, size = 0x4, offset = 0x4, fixed_abs, tag = 'smem constant byte address 0x4 - core index']
  #allocation1 [shape = 'u32[144,128]{1,0:T(1,128)}', space=vmem, size = 0x12000, scoped, tag = 'internal scratch']
  #allocation2 [shape = 'f32[8,128]{1,0:T(8,128)}', space=vmem, size = 0x1000, scoped, tag = 'scratch operand']
  #allocation3 [shape = 'f32[32,128]{1,0:T(8,128)}', space=vmem, size = 0x4000, scoped, tag = 'scratch operand']
  #allocation4 [shape = 'f32[24,384]{1,0:T(8,128)}', space=vmem, size = 0x9000, scoped, tag = 'scratch operand']
  #allocation5 [shape = 'f32[8,128]{1,0:T(8,128)}', space=vmem, size = 0x1000, scoped, tag = 'scratch operand']
  #allocation6 [shape = 's32[1]{0}', space=sflag, size = 0x4, scoped, tag = 'scoped memory for predictor_forward.1']
  #allocation7 [shape = 'u8[512]{0}', space=smem, size = 0x200, scoped, tag = 'prefetched SMEM operand 0']
  #allocation8 [shape = 'f32[1,1]{1,0:T(1,128)S(1)}', space=vmem, size = 0x200, scoped, tag = 'scoped memory for predictor_forward.1']
  %s0 = inlined_call_operand.vmem [shape: s32[8], index: 0, kind: input, shape index: {}]
  %s1 = inlined_call_operand.vmem [shape: f32[8,8,384], index: 1, kind: input, shape index: {}]
  %s2 = inlined_call_operand.vmem [shape: s32[8,1], index: 2, kind: input, shape index: {}]
  %s3 = inlined_call_operand.vmem [shape: f32[128,384], index: 3, kind: input, shape index: {}]
  %s4 = inlined_call_operand.vmem [shape: f32[1,128], index: 4, kind: input, shape index: {}]
  %s5 = inlined_call_operand.vmem [shape: s32[8,1], index: 5, kind: input, shape index: {}]
  %s6 = inlined_call_operand.vmem [shape: f32[32,384], index: 6, kind: input, shape index: {}]
  %s7 = inlined_call_operand.vmem [shape: f32[1,384], index: 7, kind: input, shape index: {}]
  %s8 = inlined_call_operand.vmem [shape: f32[128,384], index: 8, kind: input, shape index: {}]
  %s9 = inlined_call_operand.vmem [shape: f32[1,128], index: 9, kind: input, shape index: {}]
  %s10 = inlined_call_operand.vmem [shape: f32[32,32], index: 10, kind: input, shape index: {}]
  %s11 = inlined_call_operand.vmem [shape: f32[1,32], index: 11, kind: input, shape index: {}]
  %s12 = inlined_call_operand.vmem [shape: f32[32,16], index: 12, kind: input, shape index: {}]
  %s13 = inlined_call_operand.vmem [shape: f32[1,16], index: 13, kind: input, shape index: {}]
  %s14 = inlined_call_operand.vmem [shape: f32[16,1], index: 14, kind: input, shape index: {}]
  %s15 = inlined_call_operand.<no memory space> [shape: f32[1,1], index: 15, kind: input, shape index: {}]
  %s16 = inlined_call_operand.vmem [shape: f32[8,1], index: 16, kind: output, shape index: {}]
  %s17 = sld [smem:[#allocation0]]
  $region86: #{predictor_forward.1} parent=0
    _
  %s19 = ssub.s32 1, %s17
  %s20 = scalar_select 0, %s19, %s17
  %s21 = sshll.u32 %s0, 4
  %s22 = int_to_ptr.vmem [resolvable:$true] %s21
  %24 = dma.vmem_to_smem %s22, 16, [#allocation7], [#allocation6]
  %v25 = vstv %s15
  %26 = vst [vmem:[#allocation8] sm:$0x1] %v25
  %27 = dma.done [#allocation6], 16
  %28 = sfence
  // Predicated region
  $region2: #{predictor_forward.1} parent=0 // pred_check
    _
  $region3: #{predictor_forward.1} parent=0 // pred_check_branch
    %30 = sbr.rel (0) target = $region5
  $region4: #{predictor_forward.1} parent=0 // pred_region
    _
  $region5: #{predictor_forward.1} parent=0 // pred_fallthru
    _
  // Predicated region
  $region6: #{predictor_forward.1} parent=0 // pred_check
    _
  $region7: #{predictor_forward.1} parent=0 // pred_check_branch
    %32 = sbr.rel (0) target = $region9
  $region8: #{predictor_forward.1} parent=0 // pred_region
    _
  $region9: #{predictor_forward.1} parent=0 // pred_fallthru
    _
  // Predicated region
  $region10: #{predictor_forward.1} parent=0 // pred_check
    _
  $region11: #{predictor_forward.1} parent=0 // pred_check_branch
    %34 = sbr.rel (0) target = $region13
  $region12: #{predictor_forward.1} parent=0 // pred_region
    _
  $region13: #{predictor_forward.1} parent=0 // pred_fallthru
    _
  // Predicated region
  $region14: #{predictor_forward.1} parent=0 // pred_check
    _
  $region15: #{predictor_forward.1} parent=0 // pred_check_branch
    %36 = sbr.rel (0) target = $region17
  $region16: #{predictor_forward.1} parent=0 // pred_region
    _
  $region17: #{predictor_forward.1} parent=0 // pred_fallthru
    _
  // Predicated region
  $region18: #{predictor_forward.1} parent=0 // pred_check
    _
  $region19: #{predictor_forward.1} parent=0 // pred_check_branch
    %38 = sbr.rel (0) target = $region21
  $region20: #{predictor_forward.1} parent=0 // pred_region
    _
  $region21: #{predictor_forward.1} parent=0 // pred_fallthru
    _
  // Predicated region
  $region22: #{predictor_forward.1} parent=0 // pred_check
    _
  $region23: #{predictor_forward.1} parent=0 // pred_check_branch
    %40 = sbr.rel (0) target = $region25
  $region24: #{predictor_forward.1} parent=0 // pred_region
    _
  $region25: #{predictor_forward.1} parent=0 // pred_fallthru
    _
  // Predicated region
  $region26: #{predictor_forward.1} parent=0 // pred_check
    _
  $region27: #{predictor_forward.1} parent=0 // pred_check_branch
    %42 = sbr.rel (0) target = $region29
  $region28: #{predictor_forward.1} parent=0 // pred_region
    _
  $region29: #{predictor_forward.1} parent=0 // pred_fallthru
    _
  // Predicated region
  $region30: #{predictor_forward.1} parent=0 // pred_check
    _
  $region31: #{predictor_forward.1} parent=0 // pred_check_branch
    %44 = sbr.rel (0) target = $region33
  $region32: #{predictor_forward.1} parent=0 // pred_region
    _
  $region33: #{predictor_forward.1} parent=0 // pred_fallthru
    _
  // Predicated region
  $region34: #{predictor_forward.1} parent=0 // pred_check
    _
  $region35: #{predictor_forward.1} parent=0 // pred_check_branch
    %46 = sbr.rel (0) target = $region37
  $region36: #{predictor_forward.1} parent=0 // pred_region
    _
  $region37: #{predictor_forward.1} parent=0 // pred_fallthru
    _
  // Predicated region
  $region38: #{predictor_forward.1} parent=0 // pred_check
    _
  $region39: #{predictor_forward.1} parent=0 // pred_check_branch
    %48 = sbr.rel (0) target = $region41
  $region40: #{predictor_forward.1} parent=0 // pred_region
    _
  $region41: #{predictor_forward.1} parent=0 // pred_fallthru
    _
  // Predicated region
  $region42: #{predictor_forward.1} parent=0 // pred_check
    _
  $region43: #{predictor_forward.1} parent=0 // pred_check_branch
    %50 = sbr.rel (0) target = $region45
  $region44: #{predictor_forward.1} parent=0 // pred_region
    _
  $region45: #{predictor_forward.1} parent=0 // pred_fallthru
    _
  // Predicated region
  $region46: #{predictor_forward.1} parent=0 // pred_check
    _
  $region47: #{predictor_forward.1} parent=0 // pred_check_branch
    %52 = sbr.rel (0) target = $region49
  $region48: #{predictor_forward.1} parent=0 // pred_region
    _
  $region49: #{predictor_forward.1} parent=0 // pred_fallthru
    _
  // Predicated region
  $region50: #{predictor_forward.1} parent=0 // pred_check
    _
  $region51: #{predictor_forward.1} parent=0 // pred_check_branch
    %54 = sbr.rel (0) target = $region53
  $region52: #{predictor_forward.1} parent=0 // pred_region
    _
  $region53: #{predictor_forward.1} parent=0 // pred_fallthru
    _
  // Predicated region
  $region54: #{predictor_forward.1} parent=0 // pred_check
    _
  $region55: #{predictor_forward.1} parent=0 // pred_check_branch
    %56 = sbr.rel (0) target = $region57
  $region56: #{predictor_forward.1} parent=0 // pred_region
    _
  $region57: #{predictor_forward.1} parent=0 // pred_fallthru
    _
  // Predicated region
  $region58: #{predictor_forward.1} parent=0 // pred_check
    _
  $region59: #{predictor_forward.1} parent=0 // pred_check_branch
    %58 = sbr.rel (0) target = $region61
  $region60: #{predictor_forward.1} parent=0 // pred_region
    _
  $region61: #{predictor_forward.1} parent=0 // pred_fallthru
    _
  %p59 = scmp.eq.s32.totalorder 0, 0
  %p60 = scmp.eq.s32.totalorder 0, 0
  %p61 = pnand %p59, %p60
  %p62 = pneg %p61
  // Predicated region
  $region62: #{predictor_forward.1} parent=0 // pred_check
    _
  $region63: #{predictor_forward.1} parent=0 // pred_check_branch
    %64 = sbr.rel (%p61) target = $region65
  $region64: #{predictor_forward.1} parent=0 // pred_region
    %65 = vst [vmem:[#allocation3] sm:$0xff] 0.0
    %66 = vst [vmem:[#allocation3 + $0x8] sm:$0xff] 0.0
    %67 = vst [vmem:[#allocation3 + $0x10] sm:$0xff] 0.0
    %68 = vst [vmem:[#allocation3 + $0x18] sm:$0xff] 0.0
  $region65: #{predictor_forward.1} parent=0 // pred_fallthru
    _
  // Predicated region
  $region66: #{predictor_forward.1} parent=0 // pred_check
    %p69 = pneg %p60
  $region67: #{predictor_forward.1} parent=0 // pred_check_branch
    %71 = sbr.rel (%p69) target = $region69
  $region68: #{predictor_forward.1} parent=0 // pred_region
    %72 = vst [vmem:[#allocation2] sm:$0xff] 0.0
  $region69: #{predictor_forward.1} parent=0 // pred_fallthru
    _
  %v73 = vld [vmem:[%s2] sm:$0xff]
  %v74 = vld [vmem:[%s4] sm:$0x1]
  %v76 = vlaneseq
  %v77 = vshrl.u32 %v76, 7
  %v78 = vsub.s32 0, %v77
  %v79 = vrot.slane %v74, %v78
  %s81 = smul.u32 0, 8
  %v82 = vld [vmem:[#allocation2] sm:$0xff]
  %v83 = vld [vmem:[%s1] sm:$0xff]
  %v84 = vld [vmem:[%s1 + $0x8] sm:$0xff]
  %v85 = vld [vmem:[%s1 + $0x10] sm:$0xff]
  %v86 = vld [vmem:[%s3] sm:$0xff]
  %v87 = vld [vmem:[%s3 + $0x8] sm:$0xff]
  %v88 = vld [vmem:[%s3 + $0x10] sm:$0xff]
  %v89 = vld [vmem:[%s3 + $0x18] sm:$0xff]
  %v90 = vld [vmem:[%s3 + $0x20] sm:$0xff]
  %v91 = vld [vmem:[%s3 + $0x28] sm:$0xff]
  %v92 = vld [vmem:[%s3 + $0x30] sm:$0xff]
  %v93 = vld [vmem:[%s3 + $0x38] sm:$0xff]
  %v94 = vld [vmem:[%s3 + $0x40] sm:$0xff]
  %v95 = vld [vmem:[%s3 + $0x48] sm:$0xff]
  %v96 = vld [vmem:[%s3 + $0x50] sm:$0xff]
  %v97 = vld [vmem:[%s3 + $0x58] sm:$0xff]
  %v98 = vld [vmem:[%s3 + $0x60] sm:$0xff]
  %v99 = vld [vmem:[%s3 + $0x68] sm:$0xff]
  %v100 = vld [vmem:[%s3 + $0x70] sm:$0xff]
  %v101 = vld [vmem:[%s3 + $0x78] sm:$0xff]
  %v102 = vld [vmem:[%s3 + $0x80] sm:$0xff]
  %v103 = vld [vmem:[%s3 + $0x88] sm:$0xff]
  %v104 = vld [vmem:[%s3 + $0x90] sm:$0xff]
  %v105 = vld [vmem:[%s3 + $0x98] sm:$0xff]
  %v106 = vld [vmem:[%s3 + $0xa0] sm:$0xff]
  %v107 = vld [vmem:[%s3 + $0xa8] sm:$0xff]
  %v108 = vld [vmem:[%s3 + $0xb0] sm:$0xff]
  %v109 = vld [vmem:[%s3 + $0xb8] sm:$0xff]
  %v110 = vld [vmem:[%s3 + $0xc0] sm:$0xff]
  %v111 = vld [vmem:[%s3 + $0xc8] sm:$0xff]
  %v112 = vld [vmem:[%s3 + $0xd0] sm:$0xff]
  %v113 = vld [vmem:[%s3 + $0xd8] sm:$0xff]
  %v114 = vld [vmem:[%s3 + $0xe0] sm:$0xff]
  %v115 = vld [vmem:[%s3 + $0xe8] sm:$0xff]
  %v116 = vld [vmem:[%s3 + $0xf0] sm:$0xff]
  %v117 = vld [vmem:[%s3 + $0xf8] sm:$0xff]
  %v118 = vld [vmem:[%s3 + $0x100] sm:$0xff]
  %v119 = vld [vmem:[%s3 + $0x108] sm:$0xff]
  %v120 = vld [vmem:[%s3 + $0x110] sm:$0xff]
  %v121 = vld [vmem:[%s3 + $0x118] sm:$0xff]
  %v122 = vld [vmem:[%s3 + $0x120] sm:$0xff]
  %v123 = vld [vmem:[%s3 + $0x128] sm:$0xff]
  %v124 = vld [vmem:[%s3 + $0x130] sm:$0xff]
  %v125 = vld [vmem:[%s3 + $0x138] sm:$0xff]
  %v126 = vld [vmem:[%s3 + $0x140] sm:$0xff]
  %v127 = vld [vmem:[%s3 + $0x148] sm:$0xff]
  %v128 = vld [vmem:[%s3 + $0x150] sm:$0xff]
  %v129 = vld [vmem:[%s3 + $0x158] sm:$0xff]
  %v130 = vld [vmem:[%s3 + $0x160] sm:$0xff]
  %v131 = vld [vmem:[%s3 + $0x168] sm:$0xff]
  %v132 = vld [vmem:[%s3 + $0x170] sm:$0xff]
  %v133 = vld [vmem:[%s3 + $0x178] sm:$0xff]
  %134 = vmatprep.subr.mxu0 %v87
  %135 = vmatpush1.msra.mxu0 %v86
  %136 = vmatprep.subr.mxu0 %v90
  %137 = vmatpush1.msra.mxu0 %v89
  %138 = vmatprep.subr.mxu0 %v93
  %139 = vmatpush1.msra.mxu0 %v92
  %140 = vmatprep.subr.mxu0 %v96
  %141 = vmatpush1.msra.mxu0 %v95
  %142 = vmatprep.subr.mxu0 %v99
  %143 = vmatpush1.msra.mxu0 %v98
  %144 = vmatprep.subr.mxu0 %v102
  %145 = vmatpush1.msra.mxu0 %v101
  %146 = vmatprep.subr.mxu0 %v105
  %147 = vmatpush1.msra.mxu0 %v104
  %148 = vmatprep.subr.mxu0 %v108
  %149 = vmatpush1.msra.mxu0 %v107
  %150 = vmatprep.subr.mxu0 %v111
  %151 = vmatpush1.msra.mxu0 %v110
  %152 = vmatprep.subr.mxu0 %v114
  %153 = vmatpush1.msra.mxu0 %v113
  %154 = vmatprep.subr.mxu0 %v117
  %155 = vmatpush1.msra.mxu0 %v116
  %156 = vmatprep.subr.mxu0 %v120
  %157 = vmatpush1.msra.mxu0 %v119
  %158 = vmatprep.subr.mxu0 %v123
  %159 = vmatpush1.msra.mxu0 %v122
  %160 = vmatprep.subr.mxu0 %v126
  %161 = vmatpush1.msra.mxu0 %v125
  %162 = vmatprep.subr.mxu0 %v129
  %163 = vmatpush1.msra.mxu0 %v128
  %164 = vmatprep.subr.mxu0 %v132
  %165 = vmatpush1.msra.mxu0 %v131
  %166 = vmatprep.subr.mxu0 0.0
  %167 = vmatpush1.msra.mxu0 0.0
  %168 = vmatprep.subr.mxu0 0.0
  %169 = vmatpush1.msra.mxu0 0.0
  %170 = vmatprep.subr.mxu0 0.0
  %171 = vmatpush1.msra.mxu0 0.0
  %172 = vmatprep.subr.mxu0 0.0
  %173 = vmatpush1.msra.mxu0 0.0
  %174 = vmatprep.subr.mxu0 0.0
  %175 = vmatpush1.msra.mxu0 0.0
  %176 = vmatprep.subr.mxu0 0.0
  %177 = vmatpush1.msra.mxu0 0.0
  %178 = vmatprep.subr.mxu0 0.0
  %179 = vmatpush1.msra.mxu0 0.0
  %180 = vmatprep.subr.mxu0 0.0
  %181 = vmatpush1.msra.mxu0 0.0
  %182 = vmatprep.subr.mxu0 0.0
  %183 = vmatpush1.msra.mxu0 0.0
  %184 = vmatprep.subr.mxu0 0.0
  %185 = vmatpush1.msra.mxu0 0.0
  %186 = vmatprep.subr.mxu0 0.0
  %187 = vmatpush1.msra.mxu0 0.0
  %188 = vmatprep.subr.mxu0 0.0
  %189 = vmatpush1.msra.mxu0 0.0
  %190 = vmatprep.subr.mxu0 0.0
  %191 = vmatpush1.msra.mxu0 0.0
  %192 = vmatprep.subr.mxu0 0.0
  %193 = vmatpush1.msra.mxu0 0.0
  %194 = vmatprep.subr.mxu0 0.0
  %195 = vmatpush1.msra.mxu0 0.0
  %196 = vmatprep.subr.mxu0 0.0
  %197 = vmatpush1.msra.mxu0 0.0
  %198 = vmatprep.mubr.f32.mxu0 0.0
  %199 = vmatmul.mubr.f32.gmra.mrb[0].mxu0 %v82
  %v200 = vpop.f32.mrb[0].mxu0
  %v201 = vadd.f32 0.0, %v200
  %v202 = vpop.f32.mrb[0].mxu0
  %v203 = vadd.f32 0.0, %v202
  %204 = vdwg.mxu0
  %205 = vmatprep.subr.mxu0 0.0
  %206 = vmatpush1.msra.mxu0 %v88
  %207 = vmatprep.subr.mxu0 0.0
  %208 = vmatpush1.msra.mxu0 %v91
  %209 = vmatprep.subr.mxu0 0.0
  %210 = vmatpush1.msra.mxu0 %v94
  %211 = vmatprep.subr.mxu0 0.0
  %212 = vmatpush1.msra.mxu0 %v97
  %213 = vmatprep.subr.mxu0 0.0
  %214 = vmatpush1.msra.mxu0 %v100
  %215 = vmatprep.subr.mxu0 0.0
  %216 = vmatpush1.msra.mxu0 %v103
  %217 = vmatprep.subr.mxu0 0.0
  %218 = vmatpush1.msra.mxu0 %v106
  %219 = vmatprep.subr.mxu0 0.0
  %220 = vmatpush1.msra.mxu0 %v109
  %221 = vmatprep.subr.mxu0 0.0
  %222 = vmatpush1.msra.mxu0 %v112
  %223 = vmatprep.subr.mxu0 0.0
  %224 = vmatpush1.msra.mxu0 %v115
  %225 = vmatprep.subr.mxu0 0.0
  %226 = vmatpush1.msra.mxu0 %v118
  %227 = vmatprep.subr.mxu0 0.0
  %228 = vmatpush1.msra.mxu0 %v121
  %229 = vmatprep.subr.mxu0 0.0
  %230 = vmatpush1.msra.mxu0 %v124
  %231 = vmatprep.subr.mxu0 0.0
  %232 = vmatpush1.msra.mxu0 %v127
  %233 = vmatprep.subr.mxu0 0.0
  %234 = vmatpush1.msra.mxu0 %v130
  %235 = vmatprep.subr.mxu0 0.0
  %236 = vmatpush1.msra.mxu0 %v133
  %237 = vmatprep.subr.mxu0 0.0
  %238 = vmatpush1.msra.mxu0 0.0
  %239 = vmatprep.subr.mxu0 0.0
  %240 = vmatpush1.msra.mxu0 0.0
  %241 = vmatprep.subr.mxu0 0.0
  %242 = vmatpush1.msra.mxu0 0.0
  %243 = vmatprep.subr.mxu0 0.0
  %244 = vmatpush1.msra.mxu0 0.0
  %245 = vmatprep.subr.mxu0 0.0
  %246 = vmatpush1.msra.mxu0 0.0
  %247 = vmatprep.subr.mxu0 0.0
  %248 = vmatpush1.msra.mxu0 0.0
  %249 = vmatprep.subr.mxu0 0.0
  %250 = vmatpush1.msra.mxu0 0.0
  %251 = vmatprep.subr.mxu0 0.0
  %252 = vmatpush1.msra.mxu0 0.0
  %253 = vmatprep.subr.mxu0 0.0
  %254 = vmatpush1.msra.mxu0 0.0
  %255 = vmatprep.subr.mxu0 0.0
  %256 = vmatpush1.msra.mxu0 0.0
  %257 = vmatprep.subr.mxu0 0.0
  %258 = vmatpush1.msra.mxu0 0.0
  %259 = vmatprep.subr.mxu0 0.0
  %260 = vmatpush1.msra.mxu0 0.0
  %261 = vmatprep.subr.mxu0 0.0
  %262 = vmatpush1.msra.mxu0 0.0
  %263 = vmatprep.subr.mxu0 0.0
  %264 = vmatpush1.msra.mxu0 0.0
  %265 = vmatprep.subr.mxu0 0.0
  %266 = vmatpush1.msra.mxu0 0.0
  %267 = vmatprep.subr.mxu0 0.0
  %268 = vmatpush1.msra.mxu0 0.0
  %269 = vmatprep.mubr.f32.mxu0 0.0
  %270 = vmatmul.mubr.f32.gmra.mrb[0].mxu0 %v82
  %v271 = vpop.f32.mrb[0].mxu0
  %v272 = vadd.f32 0.0, %v271
  %v273 = vpop.f32.mrb[0].mxu0
  %274 = vdwg.mxu0
  %v275 = vadd.f32 %v83, %v201
  %v276 = vadd.f32 %v84, %v203
  %v277 = vxor.u32 %v275, 2147483648
  %v278 = vxor.u32 %v276, 2147483648
  %v279 = vmul.f32 %v277, 1.442695
  %v280 = vpow.pop %v279
  %v281 = vmul.f32 %v278, 1.442695
  %v282 = vpow.pop %v281
  %v283 = vadd.f32 %v280, 1.0
  %v284 = vadd.f32 %v282, 1.0
  %v285 = vrcp.pop %v283
  %v286 = vmul.f32 1.0, %v285
  %v287 = vrcp.pop %v284
  %v288 = vmul.f32 1.0, %v287
  %v289 = vadd.f32 %v272, %v79
  %v290 = vmul.f32 %v286, %v289
  %v291 = vadd.f32 %v85, %v290
  %v292 = vtanh.pop %v291
  %v293 = vsub.f32 1.0, %v288
  %v294 = vmul.f32 %v293, %v292
  %v295 = vmul.f32 %v288, %v82
  %v296 = vadd.f32 %v294, %v295
  %v297 = vstv %s81
  %vm298 = vcmp.lt.s32.totalorder %v297, %v73
  %v299 = vsel %vm298, 1, 0
  %300 = vset.pattern.permute.xlu0 0
  %301 = vperm.xlu0 %300, %v299
  %v302 = vpop.permute.xlu0 %301
  %vm303 = vcmp.eq.s32.totalorder %v302, 1
  %v304 = vsel %vm303, %v296, %v82
  %305 = vst [vmem:[#allocation2] sm:$0xff] %v304
  %v306 = vld [vmem:[#allocation2] sm:$0xff]
  %s307 = scalar_lea.vmem %s1, 24
  %v308 = vld [vmem:[%s307] sm:$0xff]
  %v309 = vld [vmem:[%s307 + $0x8] sm:$0xff]
  %v310 = vld [vmem:[%s307 + $0x10] sm:$0xff]
  %v311 = vld [vmem:[%s3] sm:$0xff]
  %v312 = vld [vmem:[%s3 + $0x8] sm:$0xff]
  %v313 = vld [vmem:[%s3 + $0x10] sm:$0xff]
  %v314 = vld [vmem:[%s3 + $0x18] sm:$0xff]
  %v315 = vld [vmem:[%s3 + $0x20] sm:$0xff]
  %v316 = vld [vmem:[%s3 + $0x28] sm:$0xff]
  %v317 = vld [vmem:[%s3 + $0x30] sm:$0xff]
  %v318 = vld [vmem:[%s3 + $0x38] sm:$0xff]
  %v319 = vld [vmem:[%s3 + $0x40] sm:$0xff]
  %v320 = vld [vmem:[%s3 + $0x48] sm:$0xff]
  %v321 = vld [vmem:[%s3 + $0x50] sm:$0xff]
  %v322 = vld [vmem:[%s3 + $0x58] sm:$0xff]
  %v323 = vld [vmem:[%s3 + $0x60] sm:$0xff]
  %v324 = vld [vmem:[%s3 + $0x68] sm:$0xff]
  %v325 = vld [vmem:[%s3 + $0x70] sm:$0xff]
  %v326 = vld [vmem:[%s3 + $0x78] sm:$0xff]
  %v327 = vld [vmem:[%s3 + $0x80] sm:$0xff]
  %v328 = vld [vmem:[%s3 + $0x88] sm:$0xff]
  %v329 = vld [vmem:[%s3 + $0x90] sm:$0xff]
  %v330 = vld [vmem:[%s3 + $0x98] sm:$0xff]
  %v331 = vld [vmem:[%s3 + $0xa0] sm:$0xff]
  %v332 = vld [vmem:[%s3 + $0xa8] sm:$0xff]
  %v333 = vld [vmem:[%s3 + $0xb0] sm:$0xff]
  %v334 = vld [vmem:[%s3 + $0xb8] sm:$0xff]
  %v335 = vld [vmem:[%s3 + $0xc0] sm:$0xff]
  %v336 = vld [vmem:[%s3 + $0xc8] sm:$0xff]
  %v337 = vld [vmem:[%s3 + $0xd0] sm:$0xff]
  %v338 = vld [vmem:[%s3 + $0xd8] sm:$0xff]
  %v339 = vld [vmem:[%s3 + $0xe0] sm:$0xff]
  %v340 = vld [vmem:[%s3 + $0xe8] sm:$0xff]
  %v341 = vld [vmem:[%s3 + $0xf0] sm:$0xff]
  %v342 = vld [vmem:[%s3 + $0xf8] sm:$0xff]
  %v343 = vld [vmem:[%s3 + $0x100] sm:$0xff]
  %v344 = vld [vmem:[%s3 + $0x108] sm:$0xff]
  %v345 = vld [vmem:[%s3 + $0x110] sm:$0xff]
  %v346 = vld [vmem:[%s3 + $0x118] sm:$0xff]
  %v347 = vld [vmem:[%s3 + $0x120] sm:$0xff]
  %v348 = vld [vmem:[%s3 + $0x128] sm:$0xff]
  %v349 = vld [vmem:[%s3 + $0x130] sm:$0xff]
  %v350 = vld [vmem:[%s3 + $0x138] sm:$0xff]
  %v351 = vld [vmem:[%s3 + $0x140] sm:$0xff]
  %v352 = vld [vmem:[%s3 + $0x148] sm:$0xff]
  %v353 = vld [vmem:[%s3 + $0x150] sm:$0xff]
  %v354 = vld [vmem:[%s3 + $0x158] sm:$0xff]
  %v355 = vld [vmem:[%s3 + $0x160] sm:$0xff]
  %v356 = vld [vmem:[%s3 + $0x168] sm:$0xff]
  %v357 = vld [vmem:[%s3 + $0x170] sm:$0xff]
  %v358 = vld [vmem:[%s3 + $0x178] sm:$0xff]
  %359 = vmatprep.subr.mxu0 %v312
  %360 = vmatpush1.msra.mxu0 %v311
  %361 = vmatprep.subr.mxu0 %v315
  %362 = vmatpush1.msra.mxu0 %v314
  %363 = vmatprep.subr.mxu0 %v318
  %364 = vmatpush1.msra.mxu0 %v317
  %365 = vmatprep.subr.mxu0 %v321
  %366 = vmatpush1.msra.mxu0 %v320
  %367 = vmatprep.subr.mxu0 %v324
  %368 = vmatpush1.msra.mxu0 %v323
  %369 = vmatprep.subr.mxu0 %v327
  %370 = vmatpush1.msra.mxu0 %v326
  %371 = vmatprep.subr.mxu0 %v330
  %372 = vmatpush1.msra.mxu0 %v329
  %373 = vmatprep.subr.mxu0 %v333
  %374 = vmatpush1.msra.mxu0 %v332
  %375 = vmatprep.subr.mxu0 %v336
  %376 = vmatpush1.msra.mxu0 %v335
  %377 = vmatprep.subr.mxu0 %v339
  %378 = vmatpush1.msra.mxu0 %v338
  %379 = vmatprep.subr.mxu0 %v342
  %380 = vmatpush1.msra.mxu0 %v341
  %381 = vmatprep.subr.mxu0 %v345
  %382 = vmatpush1.msra.mxu0 %v344
  %383 = vmatprep.subr.mxu0 %v348
  %384 = vmatpush1.msra.mxu0 %v347
  %385 = vmatprep.subr.mxu0 %v351
  %386 = vmatpush1.msra.mxu0 %v350
  %387 = vmatprep.subr.mxu0 %v354
  %388 = vmatpush1.msra.mxu0 %v353
  %389 = vmatprep.subr.mxu0 %v357
  %390 = vmatpush1.msra.mxu0 %v356
  %391 = vmatprep.subr.mxu0 0.0
  %392 = vmatpush1.msra.mxu0 0.0
  %393 = vmatprep.subr.mxu0 0.0
  %394 = vmatpush1.msra.mxu0 0.0
  %395 = vmatprep.subr.mxu0 0.0
  %396 = vmatpush1.msra.mxu0 0.0
  %397 = vmatprep.subr.mxu0 0.0
  %398 = vmatpush1.msra.mxu0 0.0
  %399 = vmatprep.subr.mxu0 0.0
  %400 = vmatpush1.msra.mxu0 0.0
  %401 = vmatprep.subr.mxu0 0.0
  %402 = vmatpush1.msra.mxu0 0.0
  %403 = vmatprep.subr.mxu0 0.0
  %404 = vmatpush1.msra.mxu0 0.0
  %405 = vmatprep.subr.mxu0 0.0
  %406 = vmatpush1.msra.mxu0 0.0
  %407 = vmatprep.subr.mxu0 0.0
  %408 = vmatpush1.msra.mxu0 0.0
  %409 = vmatprep.subr.mxu0 0.0
  %410 = vmatpush1.msra.mxu0 0.0
  %411 = vmatprep.subr.mxu0 0.0
  %412 = vmatpush1.msra.mxu0 0.0
  %413 = vmatprep.subr.mxu0 0.0
  %414 = vmatpush1.msra.mxu0 0.0
  %415 = vmatprep.subr.mxu0 0.0
  %416 = vmatpush1.msra.mxu0 0.0
  %417 = vmatprep.subr.mxu0 0.0
  %418 = vmatpush1.msra.mxu0 0.0
  %419 = vmatprep.subr.mxu0 0.0
  %420 = vmatpush1.msra.mxu0 0.0
  %421 = vmatprep.subr.mxu0 0.0
  %422 = vmatpush1.msra.mxu0 0.0
  %423 = vmatprep.mubr.f32.mxu0 0.0
  %424 = vmatmul.mubr.f32.gmra.mrb[0].mxu0 %v306
  %v425 = vpop.f32.mrb[0].mxu0
  %v426 = vadd.f32 0.0, %v425
  %v427 = vpop.f32.mrb[0].mxu0
  %v428 = vadd.f32 0.0, %v427
  %429 = vdwg.mxu0
  %430 = vmatprep.subr.mxu0 0.0
  %431 = vmatpush1.msra.mxu0 %v313
  %432 = vmatprep.subr.mxu0 0.0
  %433 = vmatpush1.msra.mxu0 %v316
  %434 = vmatprep.subr.mxu0 0.0
  %435 = vmatpush1.msra.mxu0 %v319
  %436 = vmatprep.subr.mxu0 0.0
  %437 = vmatpush1.msra.mxu0 %v322
  %438 = vmatprep.subr.mxu0 0.0
  %439 = vmatpush1.msra.mxu0 %v325
  %440 = vmatprep.subr.mxu0 0.0
  %441 = vmatpush1.msra.mxu0 %v328
  %442 = vmatprep.subr.mxu0 0.0
  %443 = vmatpush1.msra.mxu0 %v331
  %444 = vmatprep.subr.mxu0 0.0
  %445 = vmatpush1.msra.mxu0 %v334
  %446 = vmatprep.subr.mxu0 0.0
  %447 = vmatpush1.msra.mxu0 %v337
  %448 = vmatprep.subr.mxu0 0.0
  %449 = vmatpush1.msra.mxu0 %v340
  %450 = vmatprep.subr.mxu0 0.0
  %451 = vmatpush1.msra.mxu0 %v343
  %452 = vmatprep.subr.mxu0 0.0
  %453 = vmatpush1.msra.mxu0 %v346
  %454 = vmatprep.subr.mxu0 0.0
  %455 = vmatpush1.msra.mxu0 %v349
  %456 = vmatprep.subr.mxu0 0.0
  %457 = vmatpush1.msra.mxu0 %v352
  %458 = vmatprep.subr.mxu0 0.0
  %459 = vmatpush1.msra.mxu0 %v355
  %460 = vmatprep.subr.mxu0 0.0
  %461 = vmatpush1.msra.mxu0 %v358
  %462 = vmatprep.subr.mxu0 0.0
  %463 = vmatpush1.msra.mxu0 0.0
  %464 = vmatprep.subr.mxu0 0.0
  %465 = vmatpush1.msra.mxu0 0.0
  %466 = vmatprep.subr.mxu0 0.0
  %467 = vmatpush1.msra.mxu0 0.0
  %468 = vmatprep.subr.mxu0 0.0
  %469 = vmatpush1.msra.mxu0 0.0
  %470 = vmatprep.subr.mxu0 0.0
  %471 = vmatpush1.msra.mxu0 0.0
  %472 = vmatprep.subr.mxu0 0.0
  %473 = vmatpush1.msra.mxu0 0.0
  %474 = vmatprep.subr.mxu0 0.0
  %475 = vmatpush1.msra.mxu0 0.0
  %476 = vmatprep.subr.mxu0 0.0
  %477 = vmatpush1.msra.mxu0 0.0
  %478 = vmatprep.subr.mxu0 0.0
  %479 = vmatpush1.msra.mxu0 0.0
  %480 = vmatprep.subr.mxu0 0.0
  %481 = vmatpush1.msra.mxu0 0.0
  %482 = vmatprep.subr.mxu0 0.0
  %483 = vmatpush1.msra.mxu0 0.0
  %484 = vmatprep.subr.mxu0 0.0
  %485 = vmatpush1.msra.mxu0 0.0
  %486 = vmatprep.subr.mxu0 0.0
  %487 = vmatpush1.msra.mxu0 0.0
  %488 = vmatprep.subr.mxu0 0.0
  %489 = vmatpush1.msra.mxu0 0.0
  %490 = vmatprep.subr.mxu0 0.0
  %491 = vmatpush1.msra.mxu0 0.0
  %492 = vmatprep.subr.mxu0 0.0
  %493 = vmatpush1.msra.mxu0 0.0
  %494 = vmatprep.mubr.f32.mxu0 0.0
  %495 = vmatmul.mubr.f32.gmra.mrb[0].mxu0 %v306
  %v496 = vpop.f32.mrb[0].mxu0
  %v497 = vadd.f32 0.0, %v496
  %v498 = vpop.f32.mrb[0].mxu0
  %499 = vdwg.mxu0
  %v500 = vadd.f32 %v308, %v426
  %v501 = vadd.f32 %v309, %v428
  %v502 = vxor.u32 %v500, 2147483648
  %v503 = vxor.u32 %v501, 2147483648
  %v504 = vmul.f32 %v502, 1.442695
  %v505 = vpow.pop %v504
  %v506 = vmul.f32 %v503, 1.442695
  %v507 = vpow.pop %v506
  %v508 = vadd.f32 %v505, 1.0
  %v509 = vadd.f32 %v507, 1.0
  %v510 = vrcp.pop %v508
  %v511 = vmul.f32 1.0, %v510
  %v512 = vrcp.pop %v509
  %v513 = vmul.f32 1.0, %v512
  %v514 = vadd.f32 %v497, %v79
  %v515 = vmul.f32 %v511, %v514
  %v516 = vadd.f32 %v310, %v515
  %v517 = vtanh.pop %v516
  %v518 = vsub.f32 1.0, %v513
  %v519 = vmul.f32 %v518, %v517
  %v520 = vmul.f32 %v513, %v306
  %v521 = vadd.f32 %v519, %v520
  %s522 = sadd.s32 %s81, 1
  %v523 = vstv %s522
  %vm524 = vcmp.lt.s32.totalorder %v523, %v73
  %v525 = vsel %vm524, 1, 0
  %526 = vset.pattern.permute.xlu0 0
  %527 = vperm.xlu0 %526, %v525
  %v528 = vpop.permute.xlu0 %527
  %vm529 = vcmp.eq.s32.totalorder %v528, 1
  %v530 = vsel %vm529, %v521, %v306
  %531 = vst [vmem:[#allocation2] sm:$0xff] %v530
  %v532 = vld [vmem:[#allocation2] sm:$0xff]
  %s533 = scalar_lea.vmem %s1, 48
  %v534 = vld [vmem:[%s533] sm:$0xff]
  %v535 = vld [vmem:[%s533 + $0x8] sm:$0xff]
  %v536 = vld [vmem:[%s533 + $0x10] sm:$0xff]
  %v537 = vld [vmem:[%s3] sm:$0xff]
  %v538 = vld [vmem:[%s3 + $0x8] sm:$0xff]
  %v539 = vld [vmem:[%s3 + $0x10] sm:$0xff]
  %v540 = vld [vmem:[%s3 + $0x18] sm:$0xff]
  %v541 = vld [vmem:[%s3 + $0x20] sm:$0xff]
  %v542 = vld [vmem:[%s3 + $0x28] sm:$0xff]
  %v543 = vld [vmem:[%s3 + $0x30] sm:$0xff]
  %v544 = vld [vmem:[%s3 + $0x38] sm:$0xff]
  %v545 = vld [vmem:[%s3 + $0x40] sm:$0xff]
  %v546 = vld [vmem:[%s3 + $0x48] sm:$0xff]
  %v547 = vld [vmem:[%s3 + $0x50] sm:$0xff]
  %v548 = vld [vmem:[%s3 + $0x58] sm:$0xff]
  %v549 = vld [vmem:[%s3 + $0x60] sm:$0xff]
  %v550 = vld [vmem:[%s3 + $0x68] sm:$0xff]
  %v551 = vld [vmem:[%s3 + $0x70] sm:$0xff]
  %v552 = vld [vmem:[%s3 + $0x78] sm:$0xff]
  %v553 = vld [vmem:[%s3 + $0x80] sm:$0xff]
  %v554 = vld [vmem:[%s3 + $0x88] sm:$0xff]
  %v555 = vld [vmem:[%s3 + $0x90] sm:$0xff]
  %v556 = vld [vmem:[%s3 + $0x98] sm:$0xff]
  %v557 = vld [vmem:[%s3 + $0xa0] sm:$0xff]
  %v558 = vld [vmem:[%s3 + $0xa8] sm:$0xff]
  %v559 = vld [vmem:[%s3 + $0xb0] sm:$0xff]
  %v560 = vld [vmem:[%s3 + $0xb8] sm:$0xff]
  %v561 = vld [vmem:[%s3 + $0xc0] sm:$0xff]
  %v562 = vld [vmem:[%s3 + $0xc8] sm:$0xff]
  %v563 = vld [vmem:[%s3 + $0xd0] sm:$0xff]
  %v564 = vld [vmem:[%s3 + $0xd8] sm:$0xff]
  %v565 = vld [vmem:[%s3 + $0xe0] sm:$0xff]
  %v566 = vld [vmem:[%s3 + $0xe8] sm:$0xff]
  %v567 = vld [vmem:[%s3 + $0xf0] sm:$0xff]
  %v568 = vld [vmem:[%s3 + $0xf8] sm:$0xff]
  %v569 = vld [vmem:[%s3 + $0x100] sm:$0xff]
  %v570 = vld [vmem:[%s3 + $0x108] sm:$0xff]
  %v571 = vld [vmem:[%s3 + $0x110] sm:$0xff]
  %v572 = vld [vmem:[%s3 + $0x118] sm:$0xff]
  %v573 = vld [vmem:[%s3 + $0x120] sm:$0xff]
  %v574 = vld [vmem:[%s3 + $0x128] sm:$0xff]
  %v575 = vld [vmem:[%s3 + $0x130] sm:$0xff]
  %v576 = vld [vmem:[%s3 + $0x138] sm:$0xff]
  %v577 = vld [vmem:[%s3 + $0x140] sm:$0xff]
  %v578 = vld [vmem:[%s3 + $0x148] sm:$0xff]
  %v579 = vld [vmem:[%s3 + $0x150] sm:$0xff]
  %v580 = vld [vmem:[%s3 + $0x158] sm:$0xff]
  %v581 = vld [vmem:[%s3 + $0x160] sm:$0xff]
  %v582 = vld [vmem:[%s3 + $0x168] sm:$0xff]
  %v583 = vld [vmem:[%s3 + $0x170] sm:$0xff]
  %v584 = vld [vmem:[%s3 + $0x178] sm:$0xff]
  %585 = vmatprep.subr.mxu0 %v538
  %586 = vmatpush1.msra.mxu0 %v537
  %587 = vmatprep.subr.mxu0 %v541
  %588 = vmatpush1.msra.mxu0 %v540
  %589 = vmatprep.subr.mxu0 %v544
  %590 = vmatpush1.msra.mxu0 %v543
  %591 = vmatprep.subr.mxu0 %v547
  %592 = vmatpush1.msra.mxu0 %v546
  %593 = vmatprep.subr.mxu0 %v550
  %594 = vmatpush1.msra.mxu0 %v549
  %595 = vmatprep.subr.mxu0 %v553
  %596 = vmatpush1.msra.mxu0 %v552
  %597 = vmatprep.subr.mxu0 %v556
  %598 = vmatpush1.msra.mxu0 %v555
  %599 = vmatprep.subr.mxu0 %v559
  %600 = vmatpush1.msra.mxu0 %v558
  %601 = vmatprep.subr.mxu0 %v562
  %602 = vmatpush1.msra.mxu0 %v561
  %603 = vmatprep.subr.mxu0 %v565
  %604 = vmatpush1.msra.mxu0 %v564
  %605 = vmatprep.subr.mxu0 %v568
  %606 = vmatpush1.msra.mxu0 %v567
  %607 = vmatprep.subr.mxu0 %v571
  %608 = vmatpush1.msra.mxu0 %v570
  %609 = vmatprep.subr.mxu0 %v574
  %610 = vmatpush1.msra.mxu0 %v573
  %611 = vmatprep.subr.mxu0 %v577
  %612 = vmatpush1.msra.mxu0 %v576
  %613 = vmatprep.subr.mxu0 %v580
  %614 = vmatpush1.msra.mxu0 %v579
  %615 = vmatprep.subr.mxu0 %v583
  %616 = vmatpush1.msra.mxu0 %v582
  %617 = vmatprep.subr.mxu0 0.0
  %618 = vmatpush1.msra.mxu0 0.0
  %619 = vmatprep.subr.mxu0 0.0
  %620 = vmatpush1.msra.mxu0 0.0
  %621 = vmatprep.subr.mxu0 0.0
  %622 = vmatpush1.msra.mxu0 0.0
  %623 = vmatprep.subr.mxu0 0.0
  %624 = vmatpush1.msra.mxu0 0.0
  %625 = vmatprep.subr.mxu0 0.0
  %626 = vmatpush1.msra.mxu0 0.0
  %627 = vmatprep.subr.mxu0 0.0
  %628 = vmatpush1.msra.mxu0 0.0
  %629 = vmatprep.subr.mxu0 0.0
  %630 = vmatpush1.msra.mxu0 0.0
  %631 = vmatprep.subr.mxu0 0.0
  %632 = vmatpush1.msra.mxu0 0.0
  %633 = vmatprep.subr.mxu0 0.0
  %634 = vmatpush1.msra.mxu0 0.0
  %635 = vmatprep.subr.mxu0 0.0
  %636 = vmatpush1.msra.mxu0 0.0
  %637 = vmatprep.subr.mxu0 0.0
  %638 = vmatpush1.msra.mxu0 0.0
  %639 = vmatprep.subr.mxu0 0.0
  %640 = vmatpush1.msra.mxu0 0.0
  %641 = vmatprep.subr.mxu0 0.0
  %642 = vmatpush1.msra.mxu0 0.0
  %643 = vmatprep.subr.mxu0 0.0
  %644 = vmatpush1.msra.mxu0 0.0
  %645 = vmatprep.subr.mxu0 0.0
  %646 = vmatpush1.msra.mxu0 0.0
  %647 = vmatprep.subr.mxu0 0.0
  %648 = vmatpush1.msra.mxu0 0.0
  %649 = vmatprep.mubr.f32.mxu0 0.0
  %650 = vmatmul.mubr.f32.gmra.mrb[0].mxu0 %v532
  %v651 = vpop.f32.mrb[0].mxu0
  %v652 = vadd.f32 0.0, %v651
  %v653 = vpop.f32.mrb[0].mxu0
  %v654 = vadd.f32 0.0, %v653
  %655 = vdwg.mxu0
  %656 = vmatprep.subr.mxu0 0.0
  %657 = vmatpush1.msra.mxu0 %v539
  %658 = vmatprep.subr.mxu0 0.0
  %659 = vmatpush1.msra.mxu0 %v542
  %660 = vmatprep.subr.mxu0 0.0
  %661 = vmatpush1.msra.mxu0 %v545
  %662 = vmatprep.subr.mxu0 0.0
  %663 = vmatpush1.msra.mxu0 %v548
  %664 = vmatprep.subr.mxu0 0.0
  %665 = vmatpush1.msra.mxu0 %v551
  %666 = vmatprep.subr.mxu0 0.0
  %667 = vmatpush1.msra.mxu0 %v554
  %668 = vmatprep.subr.mxu0 0.0
  %669 = vmatpush1.msra.mxu0 %v557
  %670 = vmatprep.subr.mxu0 0.0
  %671 = vmatpush1.msra.mxu0 %v560
  %672 = vmatprep.subr.mxu0 0.0
  %673 = vmatpush1.msra.mxu0 %v563
  %674 = vmatprep.subr.mxu0 0.0
  %675 = vmatpush1.msra.mxu0 %v566
  %676 = vmatprep.subr.mxu0 0.0
  %677 = vmatpush1.msra.mxu0 %v569
  %678 = vmatprep.subr.mxu0 0.0
  %679 = vmatpush1.msra.mxu0 %v572
  %680 = vmatprep.subr.mxu0 0.0
  %681 = vmatpush1.msra.mxu0 %v575
  %682 = vmatprep.subr.mxu0 0.0
  %683 = vmatpush1.msra.mxu0 %v578
  %684 = vmatprep.subr.mxu0 0.0
  %685 = vmatpush1.msra.mxu0 %v581
  %686 = vmatprep.subr.mxu0 0.0
  %687 = vmatpush1.msra.mxu0 %v584
  %688 = vmatprep.subr.mxu0 0.0
  %689 = vmatpush1.msra.mxu0 0.0
  %690 = vmatprep.subr.mxu0 0.0
  %691 = vmatpush1.msra.mxu0 0.0
  %692 = vmatprep.subr.mxu0 0.0
  %693 = vmatpush1.msra.mxu0 0.0
  %694 = vmatprep.subr.mxu0 0.0
  %695 = vmatpush1.msra.mxu0 0.0
  %696 = vmatprep.subr.mxu0 0.0
  %697 = vmatpush1.msra.mxu0 0.0
  %698 = vmatprep.subr.mxu0 0.0
  %699 = vmatpush1.msra.mxu0 0.0
  %700 = vmatprep.subr.mxu0 0.0
  %701 = vmatpush1.msra.mxu0 0.0
  %702 = vmatprep.subr.mxu0 0.0
  %703 = vmatpush1.msra.mxu0 0.0
  %704 = vmatprep.subr.mxu0 0.0
  %705 = vmatpush1.msra.mxu0 0.0
  %706 = vmatprep.subr.mxu0 0.0
  %707 = vmatpush1.msra.mxu0 0.0
  %708 = vmatprep.subr.mxu0 0.0
  %709 = vmatpush1.msra.mxu0 0.0
  %710 = vmatprep.subr.mxu0 0.0
  %711 = vmatpush1.msra.mxu0 0.0
  %712 = vmatprep.subr.mxu0 0.0
  %713 = vmatpush1.msra.mxu0 0.0
  %714 = vmatprep.subr.mxu0 0.0
  %715 = vmatpush1.msra.mxu0 0.0
  %716 = vmatprep.subr.mxu0 0.0
  %717 = vmatpush1.msra.mxu0 0.0
  %718 = vmatprep.subr.mxu0 0.0
  %719 = vmatpush1.msra.mxu0 0.0
  %720 = vmatprep.mubr.f32.mxu0 0.0
  %721 = vmatmul.mubr.f32.gmra.mrb[0].mxu0 %v532
  %v722 = vpop.f32.mrb[0].mxu0
  %v723 = vadd.f32 0.0, %v722
  %v724 = vpop.f32.mrb[0].mxu0
  %725 = vdwg.mxu0
  %v726 = vadd.f32 %v534, %v652
  %v727 = vadd.f32 %v535, %v654
  %v728 = vxor.u32 %v726, 2147483648
  %v729 = vxor.u32 %v727, 2147483648
  %v730 = vmul.f32 %v728, 1.442695
  %v731 = vpow.pop %v730
  %v732 = vmul.f32 %v729, 1.442695
  %v733 = vpow.pop %v732
  %v734 = vadd.f32 %v731, 1.0
  %v735 = vadd.f32 %v733, 1.0
  %v736 = vrcp.pop %v734
  %v737 = vmul.f32 1.0, %v736
  %v738 = vrcp.pop %v735
  %v739 = vmul.f32 1.0, %v738
  %v740 = vadd.f32 %v723, %v79
  %v741 = vmul.f32 %v737, %v740
  %v742 = vadd.f32 %v536, %v741
  %v743 = vtanh.pop %v742
  %v744 = vsub.f32 1.0, %v739
  %v745 = vmul.f32 %v744, %v743
  %v746 = vmul.f32 %v739, %v532
  %v747 = vadd.f32 %v745, %v746
  %s748 = sadd.s32 %s81, 2
  %v749 = vstv %s748
  %vm750 = vcmp.lt.s32.totalorder %v749, %v73
  %v751 = vsel %vm750, 1, 0
  %752 = vset.pattern.permute.xlu0 0
  %753 = vperm.xlu0 %752, %v751
  %v754 = vpop.permute.xlu0 %753
  %vm755 = vcmp.eq.s32.totalorder %v754, 1
  %v756 = vsel %vm755, %v747, %v532
  %757 = vst [vmem:[#allocation2] sm:$0xff] %v756
  %v758 = vld [vmem:[#allocation2] sm:$0xff]
  %s759 = scalar_lea.vmem %s1, 72
  %v760 = vld [vmem:[%s759] sm:$0xff]
  %v761 = vld [vmem:[%s759 + $0x8] sm:$0xff]
  %v762 = vld [vmem:[%s759 + $0x10] sm:$0xff]
  %v763 = vld [vmem:[%s3] sm:$0xff]
  %v764 = vld [vmem:[%s3 + $0x8] sm:$0xff]
  %v765 = vld [vmem:[%s3 + $0x10] sm:$0xff]
  %v766 = vld [vmem:[%s3 + $0x18] sm:$0xff]
  %v767 = vld [vmem:[%s3 + $0x20] sm:$0xff]
  %v768 = vld [vmem:[%s3 + $0x28] sm:$0xff]
  %v769 = vld [vmem:[%s3 + $0x30] sm:$0xff]
  %v770 = vld [vmem:[%s3 + $0x38] sm:$0xff]
  %v771 = vld [vmem:[%s3 + $0x40] sm:$0xff]
  %v772 = vld [vmem:[%s3 + $0x48] sm:$0xff]
  %v773 = vld [vmem:[%s3 + $0x50] sm:$0xff]
  %v774 = vld [vmem:[%s3 + $0x58] sm:$0xff]
  %v775 = vld [vmem:[%s3 + $0x60] sm:$0xff]
  %v776 = vld [vmem:[%s3 + $0x68] sm:$0xff]
  %v777 = vld [vmem:[%s3 + $0x70] sm:$0xff]
  %v778 = vld [vmem:[%s3 + $0x78] sm:$0xff]
  %v779 = vld [vmem:[%s3 + $0x80] sm:$0xff]
  %v780 = vld [vmem:[%s3 + $0x88] sm:$0xff]
  %v781 = vld [vmem:[%s3 + $0x90] sm:$0xff]
  %v782 = vld [vmem:[%s3 + $0x98] sm:$0xff]
  %v783 = vld [vmem:[%s3 + $0xa0] sm:$0xff]
  %v784 = vld [vmem:[%s3 + $0xa8] sm:$0xff]
  %v785 = vld [vmem:[%s3 + $0xb0] sm:$0xff]
  %v786 = vld [vmem:[%s3 + $0xb8] sm:$0xff]
  %v787 = vld [vmem:[%s3 + $0xc0] sm:$0xff]
  %v788 = vld [vmem:[%s3 + $0xc8] sm:$0xff]
  %v789 = vld [vmem:[%s3 + $0xd0] sm:$0xff]
  %v790 = vld [vmem:[%s3 + $0xd8] sm:$0xff]
  %v791 = vld [vmem:[%s3 + $0xe0] sm:$0xff]
  %v792 = vld [vmem:[%s3 + $0xe8] sm:$0xff]
  %v793 = vld [vmem:[%s3 + $0xf0] sm:$0xff]
  %v794 = vld [vmem:[%s3 + $0xf8] sm:$0xff]
  %v795 = vld [vmem:[%s3 + $0x100] sm:$0xff]
  %v796 = vld [vmem:[%s3 + $0x108] sm:$0xff]
  %v797 = vld [vmem:[%s3 + $0x110] sm:$0xff]
  %v798 = vld [vmem:[%s3 + $0x118] sm:$0xff]
  %v799 = vld [vmem:[%s3 + $0x120] sm:$0xff]
  %v800 = vld [vmem:[%s3 + $0x128] sm:$0xff]
  %v801 = vld [vmem:[%s3 + $0x130] sm:$0xff]
  %v802 = vld [vmem:[%s3 + $0x138] sm:$0xff]
  %v803 = vld [vmem:[%s3 + $0x140] sm:$0xff]
  %v804 = vld [vmem:[%s3 + $0x148] sm:$0xff]
  %v805 = vld [vmem:[%s3 + $0x150] sm:$0xff]
  %v806 = vld [vmem:[%s3 + $0x158] sm:$0xff]
  %v807 = vld [vmem:[%s3 + $0x160] sm:$0xff]
  %v808 = vld [vmem:[%s3 + $0x168] sm:$0xff]
  %v809 = vld [vmem:[%s3 + $0x170] sm:$0xff]
  %v810 = vld [vmem:[%s3 + $0x178] sm:$0xff]
  %811 = vmatprep.subr.mxu0 %v764
  %812 = vmatpush1.msra.mxu0 %v763
  %813 = vmatprep.subr.mxu0 %v767
  %814 = vmatpush1.msra.mxu0 %v766
  %815 = vmatprep.subr.mxu0 %v770
  %816 = vmatpush1.msra.mxu0 %v769
  %817 = vmatprep.subr.mxu0 %v773
  %818 = vmatpush1.msra.mxu0 %v772
  %819 = vmatprep.subr.mxu0 %v776
  %820 = vmatpush1.msra.mxu0 %v775
  %821 = vmatprep.subr.mxu0 %v779
  %822 = vmatpush1.msra.mxu0 %v778
  %823 = vmatprep.subr.mxu0 %v782
  %824 = vmatpush1.msra.mxu0 %v781
  %825 = vmatprep.subr.mxu0 %v785
  %826 = vmatpush1.msra.mxu0 %v784
  %827 = vmatprep.subr.mxu0 %v788
  %828 = vmatpush1.msra.mxu0 %v787
  %829 = vmatprep.subr.mxu0 %v791
  %830 = vmatpush1.msra.mxu0 %v790
  %831 = vmatprep.subr.mxu0 %v794
  %832 = vmatpush1.msra.mxu0 %v793
  %833 = vmatprep.subr.mxu0 %v797
  %834 = vmatpush1.msra.mxu0 %v796
  %835 = vmatprep.subr.mxu0 %v800
  %836 = vmatpush1.msra.mxu0 %v799
  %837 = vmatprep.subr.mxu0 %v803
  %838 = vmatpush1.msra.mxu0 %v802
  %839 = vmatprep.subr.mxu0 %v806
  %840 = vmatpush1.msra.mxu0 %v805
  %841 = vmatprep.subr.mxu0 %v809
  %842 = vmatpush1.msra.mxu0 %v808
  %843 = vmatprep.subr.mxu0 0.0
  %844 = vmatpush1.msra.mxu0 0.0
  %845 = vmatprep.subr.mxu0 0.0
  %846 = vmatpush1.msra.mxu0 0.0
  %847 = vmatprep.subr.mxu0 0.0
  %848 = vmatpush1.msra.mxu0 0.0
  %849 = vmatprep.subr.mxu0 0.0
  %850 = vmatpush1.msra.mxu0 0.0
  %851 = vmatprep.subr.mxu0 0.0
  %852 = vmatpush1.msra.mxu0 0.0
  %853 = vmatprep.subr.mxu0 0.0
  %854 = vmatpush1.msra.mxu0 0.0
  %855 = vmatprep.subr.mxu0 0.0
  %856 = vmatpush1.msra.mxu0 0.0
  %857 = vmatprep.subr.mxu0 0.0
  %858 = vmatpush1.msra.mxu0 0.0
  %859 = vmatprep.subr.mxu0 0.0
  %860 = vmatpush1.msra.mxu0 0.0
  %861 = vmatprep.subr.mxu0 0.0
  %862 = vmatpush1.msra.mxu0 0.0
  %863 = vmatprep.subr.mxu0 0.0
  %864 = vmatpush1.msra.mxu0 0.0
  %865 = vmatprep.subr.mxu0 0.0
  %866 = vmatpush1.msra.mxu0 0.0
  %867 = vmatprep.subr.mxu0 0.0
  %868 = vmatpush1.msra.mxu0 0.0
  %869 = vmatprep.subr.mxu0 0.0
  %870 = vmatpush1.msra.mxu0 0.0
  %871 = vmatprep.subr.mxu0 0.0
  %872 = vmatpush1.msra.mxu0 0.0
  %873 = vmatprep.subr.mxu0 0.0
  %874 = vmatpush1.msra.mxu0 0.0
  %875 = vmatprep.mubr.f32.mxu0 0.0
  %876 = vmatmul.mubr.f32.gmra.mrb[0].mxu0 %v758
  %v877 = vpop.f32.mrb[0].mxu0
  %v878 = vadd.f32 0.0, %v877
  %v879 = vpop.f32.mrb[0].mxu0
  %v880 = vadd.f32 0.0, %v879
  %881 = vdwg.mxu0
  %882 = vmatprep.subr.mxu0 0.0
  %883 = vmatpush1.msra.mxu0 %v765
  %884 = vmatprep.subr.mxu0 0.0
  %885 = vmatpush1.msra.mxu0 %v768
  %886 = vmatprep.subr.mxu0 0.0
  %887 = vmatpush1.msra.mxu0 %v771
  %888 = vmatprep.subr.mxu0 0.0
  %889 = vmatpush1.msra.mxu0 %v774
  %890 = vmatprep.subr.mxu0 0.0
  %891 = vmatpush1.msra.mxu0 %v777
  %892 = vmatprep.subr.mxu0 0.0
  %893 = vmatpush1.msra.mxu0 %v780
  %894 = vmatprep.subr.mxu0 0.0
  %895 = vmatpush1.msra.mxu0 %v783
  %896 = vmatprep.subr.mxu0 0.0
  %897 = vmatpush1.msra.mxu0 %v786
  %898 = vmatprep.subr.mxu0 0.0
  %899 = vmatpush1.msra.mxu0 %v789
  %900 = vmatprep.subr.mxu0 0.0
  %901 = vmatpush1.msra.mxu0 %v792
  %902 = vmatprep.subr.mxu0 0.0
  %903 = vmatpush1.msra.mxu0 %v795
  %904 = vmatprep.subr.mxu0 0.0
  %905 = vmatpush1.msra.mxu0 %v798
  %906 = vmatprep.subr.mxu0 0.0
  %907 = vmatpush1.msra.mxu0 %v801
  %908 = vmatprep.subr.mxu0 0.0
  %909 = vmatpush1.msra.mxu0 %v804
  %910 = vmatprep.subr.mxu0 0.0
  %911 = vmatpush1.msra.mxu0 %v807
  %912 = vmatprep.subr.mxu0 0.0
  %913 = vmatpush1.msra.mxu0 %v810
  %914 = vmatprep.subr.mxu0 0.0
  %915 = vmatpush1.msra.mxu0 0.0
  %916 = vmatprep.subr.mxu0 0.0
  %917 = vmatpush1.msra.mxu0 0.0
  %918 = vmatprep.subr.mxu0 0.0
  %919 = vmatpush1.msra.mxu0 0.0
  %920 = vmatprep.subr.mxu0 0.0
  %921 = vmatpush1.msra.mxu0 0.0
  %922 = vmatprep.subr.mxu0 0.0
  %923 = vmatpush1.msra.mxu0 0.0
  %924 = vmatprep.subr.mxu0 0.0
  %925 = vmatpush1.msra.mxu0 0.0
  %926 = vmatprep.subr.mxu0 0.0
  %927 = vmatpush1.msra.mxu0 0.0
  %928 = vmatprep.subr.mxu0 0.0
  %929 = vmatpush1.msra.mxu0 0.0
  %930 = vmatprep.subr.mxu0 0.0
  %931 = vmatpush1.msra.mxu0 0.0
  %932 = vmatprep.subr.mxu0 0.0
  %933 = vmatpush1.msra.mxu0 0.0
  %934 = vmatprep.subr.mxu0 0.0
  %935 = vmatpush1.msra.mxu0 0.0
  %936 = vmatprep.subr.mxu0 0.0
  %937 = vmatpush1.msra.mxu0 0.0
  %938 = vmatprep.subr.mxu0 0.0
  %939 = vmatpush1.msra.mxu0 0.0
  %940 = vmatprep.subr.mxu0 0.0
  %941 = vmatpush1.msra.mxu0 0.0
  %942 = vmatprep.subr.mxu0 0.0
  %943 = vmatpush1.msra.mxu0 0.0
  %944 = vmatprep.subr.mxu0 0.0
  %945 = vmatpush1.msra.mxu0 0.0
  %946 = vmatprep.mubr.f32.mxu0 0.0
  %947 = vmatmul.mubr.f32.gmra.mrb[0].mxu0 %v758
  %v948 = vpop.f32.mrb[0].mxu0
  %v949 = vadd.f32 0.0, %v948
  %v950 = vpop.f32.mrb[0].mxu0
  %951 = vdwg.mxu0
  %v952 = vadd.f32 %v760, %v878
  %v953 = vadd.f32 %v761, %v880
  %v954 = vxor.u32 %v952, 2147483648
  %v955 = vxor.u32 %v953, 2147483648
  %v956 = vmul.f32 %v954, 1.442695
  %v957 = vpow.pop %v956
  %v958 = vmul.f32 %v955, 1.442695
  %v959 = vpow.pop %v958
  %v960 = vadd.f32 %v957, 1.0
  %v961 = vadd.f32 %v959, 1.0
  %v962 = vrcp.pop %v960
  %v963 = vmul.f32 1.0, %v962
  %v964 = vrcp.pop %v961
  %v965 = vmul.f32 1.0, %v964
  %v966 = vadd.f32 %v949, %v79
  %v967 = vmul.f32 %v963, %v966
  %v968 = vadd.f32 %v762, %v967
  %v969 = vtanh.pop %v968
  %v970 = vsub.f32 1.0, %v965
  %v971 = vmul.f32 %v970, %v969
  %v972 = vmul.f32 %v965, %v758
  %v973 = vadd.f32 %v971, %v972
  %s974 = sadd.s32 %s81, 3
  %v975 = vstv %s974
  %vm976 = vcmp.lt.s32.totalorder %v975, %v73
  %v977 = vsel %vm976, 1, 0
  %978 = vset.pattern.permute.xlu0 0
  %979 = vperm.xlu0 %978, %v977
  %v980 = vpop.permute.xlu0 %979
  %vm981 = vcmp.eq.s32.totalorder %v980, 1
  %v982 = vsel %vm981, %v973, %v758
  %983 = vst [vmem:[#allocation2] sm:$0xff] %v982
  %v984 = vld [vmem:[#allocation2] sm:$0xff]
  %s985 = scalar_lea.vmem %s1, 96
  %v986 = vld [vmem:[%s985] sm:$0xff]
  %v987 = vld [vmem:[%s985 + $0x8] sm:$0xff]
  %v988 = vld [vmem:[%s985 + $0x10] sm:$0xff]
  %v989 = vld [vmem:[%s3] sm:$0xff]
  %v990 = vld [vmem:[%s3 + $0x8] sm:$0xff]
  %v991 = vld [vmem:[%s3 + $0x10] sm:$0xff]
  %v992 = vld [vmem:[%s3 + $0x18] sm:$0xff]
  %v993 = vld [vmem:[%s3 + $0x20] sm:$0xff]
  %v994 = vld [vmem:[%s3 + $0x28] sm:$0xff]
  %v995 = vld [vmem:[%s3 + $0x30] sm:$0xff]
  %v996 = vld [vmem:[%s3 + $0x38] sm:$0xff]
  %v997 = vld [vmem:[%s3 + $0x40] sm:$0xff]
  %v998 = vld [vmem:[%s3 + $0x48] sm:$0xff]
  %v999 = vld [vmem:[%s3 + $0x50] sm:$0xff]
  %v1000 = vld [vmem:[%s3 + $0x58] sm:$0xff]
  %v1001 = vld [vmem:[%s3 + $0x60] sm:$0xff]
  %v1002 = vld [vmem:[%s3 + $0x68] sm:$0xff]
  %v1003 = vld [vmem:[%s3 + $0x70] sm:$0xff]
  %v1004 = vld [vmem:[%s3 + $0x78] sm:$0xff]
  %v1005 = vld [vmem:[%s3 + $0x80] sm:$0xff]
  %v1006 = vld [vmem:[%s3 + $0x88] sm:$0xff]
  %v1007 = vld [vmem:[%s3 + $0x90] sm:$0xff]
  %v1008 = vld [vmem:[%s3 + $0x98] sm:$0xff]
  %v1009 = vld [vmem:[%s3 + $0xa0] sm:$0xff]
  %v1010 = vld [vmem:[%s3 + $0xa8] sm:$0xff]
  %v1011 = vld [vmem:[%s3 + $0xb0] sm:$0xff]
  %v1012 = vld [vmem:[%s3 + $0xb8] sm:$0xff]
  %v1013 = vld [vmem:[%s3 + $0xc0] sm:$0xff]
  %v1014 = vld [vmem:[%s3 + $0xc8] sm:$0xff]
  %v1015 = vld [vmem:[%s3 + $0xd0] sm:$0xff]
  %v1016 = vld [vmem:[%s3 + $0xd8] sm:$0xff]
  %v1017 = vld [vmem:[%s3 + $0xe0] sm:$0xff]
  %v1018 = vld [vmem:[%s3 + $0xe8] sm:$0xff]
  %v1019 = vld [vmem:[%s3 + $0xf0] sm:$0xff]
  %v1020 = vld [vmem:[%s3 + $0xf8] sm:$0xff]
  %v1021 = vld [vmem:[%s3 + $0x100] sm:$0xff]
  %v1022 = vld [vmem:[%s3 + $0x108] sm:$0xff]
  %v1023 = vld [vmem:[%s3 + $0x110] sm:$0xff]
  %v1024 = vld [vmem:[%s3 + $0x118] sm:$0xff]
  %v1025 = vld [vmem:[%s3 + $0x120] sm:$0xff]
  %v1026 = vld [vmem:[%s3 + $0x128] sm:$0xff]
  %v1027 = vld [vmem:[%s3 + $0x130] sm:$0xff]
  %v1028 = vld [vmem:[%s3 + $0x138] sm:$0xff]
  %v1029 = vld [vmem:[%s3 + $0x140] sm:$0xff]
  %v1030 = vld [vmem:[%s3 + $0x148] sm:$0xff]
  %v1031 = vld [vmem:[%s3 + $0x150] sm:$0xff]
  %v1032 = vld [vmem:[%s3 + $0x158] sm:$0xff]
  %v1033 = vld [vmem:[%s3 + $0x160] sm:$0xff]
  %v1034 = vld [vmem:[%s3 + $0x168] sm:$0xff]
  %v1035 = vld [vmem:[%s3 + $0x170] sm:$0xff]
  %v1036 = vld [vmem:[%s3 + $0x178] sm:$0xff]
  %1037 = vmatprep.subr.mxu0 %v990
  %1038 = vmatpush1.msra.mxu0 %v989
  %1039 = vmatprep.subr.mxu0 %v993
  %1040 = vmatpush1.msra.mxu0 %v992
  %1041 = vmatprep.subr.mxu0 %v996
  %1042 = vmatpush1.msra.mxu0 %v995
  %1043 = vmatprep.subr.mxu0 %v999
  %1044 = vmatpush1.msra.mxu0 %v998
  %1045 = vmatprep.subr.mxu0 %v1002
  %1046 = vmatpush1.msra.mxu0 %v1001
  %1047 = vmatprep.subr.mxu0 %v1005
  %1048 = vmatpush1.msra.mxu0 %v1004
  %1049 = vmatprep.subr.mxu0 %v1008
  %1050 = vmatpush1.msra.mxu0 %v1007
  %1051 = vmatprep.subr.mxu0 %v1011
  %1052 = vmatpush1.msra.mxu0 %v1010
  %1053 = vmatprep.subr.mxu0 %v1014
  %1054 = vmatpush1.msra.mxu0 %v1013
  %1055 = vmatprep.subr.mxu0 %v1017
  %1056 = vmatpush1.msra.mxu0 %v1016
  %1057 = vmatprep.subr.mxu0 %v1020
  %1058 = vmatpush1.msra.mxu0 %v1019
  %1059 = vmatprep.subr.mxu0 %v1023
  %1060 = vmatpush1.msra.mxu0 %v1022
  %1061 = vmatprep.subr.mxu0 %v1026
  %1062 = vmatpush1.msra.mxu0 %v1025
  %1063 = vmatprep.subr.mxu0 %v1029
  %1064 = vmatpush1.msra.mxu0 %v1028
  %1065 = vmatprep.subr.mxu0 %v1032
  %1066 = vmatpush1.msra.mxu0 %v1031
  %1067 = vmatprep.subr.mxu0 %v1035
  %1068 = vmatpush1.msra.mxu0 %v1034
  %1069 = vmatprep.subr.mxu0 0.0
  %1070 = vmatpush1.msra.mxu0 0.0
  %1071 = vmatprep.subr.mxu0 0.0
  %1072 = vmatpush1.msra.mxu0 0.0
  %1073 = vmatprep.subr.mxu0 0.0
  %1074 = vmatpush1.msra.mxu0 0.0
  %1075 = vmatprep.subr.mxu0 0.0
  %1076 = vmatpush1.msra.mxu0 0.0
  %1077 = vmatprep.subr.mxu0 0.0
  %1078 = vmatpush1.msra.mxu0 0.0
  %1079 = vmatprep.subr.mxu0 0.0
  %1080 = vmatpush1.msra.mxu0 0.0
  %1081 = vmatprep.subr.mxu0 0.0
  %1082 = vmatpush1.msra.mxu0 0.0
  %1083 = vmatprep.subr.mxu0 0.0
  %1084 = vmatpush1.msra.mxu0 0.0
  %1085 = vmatprep.subr.mxu0 0.0
  %1086 = vmatpush1.msra.mxu0 0.0
  %1087 = vmatprep.subr.mxu0 0.0
  %1088 = vmatpush1.msra.mxu0 0.0
  %1089 = vmatprep.subr.mxu0 0.0
  %1090 = vmatpush1.msra.mxu0 0.0
  %1091 = vmatprep.subr.mxu0 0.0
  %1092 = vmatpush1.msra.mxu0 0.0
  %1093 = vmatprep.subr.mxu0 0.0
  %1094 = vmatpush1.msra.mxu0 0.0
  %1095 = vmatprep.subr.mxu0 0.0
  %1096 = vmatpush1.msra.mxu0 0.0
  %1097 = vmatprep.subr.mxu0 0.0
  %1098 = vmatpush1.msra.mxu0 0.0
  %1099 = vmatprep.subr.mxu0 0.0
  %1100 = vmatpush1.msra.mxu0 0.0
  %1101 = vmatprep.mubr.f32.mxu0 0.0
  %1102 = vmatmul.mubr.f32.gmra.mrb[0].mxu0 %v984
  %v1103 = vpop.f32.mrb[0].mxu0
  %v1104 = vadd.f32 0.0, %v1103
  %v1105 = vpop.f32.mrb[0].mxu0
  %v1106 = vadd.f32 0.0, %v1105
  %1107 = vdwg.mxu0
  %1108 = vmatprep.subr.mxu0 0.0
  %1109 = vmatpush1.msra.mxu0 %v991
  %1110 = vmatprep.subr.mxu0 0.0
  %1111 = vmatpush1.msra.mxu0 %v994
  %1112 = vmatprep.subr.mxu0 0.0
  %1113 = vmatpush1.msra.mxu0 %v997
  %1114 = vmatprep.subr.mxu0 0.0
  %1115 = vmatpush1.msra.mxu0 %v1000
  %1116 = vmatprep.subr.mxu0 0.0
  %1117 = vmatpush1.msra.mxu0 %v1003
  %1118 = vmatprep.subr.mxu0 0.0
  %1119 = vmatpush1.msra.mxu0 %v1006
  %1120 = vmatprep.subr.mxu0 0.0
  %1121 = vmatpush1.msra.mxu0 %v1009
  %1122 = vmatprep.subr.mxu0 0.0
  %1123 = vmatpush1.msra.mxu0 %v1012
  %1124 = vmatprep.subr.mxu0 0.0
  %1125 = vmatpush1.msra.mxu0 %v1015
  %1126 = vmatprep.subr.mxu0 0.0
  %1127 = vmatpush1.msra.mxu0 %v1018
  %1128 = vmatprep.subr.mxu0 0.0
  %1129 = vmatpush1.msra.mxu0 %v1021
  %1130 = vmatprep.subr.mxu0 0.0
  %1131 = vmatpush1.msra.mxu0 %v1024
  %1132 = vmatprep.subr.mxu0 0.0
  %1133 = vmatpush1.msra.mxu0 %v1027
  %1134 = vmatprep.subr.mxu0 0.0
  %1135 = vmatpush1.msra.mxu0 %v1030
  %1136 = vmatprep.subr.mxu0 0.0
  %1137 = vmatpush1.msra.mxu0 %v1033
  %1138 = vmatprep.subr.mxu0 0.0
  %1139 = vmatpush1.msra.mxu0 %v1036
  %1140 = vmatprep.subr.mxu0 0.0
  %1141 = vmatpush1.msra.mxu0 0.0
  %1142 = vmatprep.subr.mxu0 0.0
  %1143 = vmatpush1.msra.mxu0 0.0
  %1144 = vmatprep.subr.mxu0 0.0
  %1145 = vmatpush1.msra.mxu0 0.0
  %1146 = vmatprep.subr.mxu0 0.0
  %1147 = vmatpush1.msra.mxu0 0.0
  %1148 = vmatprep.subr.mxu0 0.0
  %1149 = vmatpush1.msra.mxu0 0.0
  %1150 = vmatprep.subr.mxu0 0.0
  %1151 = vmatpush1.msra.mxu0 0.0
  %1152 = vmatprep.subr.mxu0 0.0
  %1153 = vmatpush1.msra.mxu0 0.0
  %1154 = vmatprep.subr.mxu0 0.0
  %1155 = vmatpush1.msra.mxu0 0.0
  %1156 = vmatprep.subr.mxu0 0.0
  %1157 = vmatpush1.msra.mxu0 0.0
  %1158 = vmatprep.subr.mxu0 0.0
  %1159 = vmatpush1.msra.mxu0 0.0
  %1160 = vmatprep.subr.mxu0 0.0
  %1161 = vmatpush1.msra.mxu0 0.0
  %1162 = vmatprep.subr.mxu0 0.0
  %1163 = vmatpush1.msra.mxu0 0.0
  %1164 = vmatprep.subr.mxu0 0.0
  %1165 = vmatpush1.msra.mxu0 0.0
  %1166 = vmatprep.subr.mxu0 0.0
  %1167 = vmatpush1.msra.mxu0 0.0
  %1168 = vmatprep.subr.mxu0 0.0
  %1169 = vmatpush1.msra.mxu0 0.0
  %1170 = vmatprep.subr.mxu0 0.0
  %1171 = vmatpush1.msra.mxu0 0.0
  %1172 = vmatprep.mubr.f32.mxu0 0.0
  %1173 = vmatmul.mubr.f32.gmra.mrb[0].mxu0 %v984
  %v1174 = vpop.f32.mrb[0].mxu0
  %v1175 = vadd.f32 0.0, %v1174
  %v1176 = vpop.f32.mrb[0].mxu0
  %1177 = vdwg.mxu0
  %v1178 = vadd.f32 %v986, %v1104
  %v1179 = vadd.f32 %v987, %v1106
  %v1180 = vxor.u32 %v1178, 2147483648
  %v1181 = vxor.u32 %v1179, 2147483648
  %v1182 = vmul.f32 %v1180, 1.442695
  %v1183 = vpow.pop %v1182
  %v1184 = vmul.f32 %v1181, 1.442695
  %v1185 = vpow.pop %v1184
  %v1186 = vadd.f32 %v1183, 1.0
  %v1187 = vadd.f32 %v1185, 1.0
  %v1188 = vrcp.pop %v1186
  %v1189 = vmul.f32 1.0, %v1188
  %v1190 = vrcp.pop %v1187
  %v1191 = vmul.f32 1.0, %v1190
  %v1192 = vadd.f32 %v1175, %v79
  %v1193 = vmul.f32 %v1189, %v1192
  %v1194 = vadd.f32 %v988, %v1193
  %v1195 = vtanh.pop %v1194
  %v1196 = vsub.f32 1.0, %v1191
  %v1197 = vmul.f32 %v1196, %v1195
  %v1198 = vmul.f32 %v1191, %v984
  %v1199 = vadd.f32 %v1197, %v1198
  %s1200 = sadd.s32 %s81, 4
  %v1201 = vstv %s1200
  %vm1202 = vcmp.lt.s32.totalorder %v1201, %v73
  %v1203 = vsel %vm1202, 1, 0
  %1204 = vset.pattern.permute.xlu0 0
  %1205 = vperm.xlu0 %1204, %v1203
  %v1206 = vpop.permute.xlu0 %1205
  %vm1207 = vcmp.eq.s32.totalorder %v1206, 1
  %v1208 = vsel %vm1207, %v1199, %v984
  %1209 = vst [vmem:[#allocation2] sm:$0xff] %v1208
  %v1210 = vld [vmem:[#allocation2] sm:$0xff]
  %s1211 = scalar_lea.vmem %s1, 120
  %v1212 = vld [vmem:[%s1211] sm:$0xff]
  %v1213 = vld [vmem:[%s1211 + $0x8] sm:$0xff]
  %v1214 = vld [vmem:[%s1211 + $0x10] sm:$0xff]
  %v1215 = vld [vmem:[%s3] sm:$0xff]
  %v1216 = vld [vmem:[%s3 + $0x8] sm:$0xff]
  %v1217 = vld [vmem:[%s3 + $0x10] sm:$0xff]
  %v1218 = vld [vmem:[%s3 + $0x18] sm:$0xff]
  %v1219 = vld [vmem:[%s3 + $0x20] sm:$0xff]
  %v1220 = vld [vmem:[%s3 + $0x28] sm:$0xff]
  %v1221 = vld [vmem:[%s3 + $0x30] sm:$0xff]
  %v1222 = vld [vmem:[%s3 + $0x38] sm:$0xff]
  %v1223 = vld [vmem:[%s3 + $0x40] sm:$0xff]
  %v1224 = vld [vmem:[%s3 + $0x48] sm:$0xff]
  %v1225 = vld [vmem:[%s3 + $0x50] sm:$0xff]
  %v1226 = vld [vmem:[%s3 + $0x58] sm:$0xff]
  %v1227 = vld [vmem:[%s3 + $0x60] sm:$0xff]
  %v1228 = vld [vmem:[%s3 + $0x68] sm:$0xff]
  %v1229 = vld [vmem:[%s3 + $0x70] sm:$0xff]
  %v1230 = vld [vmem:[%s3 + $0x78] sm:$0xff]
  %v1231 = vld [vmem:[%s3 + $0x80] sm:$0xff]
  %v1232 = vld [vmem:[%s3 + $0x88] sm:$0xff]
  %v1233 = vld [vmem:[%s3 + $0x90] sm:$0xff]
  %v1234 = vld [vmem:[%s3 + $0x98] sm:$0xff]
  %v1235 = vld [vmem:[%s3 + $0xa0] sm:$0xff]
  %v1236 = vld [vmem:[%s3 + $0xa8] sm:$0xff]
  %v1237 = vld [vmem:[%s3 + $0xb0] sm:$0xff]
  %v1238 = vld [vmem:[%s3 + $0xb8] sm:$0xff]
  %v1239 = vld [vmem:[%s3 + $0xc0] sm:$0xff]
  %v1240 = vld [vmem:[%s3 + $0xc8] sm:$0xff]
  %v1241 = vld [vmem:[%s3 + $0xd0] sm:$0xff]
  %v1242 = vld [vmem:[%s3 + $0xd8] sm:$0xff]
  %v1243 = vld [vmem:[%s3 + $0xe0] sm:$0xff]
  %v1244 = vld [vmem:[%s3 + $0xe8] sm:$0xff]
  %v1245 = vld [vmem:[%s3 + $0xf0] sm:$0xff]
  %v1246 = vld [vmem:[%s3 + $0xf8] sm:$0xff]
  %v1247 = vld [vmem:[%s3 + $0x100] sm:$0xff]
  %v1248 = vld [vmem:[%s3 + $0x108] sm:$0xff]
  %v1249 = vld [vmem:[%s3 + $0x110] sm:$0xff]
  %v1250 = vld [vmem:[%s3 + $0x118] sm:$0xff]
  %v1251 = vld [vmem:[%s3 + $0x120] sm:$0xff]
  %v1252 = vld [vmem:[%s3 + $0x128] sm:$0xff]
  %v1253 = vld [vmem:[%s3 + $0x130] sm:$0xff]
  %v1254 = vld [vmem:[%s3 + $0x138] sm:$0xff]
  %v1255 = vld [vmem:[%s3 + $0x140] sm:$0xff]
  %v1256 = vld [vmem:[%s3 + $0x148] sm:$0xff]
  %v1257 = vld [vmem:[%s3 + $0x150] sm:$0xff]
  %v1258 = vld [vmem:[%s3 + $0x158] sm:$0xff]
  %v1259 = vld [vmem:[%s3 + $0x160] sm:$0xff]
  %v1260 = vld [vmem:[%s3 + $0x168] sm:$0xff]
  %v1261 = vld [vmem:[%s3 + $0x170] sm:$0xff]
  %v1262 = vld [vmem:[%s3 + $0x178] sm:$0xff]
  %1263 = vmatprep.subr.mxu0 %v1216
  %1264 = vmatpush1.msra.mxu0 %v1215
  %1265 = vmatprep.subr.mxu0 %v1219
  %1266 = vmatpush1.msra.mxu0 %v1218
  %1267 = vmatprep.subr.mxu0 %v1222
  %1268 = vmatpush1.msra.mxu0 %v1221
  %1269 = vmatprep.subr.mxu0 %v1225
  %1270 = vmatpush1.msra.mxu0 %v1224
  %1271 = vmatprep.subr.mxu0 %v1228
  %1272 = vmatpush1.msra.mxu0 %v1227
  %1273 = vmatprep.subr.mxu0 %v1231
  %1274 = vmatpush1.msra.mxu0 %v1230
  %1275 = vmatprep.subr.mxu0 %v1234
  %1276 = vmatpush1.msra.mxu0 %v1233
  %1277 = vmatprep.subr.mxu0 %v1237
  %1278 = vmatpush1.msra.mxu0 %v1236
  %1279 = vmatprep.subr.mxu0 %v1240
  %1280 = vmatpush1.msra.mxu0 %v1239
  %1281 = vmatprep.subr.mxu0 %v1243
  %1282 = vmatpush1.msra.mxu0 %v1242
  %1283 = vmatprep.subr.mxu0 %v1246
  %1284 = vmatpush1.msra.mxu0 %v1245
  %1285 = vmatprep.subr.mxu0 %v1249
  %1286 = vmatpush1.msra.mxu0 %v1248
  %1287 = vmatprep.subr.mxu0 %v1252
  %1288 = vmatpush1.msra.mxu0 %v1251
  %1289 = vmatprep.subr.mxu0 %v1255
  %1290 = vmatpush1.msra.mxu0 %v1254
  %1291 = vmatprep.subr.mxu0 %v1258
  %1292 = vmatpush1.msra.mxu0 %v1257
  %1293 = vmatprep.subr.mxu0 %v1261
  %1294 = vmatpush1.msra.mxu0 %v1260
  %1295 = vmatprep.subr.mxu0 0.0
  %1296 = vmatpush1.msra.mxu0 0.0
  %1297 = vmatprep.subr.mxu0 0.0
  %1298 = vmatpush1.msra.mxu0 0.0
  %1299 = vmatprep.subr.mxu0 0.0
  %1300 = vmatpush1.msra.mxu0 0.0
  %1301 = vmatprep.subr.mxu0 0.0
  %1302 = vmatpush1.msra.mxu0 0.0
  %1303 = vmatprep.subr.mxu0 0.0
  %1304 = vmatpush1.msra.mxu0 0.0
  %1305 = vmatprep.subr.mxu0 0.0
  %1306 = vmatpush1.msra.mxu0 0.0
  %1307 = vmatprep.subr.mxu0 0.0
  %1308 = vmatpush1.msra.mxu0 0.0
  %1309 = vmatprep.subr.mxu0 0.0
  %1310 = vmatpush1.msra.mxu0 0.0
  %1311 = vmatprep.subr.mxu0 0.0
  %1312 = vmatpush1.msra.mxu0 0.0
  %1313 = vmatprep.subr.mxu0 0.0
  %1314 = vmatpush1.msra.mxu0 0.0
  %1315 = vmatprep.subr.mxu0 0.0
  %1316 = vmatpush1.msra.mxu0 0.0
  %1317 = vmatprep.subr.mxu0 0.0
  %1318 = vmatpush1.msra.mxu0 0.0
  %1319 = vmatprep.subr.mxu0 0.0
  %1320 = vmatpush1.msra.mxu0 0.0
  %1321 = vmatprep.subr.mxu0 0.0
  %1322 = vmatpush1.msra.mxu0 0.0
  %1323 = vmatprep.subr.mxu0 0.0
  %1324 = vmatpush1.msra.mxu0 0.0
  %1325 = vmatprep.subr.mxu0 0.0
  %1326 = vmatpush1.msra.mxu0 0.0
  %1327 = vmatprep.mubr.f32.mxu0 0.0
  %1328 = vmatmul.mubr.f32.gmra.mrb[0].mxu0 %v1210
  %v1329 = vpop.f32.mrb[0].mxu0
  %v1330 = vadd.f32 0.0, %v1329
  %v1331 = vpop.f32.mrb[0].mxu0
  %v1332 = vadd.f32 0.0, %v1331
  %1333 = vdwg.mxu0
  %1334 = vmatprep.subr.mxu0 0.0
  %1335 = vmatpush1.msra.mxu0 %v1217
  %1336 = vmatprep.subr.mxu0 0.0
  %1337 = vmatpush1.msra.mxu0 %v1220
  %1338 = vmatprep.subr.mxu0 0.0
  %1339 = vmatpush1.msra.mxu0 %v1223
  %1340 = vmatprep.subr.mxu0 0.0
  %1341 = vmatpush1.msra.mxu0 %v1226
  %1342 = vmatprep.subr.mxu0 0.0
  %1343 = vmatpush1.msra.mxu0 %v1229
  %1344 = vmatprep.subr.mxu0 0.0
  %1345 = vmatpush1.msra.mxu0 %v1232
  %1346 = vmatprep.subr.mxu0 0.0
  %1347 = vmatpush1.msra.mxu0 %v1235
  %1348 = vmatprep.subr.mxu0 0.0
  %1349 = vmatpush1.msra.mxu0 %v1238
  %1350 = vmatprep.subr.mxu0 0.0
  %1351 = vmatpush1.msra.mxu0 %v1241
  %1352 = vmatprep.subr.mxu0 0.0
  %1353 = vmatpush1.msra.mxu0 %v1244
  %1354 = vmatprep.subr.mxu0 0.0
  %1355 = vmatpush1.msra.mxu0 %v1247
  %1356 = vmatprep.subr.mxu0 0.0
  %1357 = vmatpush1.msra.mxu0 %v1250
  %1358 = vmatprep.subr.mxu0 0.0
  %1359 = vmatpush1.msra.mxu0 %v1253
  %1360 = vmatprep.subr.mxu0 0.0
  %1361 = vmatpush1.msra.mxu0 %v1256
  %1362 = vmatprep.subr.mxu0 0.0
  %1363 = vmatpush1.msra.mxu0 %v1259
  %1364 = vmatprep.subr.mxu0 0.0
  %1365 = vmatpush1.msra.mxu0 %v1262
  %1366 = vmatprep.subr.mxu0 0.0
  %1367 = vmatpush1.msra.mxu0 0.0
  %1368 = vmatprep.subr.mxu0 0.0
  %1369 = vmatpush1.msra.mxu0 0.0
  %1370 = vmatprep.subr.mxu0 0.0
  %1371 = vmatpush1.msra.mxu0 0.0
  %1372 = vmatprep.subr.mxu0 0.0
  %1373 = vmatpush1.msra.mxu0 0.0
  %1374 = vmatprep.subr.mxu0 0.0
  %1375 = vmatpush1.msra.mxu0 0.0
  %1376 = vmatprep.subr.mxu0 0.0
  %1377 = vmatpush1.msra.mxu0 0.0
  %1378 = vmatprep.subr.mxu0 0.0
  %1379 = vmatpush1.msra.mxu0 0.0
  %1380 = vmatprep.subr.mxu0 0.0
  %1381 = vmatpush1.msra.mxu0 0.0
  %1382 = vmatprep.subr.mxu0 0.0
  %1383 = vmatpush1.msra.mxu0 0.0
  %1384 = vmatprep.subr.mxu0 0.0
  %1385 = vmatpush1.msra.mxu0 0.0
  %1386 = vmatprep.subr.mxu0 0.0
  %1387 = vmatpush1.msra.mxu0 0.0
  %1388 = vmatprep.subr.mxu0 0.0
  %1389 = vmatpush1.msra.mxu0 0.0
  %1390 = vmatprep.subr.mxu0 0.0
  %1391 = vmatpush1.msra.mxu0 0.0
  %1392 = vmatprep.subr.mxu0 0.0
  %1393 = vmatpush1.msra.mxu0 0.0
  %1394 = vmatprep.subr.mxu0 0.0
  %1395 = vmatpush1.msra.mxu0 0.0
  %1396 = vmatprep.subr.mxu0 0.0
  %1397 = vmatpush1.msra.mxu0 0.0
  %1398 = vmatprep.mubr.f32.mxu0 0.0
  %1399 = vmatmul.mubr.f32.gmra.mrb[0].mxu0 %v1210
  %v1400 = vpop.f32.mrb[0].mxu0
  %v1401 = vadd.f32 0.0, %v1400
  %v1402 = vpop.f32.mrb[0].mxu0
  %1403 = vdwg.mxu0
  %v1404 = vadd.f32 %v1212, %v1330
  %v1405 = vadd.f32 %v1213, %v1332
  %v1406 = vxor.u32 %v1404, 2147483648
  %v1407 = vxor.u32 %v1405, 2147483648
  %v1408 = vmul.f32 %v1406, 1.442695
  %v1409 = vpow.pop %v1408
  %v1410 = vmul.f32 %v1407, 1.442695
  %v1411 = vpow.pop %v1410
  %v1412 = vadd.f32 %v1409, 1.0
  %v1413 = vadd.f32 %v1411, 1.0
  %v1414 = vrcp.pop %v1412
  %v1415 = vmul.f32 1.0, %v1414
  %v1416 = vrcp.pop %v1413
  %v1417 = vmul.f32 1.0, %v1416
  %v1418 = vadd.f32 %v1401, %v79
  %v1419 = vmul.f32 %v1415, %v1418
  %v1420 = vadd.f32 %v1214, %v1419
  %v1421 = vtanh.pop %v1420
  %v1422 = vsub.f32 1.0, %v1417
  %v1423 = vmul.f32 %v1422, %v1421
  %v1424 = vmul.f32 %v1417, %v1210
  %v1425 = vadd.f32 %v1423, %v1424
  %s1426 = sadd.s32 %s81, 5
  %v1427 = vstv %s1426
  %vm1428 = vcmp.lt.s32.totalorder %v1427, %v73
  %v1429 = vsel %vm1428, 1, 0
  %1430 = vset.pattern.permute.xlu0 0
  %1431 = vperm.xlu0 %1430, %v1429
  %v1432 = vpop.permute.xlu0 %1431
  %vm1433 = vcmp.eq.s32.totalorder %v1432, 1
  %v1434 = vsel %vm1433, %v1425, %v1210
  %1435 = vst [vmem:[#allocation2] sm:$0xff] %v1434
  %v1436 = vld [vmem:[#allocation2] sm:$0xff]
  %s1437 = scalar_lea.vmem %s1, 144
  %v1438 = vld [vmem:[%s1437] sm:$0xff]
  %v1439 = vld [vmem:[%s1437 + $0x8] sm:$0xff]
  %v1440 = vld [vmem:[%s1437 + $0x10] sm:$0xff]
  %v1441 = vld [vmem:[%s3] sm:$0xff]
  %v1442 = vld [vmem:[%s3 + $0x8] sm:$0xff]
  %v1443 = vld [vmem:[%s3 + $0x10] sm:$0xff]
  %v1444 = vld [vmem:[%s3 + $0x18] sm:$0xff]
  %v1445 = vld [vmem:[%s3 + $0x20] sm:$0xff]
  %v1446 = vld [vmem:[%s3 + $0x28] sm:$0xff]
  %v1447 = vld [vmem:[%s3 + $0x30] sm:$0xff]
  %v1448 = vld [vmem:[%s3 + $0x38] sm:$0xff]
  %v1449 = vld [vmem:[%s3 + $0x40] sm:$0xff]
  %v1450 = vld [vmem:[%s3 + $0x48] sm:$0xff]
  %v1451 = vld [vmem:[%s3 + $0x50] sm:$0xff]
  %v1452 = vld [vmem:[%s3 + $0x58] sm:$0xff]
  %v1453 = vld [vmem:[%s3 + $0x60] sm:$0xff]
  %v1454 = vld [vmem:[%s3 + $0x68] sm:$0xff]
  %v1455 = vld [vmem:[%s3 + $0x70] sm:$0xff]
  %v1456 = vld [vmem:[%s3 + $0x78] sm:$0xff]
  %v1457 = vld [vmem:[%s3 + $0x80] sm:$0xff]
  %v1458 = vld [vmem:[%s3 + $0x88] sm:$0xff]
  %v1459 = vld [vmem:[%s3 + $0x90] sm:$0xff]
  %v1460 = vld [vmem:[%s3 + $0x98] sm:$0xff]
  %v1461 = vld [vmem:[%s3 + $0xa0] sm:$0xff]
  %v1462 = vld [vmem:[%s3 + $0xa8] sm:$0xff]
  %v1463 = vld [vmem:[%s3 + $0xb0] sm:$0xff]
  %v1464 = vld [vmem:[%s3 + $0xb8] sm:$0xff]
  %v1465 = vld [vmem:[%s3 + $0xc0] sm:$0xff]
  %v1466 = vld [vmem:[%s3 + $0xc8] sm:$0xff]
  %v1467 = vld [vmem:[%s3 + $0xd0] sm:$0xff]
  %v1468 = vld [vmem:[%s3 + $0xd8] sm:$0xff]
  %v1469 = vld [vmem:[%s3 + $0xe0] sm:$0xff]
  %v1470 = vld [vmem:[%s3 + $0xe8] sm:$0xff]
  %v1471 = vld [vmem:[%s3 + $0xf0] sm:$0xff]
  %v1472 = vld [vmem:[%s3 + $0xf8] sm:$0xff]
  %v1473 = vld [vmem:[%s3 + $0x100] sm:$0xff]
  %v1474 = vld [vmem:[%s3 + $0x108] sm:$0xff]
  %v1475 = vld [vmem:[%s3 + $0x110] sm:$0xff]
  %v1476 = vld [vmem:[%s3 + $0x118] sm:$0xff]
  %v1477 = vld [vmem:[%s3 + $0x120] sm:$0xff]
  %v1478 = vld [vmem:[%s3 + $0x128] sm:$0xff]
  %v1479 = vld [vmem:[%s3 + $0x130] sm:$0xff]
  %v1480 = vld [vmem:[%s3 + $0x138] sm:$0xff]
  %v1481 = vld [vmem:[%s3 + $0x140] sm:$0xff]
  %v1482 = vld [vmem:[%s3 + $0x148] sm:$0xff]
  %v1483 = vld [vmem:[%s3 + $0x150] sm:$0xff]
  %v1484 = vld [vmem:[%s3 + $0x158] sm:$0xff]
  %v1485 = vld [vmem:[%s3 + $0x160] sm:$0xff]
  %v1486 = vld [vmem:[%s3 + $0x168] sm:$0xff]
  %v1487 = vld [vmem:[%s3 + $0x170] sm:$0xff]
  %v1488 = vld [vmem:[%s3 + $0x178] sm:$0xff]
  %1489 = vmatprep.subr.mxu0 %v1442
  %1490 = vmatpush1.msra.mxu0 %v1441
  %1491 = vmatprep.subr.mxu0 %v1445
  %1492 = vmatpush1.msra.mxu0 %v1444
  %1493 = vmatprep.subr.mxu0 %v1448
  %1494 = vmatpush1.msra.mxu0 %v1447
  %1495 = vmatprep.subr.mxu0 %v1451
  %1496 = vmatpush1.msra.mxu0 %v1450
  %1497 = vmatprep.subr.mxu0 %v1454
  %1498 = vmatpush1.msra.mxu0 %v1453
  %1499 = vmatprep.subr.mxu0 %v1457
  %1500 = vmatpush1.msra.mxu0 %v1456
  %1501 = vmatprep.subr.mxu0 %v1460
  %1502 = vmatpush1.msra.mxu0 %v1459
  %1503 = vmatprep.subr.mxu0 %v1463
  %1504 = vmatpush1.msra.mxu0 %v1462
  %1505 = vmatprep.subr.mxu0 %v1466
  %1506 = vmatpush1.msra.mxu0 %v1465
  %1507 = vmatprep.subr.mxu0 %v1469
  %1508 = vmatpush1.msra.mxu0 %v1468
  %1509 = vmatprep.subr.mxu0 %v1472
  %1510 = vmatpush1.msra.mxu0 %v1471
  %1511 = vmatprep.subr.mxu0 %v1475
  %1512 = vmatpush1.msra.mxu0 %v1474
  %1513 = vmatprep.subr.mxu0 %v1478
  %1514 = vmatpush1.msra.mxu0 %v1477
  %1515 = vmatprep.subr.mxu0 %v1481
  %1516 = vmatpush1.msra.mxu0 %v1480
  %1517 = vmatprep.subr.mxu0 %v1484
  %1518 = vmatpush1.msra.mxu0 %v1483
  %1519 = vmatprep.subr.mxu0 %v1487
  %1520 = vmatpush1.msra.mxu0 %v1486
  %1521 = vmatprep.subr.mxu0 0.0
  %1522 = vmatpush1.msra.mxu0 0.0
  %1523 = vmatprep.subr.mxu0 0.0
  %1524 = vmatpush1.msra.mxu0 0.0
  %1525 = vmatprep.subr.mxu0 0.0
  %1526 = vmatpush1.msra.mxu0 0.0
  %1527 = vmatprep.subr.mxu0 0.0
  %1528 = vmatpush1.msra.mxu0 0.0
  %1529 = vmatprep.subr.mxu0 0.0
  %1530 = vmatpush1.msra.mxu0 0.0
  %1531 = vmatprep.subr.mxu0 0.0
  %1532 = vmatpush1.msra.mxu0 0.0
  %1533 = vmatprep.subr.mxu0 0.0
  %1534 = vmatpush1.msra.mxu0 0.0
  %1535 = vmatprep.subr.mxu0 0.0
  %1536 = vmatpush1.msra.mxu0 0.0
  %1537 = vmatprep.subr.mxu0 0.0
  %1538 = vmatpush1.msra.mxu0 0.0
  %1539 = vmatprep.subr.mxu0 0.0
  %1540 = vmatpush1.msra.mxu0 0.0
  %1541 = vmatprep.subr.mxu0 0.0
  %1542 = vmatpush1.msra.mxu0 0.0
  %1543 = vmatprep.subr.mxu0 0.0
  %1544 = vmatpush1.msra.mxu0 0.0
  %1545 = vmatprep.subr.mxu0 0.0
  %1546 = vmatpush1.msra.mxu0 0.0
  %1547 = vmatprep.subr.mxu0 0.0
  %1548 = vmatpush1.msra.mxu0 0.0
  %1549 = vmatprep.subr.mxu0 0.0
  %1550 = vmatpush1.msra.mxu0 0.0
  %1551 = vmatprep.subr.mxu0 0.0
  %1552 = vmatpush1.msra.mxu0 0.0
  %1553 = vmatprep.mubr.f32.mxu0 0.0
  %1554 = vmatmul.mubr.f32.gmra.mrb[0].mxu0 %v1436
  %v1555 = vpop.f32.mrb[0].mxu0
  %v1556 = vadd.f32 0.0, %v1555
  %v1557 = vpop.f32.mrb[0].mxu0
  %v1558 = vadd.f32 0.0, %v1557
  %1559 = vdwg.mxu0
  %1560 = vmatprep.subr.mxu0 0.0
  %1561 = vmatpush1.msra.mxu0 %v1443
  %1562 = vmatprep.subr.mxu0 0.0
  %1563 = vmatpush1.msra.mxu0 %v1446
  %1564 = vmatprep.subr.mxu0 0.0
  %1565 = vmatpush1.msra.mxu0 %v1449
  %1566 = vmatprep.subr.mxu0 0.0
  %1567 = vmatpush1.msra.mxu0 %v1452
  %1568 = vmatprep.subr.mxu0 0.0
  %1569 = vmatpush1.msra.mxu0 %v1455
  %1570 = vmatprep.subr.mxu0 0.0
  %1571 = vmatpush1.msra.mxu0 %v1458
  %1572 = vmatprep.subr.mxu0 0.0
  %1573 = vmatpush1.msra.mxu0 %v1461
  %1574 = vmatprep.subr.mxu0 0.0
  %1575 = vmatpush1.msra.mxu0 %v1464
  %1576 = vmatprep.subr.mxu0 0.0
  %1577 = vmatpush1.msra.mxu0 %v1467
  %1578 = vmatprep.subr.mxu0 0.0
  %1579 = vmatpush1.msra.mxu0 %v1470
  %1580 = vmatprep.subr.mxu0 0.0
  %1581 = vmatpush1.msra.mxu0 %v1473
  %1582 = vmatprep.subr.mxu0 0.0
  %1583 = vmatpush1.msra.mxu0 %v1476
  %1584 = vmatprep.subr.mxu0 0.0
  %1585 = vmatpush1.msra.mxu0 %v1479
  %1586 = vmatprep.subr.mxu0 0.0
  %1587 = vmatpush1.msra.mxu0 %v1482
  %1588 = vmatprep.subr.mxu0 0.0
  %1589 = vmatpush1.msra.mxu0 %v1485
  %1590 = vmatprep.subr.mxu0 0.0
  %1591 = vmatpush1.msra.mxu0 %v1488
  %1592 = vmatprep.subr.mxu0 0.0
  %1593 = vmatpush1.msra.mxu0 0.0
  %1594 = vmatprep.subr.mxu0 0.0
  %1595 = vmatpush1.msra.mxu0 0.0
  %1596 = vmatprep.subr.mxu0 0.0
  %1597 = vmatpush1.msra.mxu0 0.0
  %1598 = vmatprep.subr.mxu0 0.0
  %1599 = vmatpush1.msra.mxu0 0.0
  %1600 = vmatprep.subr.mxu0 0.0
  %1601 = vmatpush1.msra.mxu0 0.0
  %1602 = vmatprep.subr.mxu0 0.0
  %1603 = vmatpush1.msra.mxu0 0.0
  %1604 = vmatprep.subr.mxu0 0.0
  %1605 = vmatpush1.msra.mxu0 0.0
  %1606 = vmatprep.subr.mxu0 0.0
  %1607 = vmatpush1.msra.mxu0 0.0
  %1608 = vmatprep.subr.mxu0 0.0
  %1609 = vmatpush1.msra.mxu0 0.0
  %1610 = vmatprep.subr.mxu0 0.0
  %1611 = vmatpush1.msra.mxu0 0.0
  %1612 = vmatprep.subr.mxu0 0.0
  %1613 = vmatpush1.msra.mxu0 0.0
  %1614 = vmatprep.subr.mxu0 0.0
  %1615 = vmatpush1.msra.mxu0 0.0
  %1616 = vmatprep.subr.mxu0 0.0
  %1617 = vmatpush1.msra.mxu0 0.0
  %1618 = vmatprep.subr.mxu0 0.0
  %1619 = vmatpush1.msra.mxu0 0.0
  %1620 = vmatprep.subr.mxu0 0.0
  %1621 = vmatpush1.msra.mxu0 0.0
  %1622 = vmatprep.subr.mxu0 0.0
  %1623 = vmatpush1.msra.mxu0 0.0
  %1624 = vmatprep.mubr.f32.mxu0 0.0
  %1625 = vmatmul.mubr.f32.gmra.mrb[0].mxu0 %v1436
  %v1626 = vpop.f32.mrb[0].mxu0
  %v1627 = vadd.f32 0.0, %v1626
  %v1628 = vpop.f32.mrb[0].mxu0
  %1629 = vdwg.mxu0
  %v1630 = vadd.f32 %v1438, %v1556
  %v1631 = vadd.f32 %v1439, %v1558
  %v1632 = vxor.u32 %v1630, 2147483648
  %v1633 = vxor.u32 %v1631, 2147483648
  %v1634 = vmul.f32 %v1632, 1.442695
  %v1635 = vpow.pop %v1634
  %v1636 = vmul.f32 %v1633, 1.442695
  %v1637 = vpow.pop %v1636
  %v1638 = vadd.f32 %v1635, 1.0
  %v1639 = vadd.f32 %v1637, 1.0
  %v1640 = vrcp.pop %v1638
  %v1641 = vmul.f32 1.0, %v1640
  %v1642 = vrcp.pop %v1639
  %v1643 = vmul.f32 1.0, %v1642
  %v1644 = vadd.f32 %v1627, %v79
  %v1645 = vmul.f32 %v1641, %v1644
  %v1646 = vadd.f32 %v1440, %v1645
  %v1647 = vtanh.pop %v1646
  %v1648 = vsub.f32 1.0, %v1643
  %v1649 = vmul.f32 %v1648, %v1647
  %v1650 = vmul.f32 %v1643, %v1436
  %v1651 = vadd.f32 %v1649, %v1650
  %s1652 = sadd.s32 %s81, 6
  %v1653 = vstv %s1652
  %vm1654 = vcmp.lt.s32.totalorder %v1653, %v73
  %v1655 = vsel %vm1654, 1, 0
  %1656 = vset.pattern.permute.xlu0 0
  %1657 = vperm.xlu0 %1656, %v1655
  %v1658 = vpop.permute.xlu0 %1657
  %vm1659 = vcmp.eq.s32.totalorder %v1658, 1
  %v1660 = vsel %vm1659, %v1651, %v1436
  %1661 = vst [vmem:[#allocation2] sm:$0xff] %v1660
  %v1662 = vld [vmem:[#allocation2] sm:$0xff]
  %s1663 = scalar_lea.vmem %s1, 168
  %v1664 = vld [vmem:[%s1663] sm:$0xff]
  %v1665 = vld [vmem:[%s1663 + $0x8] sm:$0xff]
  %v1666 = vld [vmem:[%s1663 + $0x10] sm:$0xff]
  %v1667 = vld [vmem:[%s3] sm:$0xff]
  %v1668 = vld [vmem:[%s3 + $0x8] sm:$0xff]
  %v1669 = vld [vmem:[%s3 + $0x10] sm:$0xff]
  %v1670 = vld [vmem:[%s3 + $0x18] sm:$0xff]
  %v1671 = vld [vmem:[%s3 + $0x20] sm:$0xff]
  %v1672 = vld [vmem:[%s3 + $0x28] sm:$0xff]
  %v1673 = vld [vmem:[%s3 + $0x30] sm:$0xff]
  %v1674 = vld [vmem:[%s3 + $0x38] sm:$0xff]
  %v1675 = vld [vmem:[%s3 + $0x40] sm:$0xff]
  %v1676 = vld [vmem:[%s3 + $0x48] sm:$0xff]
  %v1677 = vld [vmem:[%s3 + $0x50] sm:$0xff]
  %v1678 = vld [vmem:[%s3 + $0x58] sm:$0xff]
  %v1679 = vld [vmem:[%s3 + $0x60] sm:$0xff]
  %v1680 = vld [vmem:[%s3 + $0x68] sm:$0xff]
  %v1681 = vld [vmem:[%s3 + $0x70] sm:$0xff]
  %v1682 = vld [vmem:[%s3 + $0x78] sm:$0xff]
  %v1683 = vld [vmem:[%s3 + $0x80] sm:$0xff]
  %v1684 = vld [vmem:[%s3 + $0x88] sm:$0xff]
  %v1685 = vld [vmem:[%s3 + $0x90] sm:$0xff]
  %v1686 = vld [vmem:[%s3 + $0x98] sm:$0xff]
  %v1687 = vld [vmem:[%s3 + $0xa0] sm:$0xff]
  %v1688 = vld [vmem:[%s3 + $0xa8] sm:$0xff]
  %v1689 = vld [vmem:[%s3 + $0xb0] sm:$0xff]
  %v1690 = vld [vmem:[%s3 + $0xb8] sm:$0xff]
  %v1691 = vld [vmem:[%s3 + $0xc0] sm:$0xff]
  %v1692 = vld [vmem:[%s3 + $0xc8] sm:$0xff]
  %v1693 = vld [vmem:[%s3 + $0xd0] sm:$0xff]
  %v1694 = vld [vmem:[%s3 + $0xd8] sm:$0xff]
  %v1695 = vld [vmem:[%s3 + $0xe0] sm:$0xff]
  %v1696 = vld [vmem:[%s3 + $0xe8] sm:$0xff]
  %v1697 = vld [vmem:[%s3 + $0xf0] sm:$0xff]
  %v1698 = vld [vmem:[%s3 + $0xf8] sm:$0xff]
  %v1699 = vld [vmem:[%s3 + $0x100] sm:$0xff]
  %v1700 = vld [vmem:[%s3 + $0x108] sm:$0xff]
  %v1701 = vld [vmem:[%s3 + $0x110] sm:$0xff]
  %v1702 = vld [vmem:[%s3 + $0x118] sm:$0xff]
  %v1703 = vld [vmem:[%s3 + $0x120] sm:$0xff]
  %v1704 = vld [vmem:[%s3 + $0x128] sm:$0xff]
  %v1705 = vld [vmem:[%s3 + $0x130] sm:$0xff]
  %v1706 = vld [vmem:[%s3 + $0x138] sm:$0xff]
  %v1707 = vld [vmem:[%s3 + $0x140] sm:$0xff]
  %v1708 = vld [vmem:[%s3 + $0x148] sm:$0xff]
  %v1709 = vld [vmem:[%s3 + $0x150] sm:$0xff]
  %v1710 = vld [vmem:[%s3 + $0x158] sm:$0xff]
  %v1711 = vld [vmem:[%s3 + $0x160] sm:$0xff]
  %v1712 = vld [vmem:[%s3 + $0x168] sm:$0xff]
  %v1713 = vld [vmem:[%s3 + $0x170] sm:$0xff]
  %v1714 = vld [vmem:[%s3 + $0x178] sm:$0xff]
  %1715 = vmatprep.subr.mxu0 %v1668
  %1716 = vmatpush1.msra.mxu0 %v1667
  %1717 = vmatprep.subr.mxu0 %v1671
  %1718 = vmatpush1.msra.mxu0 %v1670
  %1719 = vmatprep.subr.mxu0 %v1674
  %1720 = vmatpush1.msra.mxu0 %v1673
  %1721 = vmatprep.subr.mxu0 %v1677
  %1722 = vmatpush1.msra.mxu0 %v1676
  %1723 = vmatprep.subr.mxu0 %v1680
  %1724 = vmatpush1.msra.mxu0 %v1679
  %1725 = vmatprep.subr.mxu0 %v1683
  %1726 = vmatpush1.msra.mxu0 %v1682
  %1727 = vmatprep.subr.mxu0 %v1686
  %1728 = vmatpush1.msra.mxu0 %v1685
  %1729 = vmatprep.subr.mxu0 %v1689
  %1730 = vmatpush1.msra.mxu0 %v1688
  %1731 = vmatprep.subr.mxu0 %v1692
  %1732 = vmatpush1.msra.mxu0 %v1691
  %1733 = vmatprep.subr.mxu0 %v1695
  %1734 = vmatpush1.msra.mxu0 %v1694
  %1735 = vmatprep.subr.mxu0 %v1698
  %1736 = vmatpush1.msra.mxu0 %v1697
  %1737 = vmatprep.subr.mxu0 %v1701
  %1738 = vmatpush1.msra.mxu0 %v1700
  %1739 = vmatprep.subr.mxu0 %v1704
  %1740 = vmatpush1.msra.mxu0 %v1703
  %1741 = vmatprep.subr.mxu0 %v1707
  %1742 = vmatpush1.msra.mxu0 %v1706
  %1743 = vmatprep.subr.mxu0 %v1710
  %1744 = vmatpush1.msra.mxu0 %v1709
  %1745 = vmatprep.subr.mxu0 %v1713
  %1746 = vmatpush1.msra.mxu0 %v1712
  %1747 = vmatprep.subr.mxu0 0.0
  %1748 = vmatpush1.msra.mxu0 0.0
  %1749 = vmatprep.subr.mxu0 0.0
  %1750 = vmatpush1.msra.mxu0 0.0
  %1751 = vmatprep.subr.mxu0 0.0
  %1752 = vmatpush1.msra.mxu0 0.0
  %1753 = vmatprep.subr.mxu0 0.0
  %1754 = vmatpush1.msra.mxu0 0.0
  %1755 = vmatprep.subr.mxu0 0.0
  %1756 = vmatpush1.msra.mxu0 0.0
  %1757 = vmatprep.subr.mxu0 0.0
  %1758 = vmatpush1.msra.mxu0 0.0
  %1759 = vmatprep.subr.mxu0 0.0
  %1760 = vmatpush1.msra.mxu0 0.0
  %1761 = vmatprep.subr.mxu0 0.0
  %1762 = vmatpush1.msra.mxu0 0.0
  %1763 = vmatprep.subr.mxu0 0.0
  %1764 = vmatpush1.msra.mxu0 0.0
  %1765 = vmatprep.subr.mxu0 0.0
  %1766 = vmatpush1.msra.mxu0 0.0
  %1767 = vmatprep.subr.mxu0 0.0
  %1768 = vmatpush1.msra.mxu0 0.0
  %1769 = vmatprep.subr.mxu0 0.0
  %1770 = vmatpush1.msra.mxu0 0.0
  %1771 = vmatprep.subr.mxu0 0.0
  %1772 = vmatpush1.msra.mxu0 0.0
  %1773 = vmatprep.subr.mxu0 0.0
  %1774 = vmatpush1.msra.mxu0 0.0
  %1775 = vmatprep.subr.mxu0 0.0
  %1776 = vmatpush1.msra.mxu0 0.0
  %1777 = vmatprep.subr.mxu0 0.0
  %1778 = vmatpush1.msra.mxu0 0.0
  %1779 = vmatprep.mubr.f32.mxu0 0.0
  %1780 = vmatmul.mubr.f32.gmra.mrb[0].mxu0 %v1662
  %v1781 = vpop.f32.mrb[0].mxu0
  %v1782 = vadd.f32 0.0, %v1781
  %v1783 = vpop.f32.mrb[0].mxu0
  %v1784 = vadd.f32 0.0, %v1783
  %1785 = vdwg.mxu0
  %1786 = vmatprep.subr.mxu0 0.0
  %1787 = vmatpush1.msra.mxu0 %v1669
  %1788 = vmatprep.subr.mxu0 0.0
  %1789 = vmatpush1.msra.mxu0 %v1672
  %1790 = vmatprep.subr.mxu0 0.0
  %1791 = vmatpush1.msra.mxu0 %v1675
  %1792 = vmatprep.subr.mxu0 0.0
  %1793 = vmatpush1.msra.mxu0 %v1678
  %1794 = vmatprep.subr.mxu0 0.0
  %1795 = vmatpush1.msra.mxu0 %v1681
  %1796 = vmatprep.subr.mxu0 0.0
  %1797 = vmatpush1.msra.mxu0 %v1684
  %1798 = vmatprep.subr.mxu0 0.0
  %1799 = vmatpush1.msra.mxu0 %v1687
  %1800 = vmatprep.subr.mxu0 0.0
  %1801 = vmatpush1.msra.mxu0 %v1690
  %1802 = vmatprep.subr.mxu0 0.0
  %1803 = vmatpush1.msra.mxu0 %v1693
  %1804 = vmatprep.subr.mxu0 0.0
  %1805 = vmatpush1.msra.mxu0 %v1696
  %1806 = vmatprep.subr.mxu0 0.0
  %1807 = vmatpush1.msra.mxu0 %v1699
  %1808 = vmatprep.subr.mxu0 0.0
  %1809 = vmatpush1.msra.mxu0 %v1702
  %1810 = vmatprep.subr.mxu0 0.0
  %1811 = vmatpush1.msra.mxu0 %v1705
  %1812 = vmatprep.subr.mxu0 0.0
  %1813 = vmatpush1.msra.mxu0 %v1708
  %1814 = vmatprep.subr.mxu0 0.0
  %1815 = vmatpush1.msra.mxu0 %v1711
  %1816 = vmatprep.subr.mxu0 0.0
  %1817 = vmatpush1.msra.mxu0 %v1714
  %1818 = vmatprep.subr.mxu0 0.0
  %1819 = vmatpush1.msra.mxu0 0.0
  %1820 = vmatprep.subr.mxu0 0.0
  %1821 = vmatpush1.msra.mxu0 0.0
  %1822 = vmatprep.subr.mxu0 0.0
  %1823 = vmatpush1.msra.mxu0 0.0
  %1824 = vmatprep.subr.mxu0 0.0
  %1825 = vmatpush1.msra.mxu0 0.0
  %1826 = vmatprep.subr.mxu0 0.0
  %1827 = vmatpush1.msra.mxu0 0.0
  %1828 = vmatprep.subr.mxu0 0.0
  %1829 = vmatpush1.msra.mxu0 0.0
  %1830 = vmatprep.subr.mxu0 0.0
  %1831 = vmatpush1.msra.mxu0 0.0
  %1832 = vmatprep.subr.mxu0 0.0
  %1833 = vmatpush1.msra.mxu0 0.0
  %1834 = vmatprep.subr.mxu0 0.0
  %1835 = vmatpush1.msra.mxu0 0.0
  %1836 = vmatprep.subr.mxu0 0.0
  %1837 = vmatpush1.msra.mxu0 0.0
  %1838 = vmatprep.subr.mxu0 0.0
  %1839 = vmatpush1.msra.mxu0 0.0
  %1840 = vmatprep.subr.mxu0 0.0
  %1841 = vmatpush1.msra.mxu0 0.0
  %1842 = vmatprep.subr.mxu0 0.0
  %1843 = vmatpush1.msra.mxu0 0.0
  %1844 = vmatprep.subr.mxu0 0.0
  %1845 = vmatpush1.msra.mxu0 0.0
  %1846 = vmatprep.subr.mxu0 0.0
  %1847 = vmatpush1.msra.mxu0 0.0
  %1848 = vmatprep.subr.mxu0 0.0
  %1849 = vmatpush1.msra.mxu0 0.0
  %1850 = vmatprep.mubr.f32.mxu0 0.0
  %1851 = vmatmul.mubr.f32.gmra.mrb[0].mxu0 %v1662
  %v1852 = vpop.f32.mrb[0].mxu0
  %v1853 = vadd.f32 0.0, %v1852
  %v1854 = vpop.f32.mrb[0].mxu0
  %1855 = vdwg.mxu0
  %v1856 = vadd.f32 %v1664, %v1782
  %v1857 = vadd.f32 %v1665, %v1784
  %v1858 = vxor.u32 %v1856, 2147483648
  %v1859 = vxor.u32 %v1857, 2147483648
  %v1860 = vmul.f32 %v1858, 1.442695
  %v1861 = vpow.pop %v1860
  %v1862 = vmul.f32 %v1859, 1.442695
  %v1863 = vpow.pop %v1862
  %v1864 = vadd.f32 %v1861, 1.0
  %v1865 = vadd.f32 %v1863, 1.0
  %v1866 = vrcp.pop %v1864
  %v1867 = vmul.f32 1.0, %v1866
  %v1868 = vrcp.pop %v1865
  %v1869 = vmul.f32 1.0, %v1868
  %v1870 = vadd.f32 %v1853, %v79
  %v1871 = vmul.f32 %v1867, %v1870
  %v1872 = vadd.f32 %v1666, %v1871
  %v1873 = vtanh.pop %v1872
  %v1874 = vsub.f32 1.0, %v1869
  %v1875 = vmul.f32 %v1874, %v1873
  %v1876 = vmul.f32 %v1869, %v1662
  %v1877 = vadd.f32 %v1875, %v1876
  %s1878 = sadd.s32 %s81, 7
  %v1879 = vstv %s1878
  %vm1880 = vcmp.lt.s32.totalorder %v1879, %v73
  %v1881 = vsel %vm1880, 1, 0
  %1882 = vset.pattern.permute.xlu0 0
  %1883 = vperm.xlu0 %1882, %v1881
  %v1884 = vpop.permute.xlu0 %1883
  %vm1885 = vcmp.eq.s32.totalorder %v1884, 1
  %v1886 = vsel %vm1885, %v1877, %v1662
  %1887 = vst [vmem:[#allocation2] sm:$0xff] %v1886
  // Predicated region
  $region70: #{predictor_forward.1} parent=0 // pred_check
    %p1888 = pneg %p60
  $region71: #{predictor_forward.1} parent=0 // pred_check_branch
    %1890 = sbr.rel (%p1888) target = $region73
  $region72: #{predictor_forward.1} parent=0 // pred_region
    %s1891 = smul.u32 0, 8
    %s1892 = sld [smem:[#allocation7 + %s1891]]
    %v1893 = vld [vmem:[#allocation2] sm:$0x1]
    %s1894 = scalar_lea.vmem [#allocation3], %s1892
    %1895 = vst [vmem:[%s1894] sm:$0x1] %v1893
    %s1896 = sadd.s32 %s1891, 1
    %s1897 = sld [smem:[#allocation7 + %s1896]]
    %v1898 = vld [vmem:[#allocation2 + $0x1] sm:$0x1]
    %s1899 = scalar_lea.vmem [#allocation3], %s1897
    %1900 = vst [vmem:[%s1899] sm:$0x1] %v1898
    %s1901 = sadd.s32 %s1891, 2
    %s1902 = sld [smem:[#allocation7 + %s1901]]
    %v1903 = vld [vmem:[#allocation2 + $0x2] sm:$0x1]
    %s1904 = scalar_lea.vmem [#allocation3], %s1902
    %1905 = vst [vmem:[%s1904] sm:$0x1] %v1903
    %s1906 = sadd.s32 %s1891, 3
    %s1907 = sld [smem:[#allocation7 + %s1906]]
    %v1908 = vld [vmem:[#allocation2 + $0x3] sm:$0x1]
    %s1909 = scalar_lea.vmem [#allocation3], %s1907
    %1910 = vst [vmem:[%s1909] sm:$0x1] %v1908
    %s1911 = sadd.s32 %s1891, 4
    %s1912 = sld [smem:[#allocation7 + %s1911]]
    %v1913 = vld [vmem:[#allocation2 + $0x4] sm:$0x1]
    %s1914 = scalar_lea.vmem [#allocation3], %s1912
    %1915 = vst [vmem:[%s1914] sm:$0x1] %v1913
    %s1916 = sadd.s32 %s1891, 5
    %s1917 = sld [smem:[#allocation7 + %s1916]]
    %v1918 = vld [vmem:[#allocation2 + $0x5] sm:$0x1]
    %s1919 = scalar_lea.vmem [#allocation3], %s1917
    %1920 = vst [vmem:[%s1919] sm:$0x1] %v1918
    %s1921 = sadd.s32 %s1891, 6
    %s1922 = sld [smem:[#allocation7 + %s1921]]
    %v1923 = vld [vmem:[#allocation2 + $0x6] sm:$0x1]
    %s1924 = scalar_lea.vmem [#allocation3], %s1922
    %1925 = vst [vmem:[%s1924] sm:$0x1] %v1923
    %s1926 = sadd.s32 %s1891, 7
    %s1927 = sld [smem:[#allocation7 + %s1926]]
    %v1928 = vld [vmem:[#allocation2 + $0x7] sm:$0x1]
    %s1929 = scalar_lea.vmem [#allocation3], %s1927
    %1930 = vst [vmem:[%s1929] sm:$0x1] %v1928
  $region73: #{predictor_forward.1} parent=0 // pred_fallthru
    _
  // Predicated region
  $region74: #{predictor_forward.1} parent=0 // pred_check
    _
  $region75: #{predictor_forward.1} parent=0 // pred_check_branch
    %1932 = sbr.rel (%p61) target = $region77
  $region76: #{predictor_forward.1} parent=0 // pred_region
    %v1933 = vld [vmem:[#allocation3] sm:$0xff]
    %v1934 = vld [vmem:[#allocation3 + $0x8] sm:$0xff]
    %v1935 = vld [vmem:[#allocation3 + $0x10] sm:$0xff]
    %v1936 = vld [vmem:[%s6] sm:$0xff]
    %v1937 = vld [vmem:[%s6 + $0x8] sm:$0xff]
    %v1938 = vld [vmem:[%s6 + $0x10] sm:$0xff]
    %v1939 = vld [vmem:[%s6 + $0x18] sm:$0xff]
    %v1940 = vld [vmem:[%s6 + $0x20] sm:$0xff]
    %v1941 = vld [vmem:[%s6 + $0x28] sm:$0xff]
    %v1942 = vld [vmem:[%s6 + $0x30] sm:$0xff]
    %v1943 = vld [vmem:[%s6 + $0x38] sm:$0xff]
    %v1944 = vld [vmem:[%s6 + $0x40] sm:$0xff]
    %v1945 = vld [vmem:[%s6 + $0x48] sm:$0xff]
    %v1946 = vld [vmem:[%s6 + $0x50] sm:$0xff]
    %v1947 = vld [vmem:[%s6 + $0x58] sm:$0xff]
    %v1948 = vld [vmem:[%s7] sm:$0x7]
    %v1950 = vlaneseq
    %v1951 = vshrl.u32 %v1950, 7
    %v1952 = vsub.s32 0, %v1951
    %v1953 = vrot.slane %v1948, %v1952
    %v1954 = vlaneseq
    %v1955 = vshrl.u32 %v1954, 7
    %v1956 = vsub.s32 1, %v1955
    %v1957 = vrot.slane %v1948, %v1956
    %v1958 = vlaneseq
    %v1959 = vshrl.u32 %v1958, 7
    %v1960 = vsub.s32 2, %v1959
    %v1961 = vrot.slane %v1948, %v1960
    %vm1965 = vcmask 261120
    %v1967 = vsel %vm1965, %v1933, 0
    %v1970 = vsel %vm1965, %v1934, 0
    %v1973 = vsel %vm1965, %v1935, 0
    %1975 = vmatprep.subr.mxu0 %v1937
    %1976 = vmatpush1.msra.mxu0 %v1936
    %1977 = vmatprep.subr.mxu0 %v1940
    %1978 = vmatpush1.msra.mxu0 %v1939
    %1979 = vmatprep.subr.mxu0 %v1943
    %1980 = vmatpush1.msra.mxu0 %v1942
    %1981 = vmatprep.subr.mxu0 %v1946
    %1982 = vmatpush1.msra.mxu0 %v1945
    %1983 = vmatprep.subr.mxu0 0.0
    %1984 = vmatpush1.msra.mxu0 0.0
    %1985 = vmatprep.subr.mxu0 0.0
    %1986 = vmatpush1.msra.mxu0 0.0
    %1987 = vmatprep.subr.mxu0 0.0
    %1988 = vmatpush1.msra.mxu0 0.0
    %1989 = vmatprep.subr.mxu0 0.0
    %1990 = vmatpush1.msra.mxu0 0.0
    %1991 = vmatprep.subr.mxu0 0.0
    %1992 = vmatpush1.msra.mxu0 0.0
    %1993 = vmatprep.subr.mxu0 0.0
    %1994 = vmatpush1.msra.mxu0 0.0
    %1995 = vmatprep.subr.mxu0 0.0
    %1996 = vmatpush1.msra.mxu0 0.0
    %1997 = vmatprep.subr.mxu0 0.0
    %1998 = vmatpush1.msra.mxu0 0.0
    %1999 = vmatprep.subr.mxu0 0.0
    %2000 = vmatpush1.msra.mxu0 0.0
    %2001 = vmatprep.subr.mxu0 0.0
    %2002 = vmatpush1.msra.mxu0 0.0
    %2003 = vmatprep.subr.mxu0 0.0
    %2004 = vmatpush1.msra.mxu0 0.0
    %2005 = vmatprep.subr.mxu0 0.0
    %2006 = vmatpush1.msra.mxu0 0.0
    %2007 = vmatprep.subr.mxu0 0.0
    %2008 = vmatpush1.msra.mxu0 0.0
    %2009 = vmatprep.subr.mxu0 0.0
    %2010 = vmatpush1.msra.mxu0 0.0
    %2011 = vmatprep.subr.mxu0 0.0
    %2012 = vmatpush1.msra.mxu0 0.0
    %2013 = vmatprep.subr.mxu0 0.0
    %2014 = vmatpush1.msra.mxu0 0.0
    %2015 = vmatprep.subr.mxu0 0.0
    %2016 = vmatpush1.msra.mxu0 0.0
    %2017 = vmatprep.subr.mxu0 0.0
    %2018 = vmatpush1.msra.mxu0 0.0
    %2019 = vmatprep.subr.mxu0 0.0
    %2020 = vmatpush1.msra.mxu0 0.0
    %2021 = vmatprep.subr.mxu0 0.0
    %2022 = vmatpush1.msra.mxu0 0.0
    %2023 = vmatprep.subr.mxu0 0.0
    %2024 = vmatpush1.msra.mxu0 0.0
    %2025 = vmatprep.subr.mxu0 0.0
    %2026 = vmatpush1.msra.mxu0 0.0
    %2027 = vmatprep.subr.mxu0 0.0
    %2028 = vmatpush1.msra.mxu0 0.0
    %2029 = vmatprep.subr.mxu0 0.0
    %2030 = vmatpush1.msra.mxu0 0.0
    %2031 = vmatprep.subr.mxu0 0.0
    %2032 = vmatpush1.msra.mxu0 0.0
    %2033 = vmatprep.subr.mxu0 0.0
    %2034 = vmatpush1.msra.mxu0 0.0
    %2035 = vmatprep.subr.mxu0 0.0
    %2036 = vmatpush1.msra.mxu0 0.0
    %2037 = vmatprep.subr.mxu0 0.0
    %2038 = vmatpush1.msra.mxu0 0.0
    %2039 = vmatprep.mubr.f32.mxu0 0.0
    %2040 = vmatmul.mubr.f32.gmra.mrb[0].mxu0 %v1967
    %v2041 = vpop.f32.mrb[0].mxu0
    %v2042 = vadd.f32 %v1953, %v2041
    %v2043 = vpop.f32.mrb[0].mxu0
    %v2044 = vadd.f32 %v1957, %v2043
    %2045 = vmatprep.mubr.f32.mxu0 0.0
    %2046 = vmatmul.mubr.f32.gmra.mrb[0].mxu0 %v1970
    %v2047 = vpop.f32.mrb[0].mxu0
    %v2048 = vadd.f32 %v1953, %v2047
    %v2049 = vpop.f32.mrb[0].mxu0
    %v2050 = vadd.f32 %v1957, %v2049
    %2051 = vmatprep.mubr.f32.mxu0 0.0
    %2052 = vmatmul.mubr.f32.gmra.mrb[0].mxu0 %v1973
    %v2053 = vpop.f32.mrb[0].mxu0
    %v2054 = vadd.f32 %v1953, %v2053
    %v2055 = vpop.f32.mrb[0].mxu0
    %v2056 = vadd.f32 %v1957, %v2055
    %2057 = vdwg.mxu0
    %2058 = vmatprep.subr.mxu0 0.0
    %2059 = vmatpush1.msra.mxu0 %v1938
    %2060 = vmatprep.subr.mxu0 0.0
    %2061 = vmatpush1.msra.mxu0 %v1941
    %2062 = vmatprep.subr.mxu0 0.0
    %2063 = vmatpush1.msra.mxu0 %v1944
    %2064 = vmatprep.subr.mxu0 0.0
    %2065 = vmatpush1.msra.mxu0 %v1947
    %2066 = vmatprep.subr.mxu0 0.0
    %2067 = vmatpush1.msra.mxu0 0.0
    %2068 = vmatprep.subr.mxu0 0.0
    %2069 = vmatpush1.msra.mxu0 0.0
    %2070 = vmatprep.subr.mxu0 0.0
    %2071 = vmatpush1.msra.mxu0 0.0
    %2072 = vmatprep.subr.mxu0 0.0
    %2073 = vmatpush1.msra.mxu0 0.0
    %2074 = vmatprep.subr.mxu0 0.0
    %2075 = vmatpush1.msra.mxu0 0.0
    %2076 = vmatprep.subr.mxu0 0.0
    %2077 = vmatpush1.msra.mxu0 0.0
    %2078 = vmatprep.subr.mxu0 0.0
    %2079 = vmatpush1.msra.mxu0 0.0
    %2080 = vmatprep.subr.mxu0 0.0
    %2081 = vmatpush1.msra.mxu0 0.0
    %2082 = vmatprep.subr.mxu0 0.0
    %2083 = vmatpush1.msra.mxu0 0.0
    %2084 = vmatprep.subr.mxu0 0.0
    %2085 = vmatpush1.msra.mxu0 0.0
    %2086 = vmatprep.subr.mxu0 0.0
    %2087 = vmatpush1.msra.mxu0 0.0
    %2088 = vmatprep.subr.mxu0 0.0
    %2089 = vmatpush1.msra.mxu0 0.0
    %2090 = vmatprep.subr.mxu0 0.0
    %2091 = vmatpush1.msra.mxu0 0.0
    %2092 = vmatprep.subr.mxu0 0.0
    %2093 = vmatpush1.msra.mxu0 0.0
    %2094 = vmatprep.subr.mxu0 0.0
    %2095 = vmatpush1.msra.mxu0 0.0
    %2096 = vmatprep.subr.mxu0 0.0
    %2097 = vmatpush1.msra.mxu0 0.0
    %2098 = vmatprep.subr.mxu0 0.0
    %2099 = vmatpush1.msra.mxu0 0.0
    %2100 = vmatprep.subr.mxu0 0.0
    %2101 = vmatpush1.msra.mxu0 0.0
    %2102 = vmatprep.subr.mxu0 0.0
    %2103 = vmatpush1.msra.mxu0 0.0
    %2104 = vmatprep.subr.mxu0 0.0
    %2105 = vmatpush1.msra.mxu0 0.0
    %2106 = vmatprep.subr.mxu0 0.0
    %2107 = vmatpush1.msra.mxu0 0.0
    %2108 = vmatprep.subr.mxu0 0.0
    %2109 = vmatpush1.msra.mxu0 0.0
    %2110 = vmatprep.subr.mxu0 0.0
    %2111 = vmatpush1.msra.mxu0 0.0
    %2112 = vmatprep.subr.mxu0 0.0
    %2113 = vmatpush1.msra.mxu0 0.0
    %2114 = vmatprep.subr.mxu0 0.0
    %2115 = vmatpush1.msra.mxu0 0.0
    %2116 = vmatprep.subr.mxu0 0.0
    %2117 = vmatpush1.msra.mxu0 0.0
    %2118 = vmatprep.subr.mxu0 0.0
    %2119 = vmatpush1.msra.mxu0 0.0
    %2120 = vmatprep.subr.mxu0 0.0
    %2121 = vmatpush1.msra.mxu0 0.0
    %2122 = vmatprep.mubr.f32.mxu0 0.0
    %2123 = vmatmul.mubr.f32.gmra.mrb[0].mxu0 %v1967
    %v2124 = vpop.f32.mrb[0].mxu0
    %v2125 = vadd.f32 %v1961, %v2124
    %v2126 = vpop.f32.mrb[0].mxu0
    %2127 = vmatprep.mubr.f32.mxu0 0.0
    %2128 = vmatmul.mubr.f32.gmra.mrb[0].mxu0 %v1970
    %v2129 = vpop.f32.mrb[0].mxu0
    %v2130 = vadd.f32 %v1961, %v2129
    %v2131 = vpop.f32.mrb[0].mxu0
    %2132 = vmatprep.mubr.f32.mxu0 0.0
    %2133 = vmatmul.mubr.f32.gmra.mrb[0].mxu0 %v1973
    %v2134 = vpop.f32.mrb[0].mxu0
    %v2135 = vadd.f32 %v1961, %v2134
    %v2136 = vpop.f32.mrb[0].mxu0
    %2137 = vdwg.mxu0
    %2138 = vst [vmem:[#allocation4] sm:$0xff] %v2042
    %2139 = vst [vmem:[#allocation4 + $0x8] sm:$0xff] %v2044
    %2140 = vst [vmem:[#allocation4 + $0x10] sm:$0xff] %v2125
    %2141 = vst [vmem:[#allocation4 + $0x18] sm:$0xff] %v2048
    %2142 = vst [vmem:[#allocation4 + $0x20] sm:$0xff] %v2050
    %2143 = vst [vmem:[#allocation4 + $0x28] sm:$0xff] %v2130
    %2144 = vst [vmem:[#allocation4 + $0x30] sm:$0xff] %v2054
    %2145 = vst [vmem:[#allocation4 + $0x38] sm:$0xff] %v2056
    %2146 = vst [vmem:[#allocation4 + $0x40] sm:$0xff] %v2135
    %2147 = vst [vmem:[#allocation5] sm:$0xff] 0.0
    %v2148 = vld [vmem:[%s5] sm:$0xff]
    %v2149 = vld [vmem:[%s9] sm:$0x1]
    %v2151 = vlaneseq
    %v2152 = vshrl.u32 %v2151, 7
    %v2153 = vsub.s32 0, %v2152
    %v2154 = vrot.slane %v2149, %v2153
    %v2156 = vld [vmem:[#allocation5] sm:$0xff]
    %s2157 = smul.u32 0, 3
    %s2158 = smul.addr %s2157, 8
    %s2159 = scalar_lea.vmem [#allocation4], %s2158
    %v2160 = vld [vmem:[%s2159] sm:$0xff]
    %v2161 = vld [vmem:[%s2159 + $0x8] sm:$0xff]
    %v2162 = vld [vmem:[%s2159 + $0x10] sm:$0xff]
    %v2163 = vld [vmem:[%s8] sm:$0xff]
    %v2164 = vld [vmem:[%s8 + $0x8] sm:$0xff]
    %v2165 = vld [vmem:[%s8 + $0x10] sm:$0xff]
    %v2166 = vld [vmem:[%s8 + $0x18] sm:$0xff]
    %v2167 = vld [vmem:[%s8 + $0x20] sm:$0xff]
    %v2168 = vld [vmem:[%s8 + $0x28] sm:$0xff]
    %v2169 = vld [vmem:[%s8 + $0x30] sm:$0xff]
    %v2170 = vld [vmem:[%s8 + $0x38] sm:$0xff]
    %v2171 = vld [vmem:[%s8 + $0x40] sm:$0xff]
    %v2172 = vld [vmem:[%s8 + $0x48] sm:$0xff]
    %v2173 = vld [vmem:[%s8 + $0x50] sm:$0xff]
    %v2174 = vld [vmem:[%s8 + $0x58] sm:$0xff]
    %v2175 = vld [vmem:[%s8 + $0x60] sm:$0xff]
    %v2176 = vld [vmem:[%s8 + $0x68] sm:$0xff]
    %v2177 = vld [vmem:[%s8 + $0x70] sm:$0xff]
    %v2178 = vld [vmem:[%s8 + $0x78] sm:$0xff]
    %v2179 = vld [vmem:[%s8 + $0x80] sm:$0xff]
    %v2180 = vld [vmem:[%s8 + $0x88] sm:$0xff]
    %v2181 = vld [vmem:[%s8 + $0x90] sm:$0xff]
    %v2182 = vld [vmem:[%s8 + $0x98] sm:$0xff]
    %v2183 = vld [vmem:[%s8 + $0xa0] sm:$0xff]
    %v2184 = vld [vmem:[%s8 + $0xa8] sm:$0xff]
    %v2185 = vld [vmem:[%s8 + $0xb0] sm:$0xff]
    %v2186 = vld [vmem:[%s8 + $0xb8] sm:$0xff]
    %v2187 = vld [vmem:[%s8 + $0xc0] sm:$0xff]
    %v2188 = vld [vmem:[%s8 + $0xc8] sm:$0xff]
    %v2189 = vld [vmem:[%s8 + $0xd0] sm:$0xff]
    %v2190 = vld [vmem:[%s8 + $0xd8] sm:$0xff]
    %v2191 = vld [vmem:[%s8 + $0xe0] sm:$0xff]
    %v2192 = vld [vmem:[%s8 + $0xe8] sm:$0xff]
    %v2193 = vld [vmem:[%s8 + $0xf0] sm:$0xff]
    %v2194 = vld [vmem:[%s8 + $0xf8] sm:$0xff]
    %v2195 = vld [vmem:[%s8 + $0x100] sm:$0xff]
    %v2196 = vld [vmem:[%s8 + $0x108] sm:$0xff]
    %v2197 = vld [vmem:[%s8 + $0x110] sm:$0xff]
    %v2198 = vld [vmem:[%s8 + $0x118] sm:$0xff]
    %v2199 = vld [vmem:[%s8 + $0x120] sm:$0xff]
    %v2200 = vld [vmem:[%s8 + $0x128] sm:$0xff]
    %v2201 = vld [vmem:[%s8 + $0x130] sm:$0xff]
    %v2202 = vld [vmem:[%s8 + $0x138] sm:$0xff]
    %v2203 = vld [vmem:[%s8 + $0x140] sm:$0xff]
    %v2204 = vld [vmem:[%s8 + $0x148] sm:$0xff]
    %v2205 = vld [vmem:[%s8 + $0x150] sm:$0xff]
    %v2206 = vld [vmem:[%s8 + $0x158] sm:$0xff]
    %v2207 = vld [vmem:[%s8 + $0x160] sm:$0xff]
    %v2208 = vld [vmem:[%s8 + $0x168] sm:$0xff]
    %v2209 = vld [vmem:[%s8 + $0x170] sm:$0xff]
    %v2210 = vld [vmem:[%s8 + $0x178] sm:$0xff]
    %2211 = vmatprep.subr.mxu0 %v2164
    %2212 = vmatpush1.msra.mxu0 %v2163
    %2213 = vmatprep.subr.mxu0 %v2167
    %2214 = vmatpush1.msra.mxu0 %v2166
    %2215 = vmatprep.subr.mxu0 %v2170
    %2216 = vmatpush1.msra.mxu0 %v2169
    %2217 = vmatprep.subr.mxu0 %v2173
    %2218 = vmatpush1.msra.mxu0 %v2172
    %2219 = vmatprep.subr.mxu0 %v2176
    %2220 = vmatpush1.msra.mxu0 %v2175
    %2221 = vmatprep.subr.mxu0 %v2179
    %2222 = vmatpush1.msra.mxu0 %v2178
    %2223 = vmatprep.subr.mxu0 %v2182
    %2224 = vmatpush1.msra.mxu0 %v2181
    %2225 = vmatprep.subr.mxu0 %v2185
    %2226 = vmatpush1.msra.mxu0 %v2184
    %2227 = vmatprep.subr.mxu0 %v2188
    %2228 = vmatpush1.msra.mxu0 %v2187
    %2229 = vmatprep.subr.mxu0 %v2191
    %2230 = vmatpush1.msra.mxu0 %v2190
    %2231 = vmatprep.subr.mxu0 %v2194
    %2232 = vmatpush1.msra.mxu0 %v2193
    %2233 = vmatprep.subr.mxu0 %v2197
    %2234 = vmatpush1.msra.mxu0 %v2196
    %2235 = vmatprep.subr.mxu0 %v2200
    %2236 = vmatpush1.msra.mxu0 %v2199
    %2237 = vmatprep.subr.mxu0 %v2203
    %2238 = vmatpush1.msra.mxu0 %v2202
    %2239 = vmatprep.subr.mxu0 %v2206
    %2240 = vmatpush1.msra.mxu0 %v2205
    %2241 = vmatprep.subr.mxu0 %v2209
    %2242 = vmatpush1.msra.mxu0 %v2208
    %2243 = vmatprep.subr.mxu0 0.0
    %2244 = vmatpush1.msra.mxu0 0.0
    %2245 = vmatprep.subr.mxu0 0.0
    %2246 = vmatpush1.msra.mxu0 0.0
    %2247 = vmatprep.subr.mxu0 0.0
    %2248 = vmatpush1.msra.mxu0 0.0
    %2249 = vmatprep.subr.mxu0 0.0
    %2250 = vmatpush1.msra.mxu0 0.0
    %2251 = vmatprep.subr.mxu0 0.0
    %2252 = vmatpush1.msra.mxu0 0.0
    %2253 = vmatprep.subr.mxu0 0.0
    %2254 = vmatpush1.msra.mxu0 0.0
    %2255 = vmatprep.subr.mxu0 0.0
    %2256 = vmatpush1.msra.mxu0 0.0
    %2257 = vmatprep.subr.mxu0 0.0
    %2258 = vmatpush1.msra.mxu0 0.0
    %2259 = vmatprep.subr.mxu0 0.0
    %2260 = vmatpush1.msra.mxu0 0.0
    %2261 = vmatprep.subr.mxu0 0.0
    %2262 = vmatpush1.msra.mxu0 0.0
    %2263 = vmatprep.subr.mxu0 0.0
    %2264 = vmatpush1.msra.mxu0 0.0
    %2265 = vmatprep.subr.mxu0 0.0
    %2266 = vmatpush1.msra.mxu0 0.0
    %2267 = vmatprep.subr.mxu0 0.0
    %2268 = vmatpush1.msra.mxu0 0.0
    %2269 = vmatprep.subr.mxu0 0.0
    %2270 = vmatpush1.msra.mxu0 0.0
    %2271 = vmatprep.subr.mxu0 0.0
    %2272 = vmatpush1.msra.mxu0 0.0
    %2273 = vmatprep.subr.mxu0 0.0
    %2274 = vmatpush1.msra.mxu0 0.0
    %2275 = vmatprep.mubr.f32.mxu0 0.0
    %2276 = vmatmul.mubr.f32.gmra.mrb[0].mxu0 %v2156
    %v2277 = vpop.f32.mrb[0].mxu0
    %v2278 = vadd.f32 0.0, %v2277
    %v2279 = vpop.f32.mrb[0].mxu0
    %v2280 = vadd.f32 0.0, %v2279
    %2281 = vdwg.mxu0
    %2282 = vmatprep.subr.mxu0 0.0
    %2283 = vmatpush1.msra.mxu0 %v2165
    %2284 = vmatprep.subr.mxu0 0.0
    %2285 = vmatpush1.msra.mxu0 %v2168
    %2286 = vmatprep.subr.mxu0 0.0
    %2287 = vmatpush1.msra.mxu0 %v2171
    %2288 = vmatprep.subr.mxu0 0.0
    %2289 = vmatpush1.msra.mxu0 %v2174
    %2290 = vmatprep.subr.mxu0 0.0
    %2291 = vmatpush1.msra.mxu0 %v2177
    %2292 = vmatprep.subr.mxu0 0.0
    %2293 = vmatpush1.msra.mxu0 %v2180
    %2294 = vmatprep.subr.mxu0 0.0
    %2295 = vmatpush1.msra.mxu0 %v2183
    %2296 = vmatprep.subr.mxu0 0.0
    %2297 = vmatpush1.msra.mxu0 %v2186
    %2298 = vmatprep.subr.mxu0 0.0
    %2299 = vmatpush1.msra.mxu0 %v2189
    %2300 = vmatprep.subr.mxu0 0.0
    %2301 = vmatpush1.msra.mxu0 %v2192
    %2302 = vmatprep.subr.mxu0 0.0
    %2303 = vmatpush1.msra.mxu0 %v2195
    %2304 = vmatprep.subr.mxu0 0.0
    %2305 = vmatpush1.msra.mxu0 %v2198
    %2306 = vmatprep.subr.mxu0 0.0
    %2307 = vmatpush1.msra.mxu0 %v2201
    %2308 = vmatprep.subr.mxu0 0.0
    %2309 = vmatpush1.msra.mxu0 %v2204
    %2310 = vmatprep.subr.mxu0 0.0
    %2311 = vmatpush1.msra.mxu0 %v2207
    %2312 = vmatprep.subr.mxu0 0.0
    %2313 = vmatpush1.msra.mxu0 %v2210
    %2314 = vmatprep.subr.mxu0 0.0
    %2315 = vmatpush1.msra.mxu0 0.0
    %2316 = vmatprep.subr.mxu0 0.0
    %2317 = vmatpush1.msra.mxu0 0.0
    %2318 = vmatprep.subr.mxu0 0.0
    %2319 = vmatpush1.msra.mxu0 0.0
    %2320 = vmatprep.subr.mxu0 0.0
    %2321 = vmatpush1.msra.mxu0 0.0
    %2322 = vmatprep.subr.mxu0 0.0
    %2323 = vmatpush1.msra.mxu0 0.0
    %2324 = vmatprep.subr.mxu0 0.0
    %2325 = vmatpush1.msra.mxu0 0.0
    %2326 = vmatprep.subr.mxu0 0.0
    %2327 = vmatpush1.msra.mxu0 0.0
    %2328 = vmatprep.subr.mxu0 0.0
    %2329 = vmatpush1.msra.mxu0 0.0
    %2330 = vmatprep.subr.mxu0 0.0
    %2331 = vmatpush1.msra.mxu0 0.0
    %2332 = vmatprep.subr.mxu0 0.0
    %2333 = vmatpush1.msra.mxu0 0.0
    %2334 = vmatprep.subr.mxu0 0.0
    %2335 = vmatpush1.msra.mxu0 0.0
    %2336 = vmatprep.subr.mxu0 0.0
    %2337 = vmatpush1.msra.mxu0 0.0
    %2338 = vmatprep.subr.mxu0 0.0
    %2339 = vmatpush1.msra.mxu0 0.0
    %2340 = vmatprep.subr.mxu0 0.0
    %2341 = vmatpush1.msra.mxu0 0.0
    %2342 = vmatprep.subr.mxu0 0.0
    %2343 = vmatpush1.msra.mxu0 0.0
    %2344 = vmatprep.subr.mxu0 0.0
    %2345 = vmatpush1.msra.mxu0 0.0
    %2346 = vmatprep.mubr.f32.mxu0 0.0
    %2347 = vmatmul.mubr.f32.gmra.mrb[0].mxu0 %v2156
    %v2348 = vpop.f32.mrb[0].mxu0
    %v2349 = vadd.f32 0.0, %v2348
    %v2350 = vpop.f32.mrb[0].mxu0
    %2351 = vdwg.mxu0
    %v2352 = vadd.f32 %v2160, %v2278
    %v2353 = vadd.f32 %v2161, %v2280
    %v2354 = vxor.u32 %v2352, 2147483648
    %v2355 = vxor.u32 %v2353, 2147483648
    %v2356 = vmul.f32 %v2354, 1.442695
    %v2357 = vpow.pop %v2356
    %v2358 = vmul.f32 %v2355, 1.442695
    %v2359 = vpow.pop %v2358
    %v2360 = vadd.f32 %v2357, 1.0
    %v2361 = vadd.f32 %v2359, 1.0
    %v2362 = vrcp.pop %v2360
    %v2363 = vmul.f32 1.0, %v2362
    %v2364 = vrcp.pop %v2361
    %v2365 = vmul.f32 1.0, %v2364
    %v2366 = vadd.f32 %v2349, %v2154
    %v2367 = vmul.f32 %v2363, %v2366
    %v2368 = vadd.f32 %v2162, %v2367
    %v2369 = vtanh.pop %v2368
    %v2370 = vsub.f32 1.0, %v2365
    %v2371 = vmul.f32 %v2370, %v2369
    %v2372 = vmul.f32 %v2365, %v2156
    %v2373 = vadd.f32 %v2371, %v2372
    %vm2374 = vcmp.gt.s32.totalorder %v2148, 0
    %v2375 = vsel %vm2374, 1, 0
    %2376 = vset.pattern.permute.xlu0 0
    %2377 = vperm.xlu0 %2376, %v2375
    %v2378 = vpop.permute.xlu0 %2377
    %vm2379 = vcmp.eq.s32.totalorder %v2378, 1
    %v2380 = vsel %vm2379, %v2373, %v2156
    %2381 = vst [vmem:[#allocation5] sm:$0xff] %v2380
    %v2382 = vld [vmem:[#allocation5] sm:$0xff]
    %s2383 = smul.u32 1, 3
    %s2384 = smul.addr %s2383, 8
    %s2385 = scalar_lea.vmem [#allocation4], %s2384
    %v2386 = vld [vmem:[%s2385] sm:$0xff]
    %v2387 = vld [vmem:[%s2385 + $0x8] sm:$0xff]
    %v2388 = vld [vmem:[%s2385 + $0x10] sm:$0xff]
    %v2389 = vld [vmem:[%s8] sm:$0xff]
    %v2390 = vld [vmem:[%s8 + $0x8] sm:$0xff]
    %v2391 = vld [vmem:[%s8 + $0x10] sm:$0xff]
    %v2392 = vld [vmem:[%s8 + $0x18] sm:$0xff]
    %v2393 = vld [vmem:[%s8 + $0x20] sm:$0xff]
    %v2394 = vld [vmem:[%s8 + $0x28] sm:$0xff]
    %v2395 = vld [vmem:[%s8 + $0x30] sm:$0xff]
    %v2396 = vld [vmem:[%s8 + $0x38] sm:$0xff]
    %v2397 = vld [vmem:[%s8 + $0x40] sm:$0xff]
    %v2398 = vld [vmem:[%s8 + $0x48] sm:$0xff]
    %v2399 = vld [vmem:[%s8 + $0x50] sm:$0xff]
    %v2400 = vld [vmem:[%s8 + $0x58] sm:$0xff]
    %v2401 = vld [vmem:[%s8 + $0x60] sm:$0xff]
    %v2402 = vld [vmem:[%s8 + $0x68] sm:$0xff]
    %v2403 = vld [vmem:[%s8 + $0x70] sm:$0xff]
    %v2404 = vld [vmem:[%s8 + $0x78] sm:$0xff]
    %v2405 = vld [vmem:[%s8 + $0x80] sm:$0xff]
    %v2406 = vld [vmem:[%s8 + $0x88] sm:$0xff]
    %v2407 = vld [vmem:[%s8 + $0x90] sm:$0xff]
    %v2408 = vld [vmem:[%s8 + $0x98] sm:$0xff]
    %v2409 = vld [vmem:[%s8 + $0xa0] sm:$0xff]
    %v2410 = vld [vmem:[%s8 + $0xa8] sm:$0xff]
    %v2411 = vld [vmem:[%s8 + $0xb0] sm:$0xff]
    %v2412 = vld [vmem:[%s8 + $0xb8] sm:$0xff]
    %v2413 = vld [vmem:[%s8 + $0xc0] sm:$0xff]
    %v2414 = vld [vmem:[%s8 + $0xc8] sm:$0xff]
    %v2415 = vld [vmem:[%s8 + $0xd0] sm:$0xff]
    %v2416 = vld [vmem:[%s8 + $0xd8] sm:$0xff]
    %v2417 = vld [vmem:[%s8 + $0xe0] sm:$0xff]
    %v2418 = vld [vmem:[%s8 + $0xe8] sm:$0xff]
    %v2419 = vld [vmem:[%s8 + $0xf0] sm:$0xff]
    %v2420 = vld [vmem:[%s8 + $0xf8] sm:$0xff]
    %v2421 = vld [vmem:[%s8 + $0x100] sm:$0xff]
    %v2422 = vld [vmem:[%s8 + $0x108] sm:$0xff]
    %v2423 = vld [vmem:[%s8 + $0x110] sm:$0xff]
    %v2424 = vld [vmem:[%s8 + $0x118] sm:$0xff]
    %v2425 = vld [vmem:[%s8 + $0x120] sm:$0xff]
    %v2426 = vld [vmem:[%s8 + $0x128] sm:$0xff]
    %v2427 = vld [vmem:[%s8 + $0x130] sm:$0xff]
    %v2428 = vld [vmem:[%s8 + $0x138] sm:$0xff]
    %v2429 = vld [vmem:[%s8 + $0x140] sm:$0xff]
    %v2430 = vld [vmem:[%s8 + $0x148] sm:$0xff]
    %v2431 = vld [vmem:[%s8 + $0x150] sm:$0xff]
    %v2432 = vld [vmem:[%s8 + $0x158] sm:$0xff]
    %v2433 = vld [vmem:[%s8 + $0x160] sm:$0xff]
    %v2434 = vld [vmem:[%s8 + $0x168] sm:$0xff]
    %v2435 = vld [vmem:[%s8 + $0x170] sm:$0xff]
    %v2436 = vld [vmem:[%s8 + $0x178] sm:$0xff]
    %2437 = vmatprep.subr.mxu0 %v2390
    %2438 = vmatpush1.msra.mxu0 %v2389
    %2439 = vmatprep.subr.mxu0 %v2393
    %2440 = vmatpush1.msra.mxu0 %v2392
    %2441 = vmatprep.subr.mxu0 %v2396
    %2442 = vmatpush1.msra.mxu0 %v2395
    %2443 = vmatprep.subr.mxu0 %v2399
    %2444 = vmatpush1.msra.mxu0 %v2398
    %2445 = vmatprep.subr.mxu0 %v2402
    %2446 = vmatpush1.msra.mxu0 %v2401
    %2447 = vmatprep.subr.mxu0 %v2405
    %2448 = vmatpush1.msra.mxu0 %v2404
    %2449 = vmatprep.subr.mxu0 %v2408
    %2450 = vmatpush1.msra.mxu0 %v2407
    %2451 = vmatprep.subr.mxu0 %v2411
    %2452 = vmatpush1.msra.mxu0 %v2410
    %2453 = vmatprep.subr.mxu0 %v2414
    %2454 = vmatpush1.msra.mxu0 %v2413
    %2455 = vmatprep.subr.mxu0 %v2417
    %2456 = vmatpush1.msra.mxu0 %v2416
    %2457 = vmatprep.subr.mxu0 %v2420
    %2458 = vmatpush1.msra.mxu0 %v2419
    %2459 = vmatprep.subr.mxu0 %v2423
    %2460 = vmatpush1.msra.mxu0 %v2422
    %2461 = vmatprep.subr.mxu0 %v2426
    %2462 = vmatpush1.msra.mxu0 %v2425
    %2463 = vmatprep.subr.mxu0 %v2429
    %2464 = vmatpush1.msra.mxu0 %v2428
    %2465 = vmatprep.subr.mxu0 %v2432
    %2466 = vmatpush1.msra.mxu0 %v2431
    %2467 = vmatprep.subr.mxu0 %v2435
    %2468 = vmatpush1.msra.mxu0 %v2434
    %2469 = vmatprep.subr.mxu0 0.0
    %2470 = vmatpush1.msra.mxu0 0.0
    %2471 = vmatprep.subr.mxu0 0.0
    %2472 = vmatpush1.msra.mxu0 0.0
    %2473 = vmatprep.subr.mxu0 0.0
    %2474 = vmatpush1.msra.mxu0 0.0
    %2475 = vmatprep.subr.mxu0 0.0
    %2476 = vmatpush1.msra.mxu0 0.0
    %2477 = vmatprep.subr.mxu0 0.0
    %2478 = vmatpush1.msra.mxu0 0.0
    %2479 = vmatprep.subr.mxu0 0.0
    %2480 = vmatpush1.msra.mxu0 0.0
    %2481 = vmatprep.subr.mxu0 0.0
    %2482 = vmatpush1.msra.mxu0 0.0
    %2483 = vmatprep.subr.mxu0 0.0
    %2484 = vmatpush1.msra.mxu0 0.0
    %2485 = vmatprep.subr.mxu0 0.0
    %2486 = vmatpush1.msra.mxu0 0.0
    %2487 = vmatprep.subr.mxu0 0.0
    %2488 = vmatpush1.msra.mxu0 0.0
    %2489 = vmatprep.subr.mxu0 0.0
    %2490 = vmatpush1.msra.mxu0 0.0
    %2491 = vmatprep.subr.mxu0 0.0
    %2492 = vmatpush1.msra.mxu0 0.0
    %2493 = vmatprep.subr.mxu0 0.0
    %2494 = vmatpush1.msra.mxu0 0.0
    %2495 = vmatprep.subr.mxu0 0.0
    %2496 = vmatpush1.msra.mxu0 0.0
    %2497 = vmatprep.subr.mxu0 0.0
    %2498 = vmatpush1.msra.mxu0 0.0
    %2499 = vmatprep.subr.mxu0 0.0
    %2500 = vmatpush1.msra.mxu0 0.0
    %2501 = vmatprep.mubr.f32.mxu0 0.0
    %2502 = vmatmul.mubr.f32.gmra.mrb[0].mxu0 %v2382
    %v2503 = vpop.f32.mrb[0].mxu0
    %v2504 = vadd.f32 0.0, %v2503
    %v2505 = vpop.f32.mrb[0].mxu0
    %v2506 = vadd.f32 0.0, %v2505
    %2507 = vdwg.mxu0
    %2508 = vmatprep.subr.mxu0 0.0
    %2509 = vmatpush1.msra.mxu0 %v2391
    %2510 = vmatprep.subr.mxu0 0.0
    %2511 = vmatpush1.msra.mxu0 %v2394
    %2512 = vmatprep.subr.mxu0 0.0
    %2513 = vmatpush1.msra.mxu0 %v2397
    %2514 = vmatprep.subr.mxu0 0.0
    %2515 = vmatpush1.msra.mxu0 %v2400
    %2516 = vmatprep.subr.mxu0 0.0
    %2517 = vmatpush1.msra.mxu0 %v2403
    %2518 = vmatprep.subr.mxu0 0.0
    %2519 = vmatpush1.msra.mxu0 %v2406
    %2520 = vmatprep.subr.mxu0 0.0
    %2521 = vmatpush1.msra.mxu0 %v2409
    %2522 = vmatprep.subr.mxu0 0.0
    %2523 = vmatpush1.msra.mxu0 %v2412
    %2524 = vmatprep.subr.mxu0 0.0
    %2525 = vmatpush1.msra.mxu0 %v2415
    %2526 = vmatprep.subr.mxu0 0.0
    %2527 = vmatpush1.msra.mxu0 %v2418
    %2528 = vmatprep.subr.mxu0 0.0
    %2529 = vmatpush1.msra.mxu0 %v2421
    %2530 = vmatprep.subr.mxu0 0.0
    %2531 = vmatpush1.msra.mxu0 %v2424
    %2532 = vmatprep.subr.mxu0 0.0
    %2533 = vmatpush1.msra.mxu0 %v2427
    %2534 = vmatprep.subr.mxu0 0.0
    %2535 = vmatpush1.msra.mxu0 %v2430
    %2536 = vmatprep.subr.mxu0 0.0
    %2537 = vmatpush1.msra.mxu0 %v2433
    %2538 = vmatprep.subr.mxu0 0.0
    %2539 = vmatpush1.msra.mxu0 %v2436
    %2540 = vmatprep.subr.mxu0 0.0
    %2541 = vmatpush1.msra.mxu0 0.0
    %2542 = vmatprep.subr.mxu0 0.0
    %2543 = vmatpush1.msra.mxu0 0.0
    %2544 = vmatprep.subr.mxu0 0.0
    %2545 = vmatpush1.msra.mxu0 0.0
    %2546 = vmatprep.subr.mxu0 0.0
    %2547 = vmatpush1.msra.mxu0 0.0
    %2548 = vmatprep.subr.mxu0 0.0
    %2549 = vmatpush1.msra.mxu0 0.0
    %2550 = vmatprep.subr.mxu0 0.0
    %2551 = vmatpush1.msra.mxu0 0.0
    %2552 = vmatprep.subr.mxu0 0.0
    %2553 = vmatpush1.msra.mxu0 0.0
    %2554 = vmatprep.subr.mxu0 0.0
    %2555 = vmatpush1.msra.mxu0 0.0
    %2556 = vmatprep.subr.mxu0 0.0
    %2557 = vmatpush1.msra.mxu0 0.0
    %2558 = vmatprep.subr.mxu0 0.0
    %2559 = vmatpush1.msra.mxu0 0.0
    %2560 = vmatprep.subr.mxu0 0.0
    %2561 = vmatpush1.msra.mxu0 0.0
    %2562 = vmatprep.subr.mxu0 0.0
    %2563 = vmatpush1.msra.mxu0 0.0
    %2564 = vmatprep.subr.mxu0 0.0
    %2565 = vmatpush1.msra.mxu0 0.0
    %2566 = vmatprep.subr.mxu0 0.0
    %2567 = vmatpush1.msra.mxu0 0.0
    %2568 = vmatprep.subr.mxu0 0.0
    %2569 = vmatpush1.msra.mxu0 0.0
    %2570 = vmatprep.subr.mxu0 0.0
    %2571 = vmatpush1.msra.mxu0 0.0
    %2572 = vmatprep.mubr.f32.mxu0 0.0
    %2573 = vmatmul.mubr.f32.gmra.mrb[0].mxu0 %v2382
    %v2574 = vpop.f32.mrb[0].mxu0
    %v2575 = vadd.f32 0.0, %v2574
    %v2576 = vpop.f32.mrb[0].mxu0
    %2577 = vdwg.mxu0
    %v2578 = vadd.f32 %v2386, %v2504
    %v2579 = vadd.f32 %v2387, %v2506
    %v2580 = vxor.u32 %v2578, 2147483648
    %v2581 = vxor.u32 %v2579, 2147483648
    %v2582 = vmul.f32 %v2580, 1.442695
    %v2583 = vpow.pop %v2582
    %v2584 = vmul.f32 %v2581, 1.442695
    %v2585 = vpow.pop %v2584
    %v2586 = vadd.f32 %v2583, 1.0
    %v2587 = vadd.f32 %v2585, 1.0
    %v2588 = vrcp.pop %v2586
    %v2589 = vmul.f32 1.0, %v2588
    %v2590 = vrcp.pop %v2587
    %v2591 = vmul.f32 1.0, %v2590
    %v2592 = vadd.f32 %v2575, %v2154
    %v2593 = vmul.f32 %v2589, %v2592
    %v2594 = vadd.f32 %v2388, %v2593
    %v2595 = vtanh.pop %v2594
    %v2596 = vsub.f32 1.0, %v2591
    %v2597 = vmul.f32 %v2596, %v2595
    %v2598 = vmul.f32 %v2591, %v2382
    %v2599 = vadd.f32 %v2597, %v2598
    %vm2600 = vcmp.gt.s32.totalorder %v2148, 1
    %v2601 = vsel %vm2600, 1, 0
    %2602 = vset.pattern.permute.xlu0 0
    %2603 = vperm.xlu0 %2602, %v2601
    %v2604 = vpop.permute.xlu0 %2603
    %vm2605 = vcmp.eq.s32.totalorder %v2604, 1
    %v2606 = vsel %vm2605, %v2599, %v2382
    %2607 = vst [vmem:[#allocation5] sm:$0xff] %v2606
    %v2608 = vld [vmem:[#allocation5] sm:$0xff]
    %s2609 = smul.u32 2, 3
    %s2610 = smul.addr %s2609, 8
    %s2611 = scalar_lea.vmem [#allocation4], %s2610
    %v2612 = vld [vmem:[%s2611] sm:$0xff]
    %v2613 = vld [vmem:[%s2611 + $0x8] sm:$0xff]
    %v2614 = vld [vmem:[%s2611 + $0x10] sm:$0xff]
    %v2615 = vld [vmem:[%s8] sm:$0xff]
    %v2616 = vld [vmem:[%s8 + $0x8] sm:$0xff]
    %v2617 = vld [vmem:[%s8 + $0x10] sm:$0xff]
    %v2618 = vld [vmem:[%s8 + $0x18] sm:$0xff]
    %v2619 = vld [vmem:[%s8 + $0x20] sm:$0xff]
    %v2620 = vld [vmem:[%s8 + $0x28] sm:$0xff]
    %v2621 = vld [vmem:[%s8 + $0x30] sm:$0xff]
    %v2622 = vld [vmem:[%s8 + $0x38] sm:$0xff]
    %v2623 = vld [vmem:[%s8 + $0x40] sm:$0xff]
    %v2624 = vld [vmem:[%s8 + $0x48] sm:$0xff]
    %v2625 = vld [vmem:[%s8 + $0x50] sm:$0xff]
    %v2626 = vld [vmem:[%s8 + $0x58] sm:$0xff]
    %v2627 = vld [vmem:[%s8 + $0x60] sm:$0xff]
    %v2628 = vld [vmem:[%s8 + $0x68] sm:$0xff]
    %v2629 = vld [vmem:[%s8 + $0x70] sm:$0xff]
    %v2630 = vld [vmem:[%s8 + $0x78] sm:$0xff]
    %v2631 = vld [vmem:[%s8 + $0x80] sm:$0xff]
    %v2632 = vld [vmem:[%s8 + $0x88] sm:$0xff]
    %v2633 = vld [vmem:[%s8 + $0x90] sm:$0xff]
    %v2634 = vld [vmem:[%s8 + $0x98] sm:$0xff]
    %v2635 = vld [vmem:[%s8 + $0xa0] sm:$0xff]
    %v2636 = vld [vmem:[%s8 + $0xa8] sm:$0xff]
    %v2637 = vld [vmem:[%s8 + $0xb0] sm:$0xff]
    %v2638 = vld [vmem:[%s8 + $0xb8] sm:$0xff]
    %v2639 = vld [vmem:[%s8 + $0xc0] sm:$0xff]
    %v2640 = vld [vmem:[%s8 + $0xc8] sm:$0xff]
    %v2641 = vld [vmem:[%s8 + $0xd0] sm:$0xff]
    %v2642 = vld [vmem:[%s8 + $0xd8] sm:$0xff]
    %v2643 = vld [vmem:[%s8 + $0xe0] sm:$0xff]
    %v2644 = vld [vmem:[%s8 + $0xe8] sm:$0xff]
    %v2645 = vld [vmem:[%s8 + $0xf0] sm:$0xff]
    %v2646 = vld [vmem:[%s8 + $0xf8] sm:$0xff]
    %v2647 = vld [vmem:[%s8 + $0x100] sm:$0xff]
    %v2648 = vld [vmem:[%s8 + $0x108] sm:$0xff]
    %v2649 = vld [vmem:[%s8 + $0x110] sm:$0xff]
    %v2650 = vld [vmem:[%s8 + $0x118] sm:$0xff]
    %v2651 = vld [vmem:[%s8 + $0x120] sm:$0xff]
    %v2652 = vld [vmem:[%s8 + $0x128] sm:$0xff]
    %v2653 = vld [vmem:[%s8 + $0x130] sm:$0xff]
    %v2654 = vld [vmem:[%s8 + $0x138] sm:$0xff]
    %v2655 = vld [vmem:[%s8 + $0x140] sm:$0xff]
    %v2656 = vld [vmem:[%s8 + $0x148] sm:$0xff]
    %v2657 = vld [vmem:[%s8 + $0x150] sm:$0xff]
    %v2658 = vld [vmem:[%s8 + $0x158] sm:$0xff]
    %v2659 = vld [vmem:[%s8 + $0x160] sm:$0xff]
    %v2660 = vld [vmem:[%s8 + $0x168] sm:$0xff]
    %v2661 = vld [vmem:[%s8 + $0x170] sm:$0xff]
    %v2662 = vld [vmem:[%s8 + $0x178] sm:$0xff]
    %2663 = vmatprep.subr.mxu0 %v2616
    %2664 = vmatpush1.msra.mxu0 %v2615
    %2665 = vmatprep.subr.mxu0 %v2619
    %2666 = vmatpush1.msra.mxu0 %v2618
    %2667 = vmatprep.subr.mxu0 %v2622
    %2668 = vmatpush1.msra.mxu0 %v2621
    %2669 = vmatprep.subr.mxu0 %v2625
    %2670 = vmatpush1.msra.mxu0 %v2624
    %2671 = vmatprep.subr.mxu0 %v2628
    %2672 = vmatpush1.msra.mxu0 %v2627
    %2673 = vmatprep.subr.mxu0 %v2631
    %2674 = vmatpush1.msra.mxu0 %v2630
    %2675 = vmatprep.subr.mxu0 %v2634
    %2676 = vmatpush1.msra.mxu0 %v2633
    %2677 = vmatprep.subr.mxu0 %v2637
    %2678 = vmatpush1.msra.mxu0 %v2636
    %2679 = vmatprep.subr.mxu0 %v2640
    %2680 = vmatpush1.msra.mxu0 %v2639
    %2681 = vmatprep.subr.mxu0 %v2643
    %2682 = vmatpush1.msra.mxu0 %v2642
    %2683 = vmatprep.subr.mxu0 %v2646
    %2684 = vmatpush1.msra.mxu0 %v2645
    %2685 = vmatprep.subr.mxu0 %v2649
    %2686 = vmatpush1.msra.mxu0 %v2648
    %2687 = vmatprep.subr.mxu0 %v2652
    %2688 = vmatpush1.msra.mxu0 %v2651
    %2689 = vmatprep.subr.mxu0 %v2655
    %2690 = vmatpush1.msra.mxu0 %v2654
    %2691 = vmatprep.subr.mxu0 %v2658
    %2692 = vmatpush1.msra.mxu0 %v2657
    %2693 = vmatprep.subr.mxu0 %v2661
    %2694 = vmatpush1.msra.mxu0 %v2660
    %2695 = vmatprep.subr.mxu0 0.0
    %2696 = vmatpush1.msra.mxu0 0.0
    %2697 = vmatprep.subr.mxu0 0.0
    %2698 = vmatpush1.msra.mxu0 0.0
    %2699 = vmatprep.subr.mxu0 0.0
    %2700 = vmatpush1.msra.mxu0 0.0
    %2701 = vmatprep.subr.mxu0 0.0
    %2702 = vmatpush1.msra.mxu0 0.0
    %2703 = vmatprep.subr.mxu0 0.0
    %2704 = vmatpush1.msra.mxu0 0.0
    %2705 = vmatprep.subr.mxu0 0.0
    %2706 = vmatpush1.msra.mxu0 0.0
    %2707 = vmatprep.subr.mxu0 0.0
    %2708 = vmatpush1.msra.mxu0 0.0
    %2709 = vmatprep.subr.mxu0 0.0
    %2710 = vmatpush1.msra.mxu0 0.0
    %2711 = vmatprep.subr.mxu0 0.0
    %2712 = vmatpush1.msra.mxu0 0.0
    %2713 = vmatprep.subr.mxu0 0.0
    %2714 = vmatpush1.msra.mxu0 0.0
    %2715 = vmatprep.subr.mxu0 0.0
    %2716 = vmatpush1.msra.mxu0 0.0
    %2717 = vmatprep.subr.mxu0 0.0
    %2718 = vmatpush1.msra.mxu0 0.0
    %2719 = vmatprep.subr.mxu0 0.0
    %2720 = vmatpush1.msra.mxu0 0.0
    %2721 = vmatprep.subr.mxu0 0.0
    %2722 = vmatpush1.msra.mxu0 0.0
    %2723 = vmatprep.subr.mxu0 0.0
    %2724 = vmatpush1.msra.mxu0 0.0
    %2725 = vmatprep.subr.mxu0 0.0
    %2726 = vmatpush1.msra.mxu0 0.0
    %2727 = vmatprep.mubr.f32.mxu0 0.0
    %2728 = vmatmul.mubr.f32.gmra.mrb[0].mxu0 %v2608
    %v2729 = vpop.f32.mrb[0].mxu0
    %v2730 = vadd.f32 0.0, %v2729
    %v2731 = vpop.f32.mrb[0].mxu0
    %v2732 = vadd.f32 0.0, %v2731
    %2733 = vdwg.mxu0
    %2734 = vmatprep.subr.mxu0 0.0
    %2735 = vmatpush1.msra.mxu0 %v2617
    %2736 = vmatprep.subr.mxu0 0.0
    %2737 = vmatpush1.msra.mxu0 %v2620
    %2738 = vmatprep.subr.mxu0 0.0
    %2739 = vmatpush1.msra.mxu0 %v2623
    %2740 = vmatprep.subr.mxu0 0.0
    %2741 = vmatpush1.msra.mxu0 %v2626
    %2742 = vmatprep.subr.mxu0 0.0
    %2743 = vmatpush1.msra.mxu0 %v2629
    %2744 = vmatprep.subr.mxu0 0.0
    %2745 = vmatpush1.msra.mxu0 %v2632
    %2746 = vmatprep.subr.mxu0 0.0
    %2747 = vmatpush1.msra.mxu0 %v2635
    %2748 = vmatprep.subr.mxu0 0.0
    %2749 = vmatpush1.msra.mxu0 %v2638
    %2750 = vmatprep.subr.mxu0 0.0
    %2751 = vmatpush1.msra.mxu0 %v2641
    %2752 = vmatprep.subr.mxu0 0.0
    %2753 = vmatpush1.msra.mxu0 %v2644
    %2754 = vmatprep.subr.mxu0 0.0
    %2755 = vmatpush1.msra.mxu0 %v2647
    %2756 = vmatprep.subr.mxu0 0.0
    %2757 = vmatpush1.msra.mxu0 %v2650
    %2758 = vmatprep.subr.mxu0 0.0
    %2759 = vmatpush1.msra.mxu0 %v2653
    %2760 = vmatprep.subr.mxu0 0.0
    %2761 = vmatpush1.msra.mxu0 %v2656
    %2762 = vmatprep.subr.mxu0 0.0
    %2763 = vmatpush1.msra.mxu0 %v2659
    %2764 = vmatprep.subr.mxu0 0.0
    %2765 = vmatpush1.msra.mxu0 %v2662
    %2766 = vmatprep.subr.mxu0 0.0
    %2767 = vmatpush1.msra.mxu0 0.0
    %2768 = vmatprep.subr.mxu0 0.0
    %2769 = vmatpush1.msra.mxu0 0.0
    %2770 = vmatprep.subr.mxu0 0.0
    %2771 = vmatpush1.msra.mxu0 0.0
    %2772 = vmatprep.subr.mxu0 0.0
    %2773 = vmatpush1.msra.mxu0 0.0
    %2774 = vmatprep.subr.mxu0 0.0
    %2775 = vmatpush1.msra.mxu0 0.0
    %2776 = vmatprep.subr.mxu0 0.0
    %2777 = vmatpush1.msra.mxu0 0.0
    %2778 = vmatprep.subr.mxu0 0.0
    %2779 = vmatpush1.msra.mxu0 0.0
    %2780 = vmatprep.subr.mxu0 0.0
    %2781 = vmatpush1.msra.mxu0 0.0
    %2782 = vmatprep.subr.mxu0 0.0
    %2783 = vmatpush1.msra.mxu0 0.0
    %2784 = vmatprep.subr.mxu0 0.0
    %2785 = vmatpush1.msra.mxu0 0.0
    %2786 = vmatprep.subr.mxu0 0.0
    %2787 = vmatpush1.msra.mxu0 0.0
    %2788 = vmatprep.subr.mxu0 0.0
    %2789 = vmatpush1.msra.mxu0 0.0
    %2790 = vmatprep.subr.mxu0 0.0
    %2791 = vmatpush1.msra.mxu0 0.0
    %2792 = vmatprep.subr.mxu0 0.0
    %2793 = vmatpush1.msra.mxu0 0.0
    %2794 = vmatprep.subr.mxu0 0.0
    %2795 = vmatpush1.msra.mxu0 0.0
    %2796 = vmatprep.subr.mxu0 0.0
    %2797 = vmatpush1.msra.mxu0 0.0
    %2798 = vmatprep.mubr.f32.mxu0 0.0
    %2799 = vmatmul.mubr.f32.gmra.mrb[0].mxu0 %v2608
    %v2800 = vpop.f32.mrb[0].mxu0
    %v2801 = vadd.f32 0.0, %v2800
    %v2802 = vpop.f32.mrb[0].mxu0
    %2803 = vdwg.mxu0
    %v2804 = vadd.f32 %v2612, %v2730
    %v2805 = vadd.f32 %v2613, %v2732
    %v2806 = vxor.u32 %v2804, 2147483648
    %v2807 = vxor.u32 %v2805, 2147483648
    %v2808 = vmul.f32 %v2806, 1.442695
    %v2809 = vpow.pop %v2808
    %v2810 = vmul.f32 %v2807, 1.442695
    %v2811 = vpow.pop %v2810
    %v2812 = vadd.f32 %v2809, 1.0
    %v2813 = vadd.f32 %v2811, 1.0
    %v2814 = vrcp.pop %v2812
    %v2815 = vmul.f32 1.0, %v2814
    %v2816 = vrcp.pop %v2813
    %v2817 = vmul.f32 1.0, %v2816
    %v2818 = vadd.f32 %v2801, %v2154
    %v2819 = vmul.f32 %v2815, %v2818
    %v2820 = vadd.f32 %v2614, %v2819
    %v2821 = vtanh.pop %v2820
    %v2822 = vsub.f32 1.0, %v2817
    %v2823 = vmul.f32 %v2822, %v2821
    %v2824 = vmul.f32 %v2817, %v2608
    %v2825 = vadd.f32 %v2823, %v2824
    %vm2826 = vcmp.gt.s32.totalorder %v2148, 2
    %v2827 = vsel %vm2826, 1, 0
    %2828 = vset.pattern.permute.xlu0 0
    %2829 = vperm.xlu0 %2828, %v2827
    %v2830 = vpop.permute.xlu0 %2829
    %vm2831 = vcmp.eq.s32.totalorder %v2830, 1
    %v2832 = vsel %vm2831, %v2825, %v2608
    %2833 = vst [vmem:[#allocation5] sm:$0xff] %v2832
    %v2834 = vld [vmem:[#allocation5] sm:$0xff]
    %v2835 = vld [vmem:[%s10] sm:$0xff]
    %v2836 = vld [vmem:[%s10 + $0x8] sm:$0xff]
    %v2837 = vld [vmem:[%s10 + $0x10] sm:$0xff]
    %v2838 = vld [vmem:[%s10 + $0x18] sm:$0xff]
    %v2839 = vld [vmem:[%s11] sm:$0x1]
    %v2841 = vlaneseq
    %v2842 = vshrl.u32 %v2841, 7
    %v2843 = vsub.s32 0, %v2842
    %v2844 = vrot.slane %v2839, %v2843
    %v2847 = vsel %vm1965, %v2834, 0
    %2849 = vmatprep.subr.mxu0 0.0
    %2850 = vmatpush1.msra.mxu0 %v2835
    %2851 = vmatprep.subr.mxu0 0.0
    %2852 = vmatpush1.msra.mxu0 %v2836
    %2853 = vmatprep.subr.mxu0 0.0
    %2854 = vmatpush1.msra.mxu0 %v2837
    %2855 = vmatprep.subr.mxu0 0.0
    %2856 = vmatpush1.msra.mxu0 %v2838
    %2857 = vmatprep.subr.mxu0 0.0
    %2858 = vmatpush1.msra.mxu0 0.0
    %2859 = vmatprep.subr.mxu0 0.0
    %2860 = vmatpush1.msra.mxu0 0.0
    %2861 = vmatprep.subr.mxu0 0.0
    %2862 = vmatpush1.msra.mxu0 0.0
    %2863 = vmatprep.subr.mxu0 0.0
    %2864 = vmatpush1.msra.mxu0 0.0
    %2865 = vmatprep.subr.mxu0 0.0
    %2866 = vmatpush1.msra.mxu0 0.0
    %2867 = vmatprep.subr.mxu0 0.0
    %2868 = vmatpush1.msra.mxu0 0.0
    %2869 = vmatprep.subr.mxu0 0.0
    %2870 = vmatpush1.msra.mxu0 0.0
    %2871 = vmatprep.subr.mxu0 0.0
    %2872 = vmatpush1.msra.mxu0 0.0
    %2873 = vmatprep.subr.mxu0 0.0
    %2874 = vmatpush1.msra.mxu0 0.0
    %2875 = vmatprep.subr.mxu0 0.0
    %2876 = vmatpush1.msra.mxu0 0.0
    %2877 = vmatprep.subr.mxu0 0.0
    %2878 = vmatpush1.msra.mxu0 0.0
    %2879 = vmatprep.subr.mxu0 0.0
    %2880 = vmatpush1.msra.mxu0 0.0
    %2881 = vmatprep.subr.mxu0 0.0
    %2882 = vmatpush1.msra.mxu0 0.0
    %2883 = vmatprep.subr.mxu0 0.0
    %2884 = vmatpush1.msra.mxu0 0.0
    %2885 = vmatprep.subr.mxu0 0.0
    %2886 = vmatpush1.msra.mxu0 0.0
    %2887 = vmatprep.subr.mxu0 0.0
    %2888 = vmatpush1.msra.mxu0 0.0
    %2889 = vmatprep.subr.mxu0 0.0
    %2890 = vmatpush1.msra.mxu0 0.0
    %2891 = vmatprep.subr.mxu0 0.0
    %2892 = vmatpush1.msra.mxu0 0.0
    %2893 = vmatprep.subr.mxu0 0.0
    %2894 = vmatpush1.msra.mxu0 0.0
    %2895 = vmatprep.subr.mxu0 0.0
    %2896 = vmatpush1.msra.mxu0 0.0
    %2897 = vmatprep.subr.mxu0 0.0
    %2898 = vmatpush1.msra.mxu0 0.0
    %2899 = vmatprep.subr.mxu0 0.0
    %2900 = vmatpush1.msra.mxu0 0.0
    %2901 = vmatprep.subr.mxu0 0.0
    %2902 = vmatpush1.msra.mxu0 0.0
    %2903 = vmatprep.subr.mxu0 0.0
    %2904 = vmatpush1.msra.mxu0 0.0
    %2905 = vmatprep.subr.mxu0 0.0
    %2906 = vmatpush1.msra.mxu0 0.0
    %2907 = vmatprep.subr.mxu0 0.0
    %2908 = vmatpush1.msra.mxu0 0.0
    %2909 = vmatprep.subr.mxu0 0.0
    %2910 = vmatpush1.msra.mxu0 0.0
    %2911 = vmatprep.subr.mxu0 0.0
    %2912 = vmatpush1.msra.mxu0 0.0
    %2913 = vmatprep.mubr.f32.mxu0 0.0
    %2914 = vmatmul.mubr.f32.gmra.mrb[0].mxu0 %v2847
    %v2915 = vpop.f32.mrb[0].mxu0
    %v2916 = vadd.f32 %v2844, %v2915
    %v2917 = vpop.f32.mrb[0].mxu0
    %2918 = vdwg.mxu0
    %v2919 = vmax.f32 %v2916, 0.0
    %v2920 = vld [vmem:[%s12] sm:$0xff]
    %v2921 = vld [vmem:[%s12 + $0x8] sm:$0xff]
    %v2922 = vld [vmem:[%s12 + $0x10] sm:$0xff]
    %v2923 = vld [vmem:[%s12 + $0x18] sm:$0xff]
    %v2924 = vld [vmem:[%s13] sm:$0x1]
    %v2926 = vlaneseq
    %v2927 = vshrl.u32 %v2926, 7
    %v2928 = vsub.s32 0, %v2927
    %v2929 = vrot.slane %v2924, %v2928
    %v2932 = vsel %vm1965, %v2919, 0
    %2934 = vmatprep.subr.mxu0 0.0
    %2935 = vmatpush1.msra.mxu0 %v2920
    %2936 = vmatprep.subr.mxu0 0.0
    %2937 = vmatpush1.msra.mxu0 %v2921
    %2938 = vmatprep.subr.mxu0 0.0
    %2939 = vmatpush1.msra.mxu0 %v2922
    %2940 = vmatprep.subr.mxu0 0.0
    %2941 = vmatpush1.msra.mxu0 %v2923
    %2942 = vmatprep.subr.mxu0 0.0
    %2943 = vmatpush1.msra.mxu0 0.0
    %2944 = vmatprep.subr.mxu0 0.0
    %2945 = vmatpush1.msra.mxu0 0.0
    %2946 = vmatprep.subr.mxu0 0.0
    %2947 = vmatpush1.msra.mxu0 0.0
    %2948 = vmatprep.subr.mxu0 0.0
    %2949 = vmatpush1.msra.mxu0 0.0
    %2950 = vmatprep.subr.mxu0 0.0
    %2951 = vmatpush1.msra.mxu0 0.0
    %2952 = vmatprep.subr.mxu0 0.0
    %2953 = vmatpush1.msra.mxu0 0.0
    %2954 = vmatprep.subr.mxu0 0.0
    %2955 = vmatpush1.msra.mxu0 0.0
    %2956 = vmatprep.subr.mxu0 0.0
    %2957 = vmatpush1.msra.mxu0 0.0
    %2958 = vmatprep.subr.mxu0 0.0
    %2959 = vmatpush1.msra.mxu0 0.0
    %2960 = vmatprep.subr.mxu0 0.0
    %2961 = vmatpush1.msra.mxu0 0.0
    %2962 = vmatprep.subr.mxu0 0.0
    %2963 = vmatpush1.msra.mxu0 0.0
    %2964 = vmatprep.subr.mxu0 0.0
    %2965 = vmatpush1.msra.mxu0 0.0
    %2966 = vmatprep.subr.mxu0 0.0
    %2967 = vmatpush1.msra.mxu0 0.0
    %2968 = vmatprep.subr.mxu0 0.0
    %2969 = vmatpush1.msra.mxu0 0.0
    %2970 = vmatprep.subr.mxu0 0.0
    %2971 = vmatpush1.msra.mxu0 0.0
    %2972 = vmatprep.subr.mxu0 0.0
    %2973 = vmatpush1.msra.mxu0 0.0
    %2974 = vmatprep.subr.mxu0 0.0
    %2975 = vmatpush1.msra.mxu0 0.0
    %2976 = vmatprep.subr.mxu0 0.0
    %2977 = vmatpush1.msra.mxu0 0.0
    %2978 = vmatprep.subr.mxu0 0.0
    %2979 = vmatpush1.msra.mxu0 0.0
    %2980 = vmatprep.subr.mxu0 0.0
    %2981 = vmatpush1.msra.mxu0 0.0
    %2982 = vmatprep.subr.mxu0 0.0
    %2983 = vmatpush1.msra.mxu0 0.0
    %2984 = vmatprep.subr.mxu0 0.0
    %2985 = vmatpush1.msra.mxu0 0.0
    %2986 = vmatprep.subr.mxu0 0.0
    %2987 = vmatpush1.msra.mxu0 0.0
    %2988 = vmatprep.subr.mxu0 0.0
    %2989 = vmatpush1.msra.mxu0 0.0
    %2990 = vmatprep.subr.mxu0 0.0
    %2991 = vmatpush1.msra.mxu0 0.0
    %2992 = vmatprep.subr.mxu0 0.0
    %2993 = vmatpush1.msra.mxu0 0.0
    %2994 = vmatprep.subr.mxu0 0.0
    %2995 = vmatpush1.msra.mxu0 0.0
    %2996 = vmatprep.subr.mxu0 0.0
    %2997 = vmatpush1.msra.mxu0 0.0
    %2998 = vmatprep.mubr.f32.mxu0 0.0
    %2999 = vmatmul.mubr.f32.gmra.mrb[0].mxu0 %v2932
    %v3000 = vpop.f32.mrb[0].mxu0
    %v3001 = vadd.f32 %v2929, %v3000
    %v3002 = vpop.f32.mrb[0].mxu0
    %3003 = vdwg.mxu0
    %v3004 = vmax.f32 %v3001, 0.0
    %v3005 = vld [vmem:[%s14] sm:$0xff]
    %v3006 = vld [vmem:[%s14 + $0x8] sm:$0xff]
    %v3007 = vld [vmem:[#allocation8] sm:$0x1]
    %v3009 = vlaneseq
    %v3010 = vshrl.u32 %v3009, 7
    %v3011 = vsub.s32 0, %v3010
    %v3012 = vrot.slane %v3007, %v3011
    %vm3014 = vcmask 130048
    %v3016 = vsel %vm3014, %v3004, 0
    %3018 = vmatprep.subr.mxu0 0.0
    %3019 = vmatpush1.msra.mxu0 %v3005
    %3020 = vmatprep.subr.mxu0 0.0
    %3021 = vmatpush1.msra.mxu0 %v3006
    %3022 = vmatprep.subr.mxu0 0.0
    %3023 = vmatpush1.msra.mxu0 0.0
    %3024 = vmatprep.subr.mxu0 0.0
    %3025 = vmatpush1.msra.mxu0 0.0
    %3026 = vmatprep.subr.mxu0 0.0
    %3027 = vmatpush1.msra.mxu0 0.0
    %3028 = vmatprep.subr.mxu0 0.0
    %3029 = vmatpush1.msra.mxu0 0.0
    %3030 = vmatprep.subr.mxu0 0.0
    %3031 = vmatpush1.msra.mxu0 0.0
    %3032 = vmatprep.subr.mxu0 0.0
    %3033 = vmatpush1.msra.mxu0 0.0
    %3034 = vmatprep.subr.mxu0 0.0
    %3035 = vmatpush1.msra.mxu0 0.0
    %3036 = vmatprep.subr.mxu0 0.0
    %3037 = vmatpush1.msra.mxu0 0.0
    %3038 = vmatprep.subr.mxu0 0.0
    %3039 = vmatpush1.msra.mxu0 0.0
    %3040 = vmatprep.subr.mxu0 0.0
    %3041 = vmatpush1.msra.mxu0 0.0
    %3042 = vmatprep.subr.mxu0 0.0
    %3043 = vmatpush1.msra.mxu0 0.0
    %3044 = vmatprep.subr.mxu0 0.0
    %3045 = vmatpush1.msra.mxu0 0.0
    %3046 = vmatprep.subr.mxu0 0.0
    %3047 = vmatpush1.msra.mxu0 0.0
    %3048 = vmatprep.subr.mxu0 0.0
    %3049 = vmatpush1.msra.mxu0 0.0
    %3050 = vmatprep.subr.mxu0 0.0
    %3051 = vmatpush1.msra.mxu0 0.0
    %3052 = vmatprep.subr.mxu0 0.0
    %3053 = vmatpush1.msra.mxu0 0.0
    %3054 = vmatprep.subr.mxu0 0.0
    %3055 = vmatpush1.msra.mxu0 0.0
    %3056 = vmatprep.subr.mxu0 0.0
    %3057 = vmatpush1.msra.mxu0 0.0
    %3058 = vmatprep.subr.mxu0 0.0
    %3059 = vmatpush1.msra.mxu0 0.0
    %3060 = vmatprep.subr.mxu0 0.0
    %3061 = vmatpush1.msra.mxu0 0.0
    %3062 = vmatprep.subr.mxu0 0.0
    %3063 = vmatpush1.msra.mxu0 0.0
    %3064 = vmatprep.subr.mxu0 0.0
    %3065 = vmatpush1.msra.mxu0 0.0
    %3066 = vmatprep.subr.mxu0 0.0
    %3067 = vmatpush1.msra.mxu0 0.0
    %3068 = vmatprep.subr.mxu0 0.0
    %3069 = vmatpush1.msra.mxu0 0.0
    %3070 = vmatprep.subr.mxu0 0.0
    %3071 = vmatpush1.msra.mxu0 0.0
    %3072 = vmatprep.subr.mxu0 0.0
    %3073 = vmatpush1.msra.mxu0 0.0
    %3074 = vmatprep.subr.mxu0 0.0
    %3075 = vmatpush1.msra.mxu0 0.0
    %3076 = vmatprep.subr.mxu0 0.0
    %3077 = vmatpush1.msra.mxu0 0.0
    %3078 = vmatprep.subr.mxu0 0.0
    %3079 = vmatpush1.msra.mxu0 0.0
    %3080 = vmatprep.subr.mxu0 0.0
    %3081 = vmatpush1.msra.mxu0 0.0
    %3082 = vmatprep.mubr.f32.mxu0 0.0
    %3083 = vmatmul.mubr.f32.gmra.mrb[0].mxu0 %v3016
    %v3084 = vpop.f32.mrb[0].mxu0
    %v3085 = vadd.f32 %v3012, %v3084
    %v3086 = vpop.f32.mrb[0].mxu0
    %3087 = vdwg.mxu0
    %vm3088 = vcmask 7168
    %3089 = vst.msk [vmem:[%s16] sm:$0xff] %vm3088, %v3085
  $region77: #{predictor_forward.1} parent=0 // pred_fallthru
    _
  // Predicated region
  $region78: #{predictor_forward.1} parent=0 // pred_check
    _
  $region79: #{predictor_forward.1} parent=0 // pred_check_branch
    %3091 = sbr.rel (0) target = $region81
  $region80: #{predictor_forward.1} parent=0 // pred_region
    _
  $region81: #{predictor_forward.1} parent=0 // pred_fallthru
    _
  // Predicated region
  $region82: #{predictor_forward.1} parent=0 // pred_check
    _
  $region83: #{predictor_forward.1} parent=0 // pred_check_branch
    %3093 = sbr.rel (0) target = $region85
  $region84: #{predictor_forward.1} parent=0 // pred_region
    _
  $region85: #{predictor_forward.1} parent=0 // pred_fallthru
    _

</llo_original>
